<compile_context>
chip_gen: v7x
topology: tpu7x:2x2x1
jax: 0.10.0
libtpu: 0.0.40
codegen_flags: <defaults>
</compile_context>

<pallas_src>
import functools

import jax
import jax.numpy as jnp
import numpy as np
from jax.experimental import pallas as pl
from jax.experimental.pallas import tpu as pltpu


# ---------------------------------------------------------------------------
# Fused Pallas kernel: conv1+ReLU -> avgpool2 -> conv2+ReLU -> GAP -> heads
# ---------------------------------------------------------------------------
def _fused_backbone_heads_kernel(xp_ref, w1_ref, b1_ref, pm_ref, w2_ref, b2_ref,
                                 wall_ref, ball_ref, o_ref, p_scr, *,
                                 H, W, C, Cmid, Cout):
    Hp, Wp = H // 2, W // 2

    # ---- conv1 (3x3 'same') + ReLU: 9 shifted dot-accumulates on the padded tile
    acc1 = jnp.zeros((H * W, Cmid), jnp.float32)
    for t in range(9):
        dh, dw = divmod(t, 3)
        patch = xp_ref[dh:dh + H, dw:dw + W, :].reshape(H * W, C)       # bf16
        acc1 = acc1 + jnp.dot(patch, w1_ref[t],
                              preferred_element_type=jnp.float32)
    h1 = jnp.maximum(acc1 + b1_ref[...], 0.0).astype(jnp.bfloat16)      # (H*W, Cmid)

    # ---- 2x2 average pool as an MXU matmul with the constant 0.25 pooling matrix
    p_flat = jnp.dot(pm_ref[...], h1,
                     preferred_element_type=jnp.float32)                # (Hp*Wp, Cmid)

    # ---- zero-padded pooled map held in VMEM scratch (= conv2's 'same' halo)
    p_scr[...] = jnp.zeros_like(p_scr)
    p_scr[1:Hp + 1, 1:Wp + 1, :] = p_flat.reshape(Hp, Wp, Cmid)

    # ---- conv2 (3x3 'same') + ReLU: 9 shifted dot-accumulates on the pooled map
    acc2 = jnp.zeros((Hp * Wp, Cout), jnp.float32)
    for t in range(9):
        dh, dw = divmod(t, 3)
        patch = p_scr[dh:dh + Hp, dw:dw + Wp, :].reshape(Hp * Wp, Cmid)
        acc2 = acc2 + jnp.dot(patch.astype(jnp.bfloat16), w2_ref[t],
                              preferred_element_type=jnp.float32)
    a2 = jnp.maximum(acc2 + b2_ref[...], 0.0)                           # (Hp*Wp, Cout)

    # ---- global average pool as a ones-row matmul (MXU; avoids XLU sublane reduce)
    ones_row = jnp.ones((1, Hp * Wp), jnp.float32)
    f = jnp.dot(ones_row, a2,
                preferred_element_type=jnp.float32) * (1.0 / (Hp * Wp))  # (1, Cout)

    # ---- fused heads: [ I | merged-fc | train-fc | energy-fc ], lane-dense store
    o_ref[...] = jnp.dot(f, wall_ref[...],
                         preferred_element_type=jnp.float32) + ball_ref[...]


def fused_backbone_heads(xp, w1, b1, pool_mat, w2, b2, w_all, b_all):
    """One fused pallas_call per forward: per-image backbone + all heads.

    xp:       (B, H+2, W+2, C)  bf16, pre-padded input
    w1:       (9, C, Cmid)      bf16 conv1 taps
    b1:       (1, Cmid)         f32
    pool_mat: (Hp*Wp, H*W)      bf16 constant 2x2 avg-pool matrix
    w2:       (9, Cmid, Cout)   bf16 conv2 taps
    b2:       (1, Cout)         f32
    w_all:    (Cout, Ntot)      f32  [identity | fused heads], zero-padded to 128k
    b_all:    (1, Ntot)         f32
    returns   (B, Ntot)         f32  [ f | logits | train_logits | energy_logits | 0-pad ]
    """
    B, Hpad, Wpad, C = xp.shape
    H, W = Hpad - 2, Wpad - 2
    Hp, Wp = H // 2, W // 2
    Cmid = w1.shape[2]
    Cout = w2.shape[2]
    Ntot = w_all.shape[1]

    kernel = functools.partial(_fused_backbone_heads_kernel,
                               H=H, W=W, C=C, Cmid=Cmid, Cout=Cout)

    flops = B * (2 * H * W * 9 * C * Cmid            # conv1
                 + 2 * Hp * Wp * H * W * Cmid        # pool matmul
                 + 2 * Hp * Wp * 9 * Cmid * Cout     # conv2
                 + 2 * Hp * Wp * Cout                # GAP matmul
                 + 2 * Cout * Ntot)                  # heads
    bytes_accessed = (xp.size * 2 + w1.size * 2 + pool_mat.size * 2 + w2.size * 2
                      + (b1.size + b2.size + w_all.size + b_all.size) * 4
                      + B * Ntot * 4)
    cost = pl.CostEstimate(flops=flops, transcendentals=0,
                           bytes_accessed=bytes_accessed)

    out = pl.pallas_call(
        kernel,
        out_shape=jax.ShapeDtypeStruct((B, 1, Ntot), jnp.float32),
        grid=(B,),
        in_specs=[
            pl.BlockSpec((None, Hpad, Wpad, C), lambda b: (b, 0, 0, 0)),
            pl.BlockSpec((9, C, Cmid), lambda b: (0, 0, 0)),
            pl.BlockSpec((1, Cmid), lambda b: (0, 0)),
            pl.BlockSpec((Hp * Wp, H * W), lambda b: (0, 0)),
            pl.BlockSpec((9, Cmid, Cout), lambda b: (0, 0, 0)),
            pl.BlockSpec((1, Cout), lambda b: (0, 0)),
            pl.BlockSpec((Cout, Ntot), lambda b: (0, 0)),
            pl.BlockSpec((1, Ntot), lambda b: (0, 0)),
        ],
        out_specs=pl.BlockSpec((None, 1, Ntot), lambda b: (b, 0, 0)),
        scratch_shapes=[pltpu.VMEM((Hp + 2, Wp + 2, Cmid), jnp.float32)],
        compiler_params=pltpu.CompilerParams(dimension_semantics=("parallel",)),
        cost_estimate=cost,
    )(xp, w1, b1, pool_mat, w2, b2, w_all, b_all)
    return out.reshape(B, Ntot)


# ---------------------------------------------------------------------------
# Plain-JAX glue (layout plumbing / parameter merging; no hot compute)
# ---------------------------------------------------------------------------
def make_pool_matrix(H, W):
    """Constant (Hp*Wp, H*W) matrix implementing 2x2 average pooling."""
    Hp, Wp = H // 2, W // 2
    m = np.zeros((Hp * Wp, H * W), np.float32)
    for hp in range(Hp):
        for wp in range(Wp):
            q = hp * Wp + wp
            for dh in range(2):
                for dw in range(2):
                    m[q, (2 * hp + dh) * W + (2 * wp + dw)] = 0.25
    return jnp.asarray(m, dtype=jnp.bfloat16)   # 0.25 exact in bf16


def merge_beef_fc(params, task_sizes, out_dim, feature_dim):
    """Faithful reproduction of BEEFISONet.forward()'s weight-merging block."""
    T = len(task_sizes)
    t_new = task_sizes[-1]

    # --- merged fc (logits) ---
    fc_weight = jnp.concatenate(
        [params["old_fc_w"],
         jnp.zeros((t_new, feature_dim - out_dim), jnp.float32)], axis=0)
    nw = params["new_fc_w"]
    nb = params["new_fc_b"]
    for i in range(T - 2, -1, -1):
        a = params["bias_alpha"][i] + 1.0
        beta = params["bias_beta"][i]
        row = (a * params["backward_w"][i])[None, :]          # BiasLayer, bias=False
        nw = jnp.concatenate([jnp.tile(row, (task_sizes[i], 1)), nw], axis=0)
        bval = a * params["backward_b"][i] + beta             # BiasLayer, bias=True
        nb = jnp.concatenate([jnp.full((task_sizes[i],), bval), nb])
    fc_weight = jnp.concatenate([fc_weight, nw], axis=1)      # (sum_t, feature_dim)
    fc_bias = nb   # torch code: `fc_bias = +new_fc_bias` overrides the old/zeros concat

    # --- train_logits fc (backward prototypes, unscaled) ---
    tw = params["new_fc_w"]
    tb = params["new_fc_b"]
    for i in range(T - 2, -1, -1):
        tw = jnp.concatenate([params["backward_w"][i][None, :], tw], axis=0)
        tb = jnp.concatenate([params["backward_b"][i][None], tb])
    return fc_weight, fc_bias, tw, tb


# ---------------------------------------------------------------------------
# BEEFISONet forward (old_fc-set branch)
# ---------------------------------------------------------------------------
def beef_forward(x_nchw, params, cfg):
    out_dim = cfg["out_dim"]
    task_sizes = cfg["task_sizes"]
    n_conv = cfg["n_convnets"]
    feature_dim = out_dim * n_conv

    # PyTorch NCHW -> NHWC; pad once for conv1's 'same' halo; bf16 BEFORE expansion.
    x = jnp.transpose(x_nchw, (0, 2, 3, 1))
    B, H, W, C = x.shape
    xp = jnp.pad(x, ((0, 0), (1, 1), (1, 1), (0, 0))).astype(jnp.bfloat16)

    pool_mat = make_pool_matrix(H, W)

    # ---- parameter-only head merging (plain JAX), then fold into one head matrix.
    fc_w, fc_b, tw, tb = merge_beef_fc(params, task_sizes, out_dim, feature_dim)
    fw, fb = params["forward_w"], params["forward_b"]
    # features = concat([f] * n_conv) (shared state_dict) -> pre-sum merged-fc blocks.
    w_fc_eff = sum(fc_w[:, i * out_dim:(i + 1) * out_dim] for i in range(n_conv)).T
    w_heads = jnp.concatenate([w_fc_eff, tw.T, fw.T], axis=1)        # (out_dim, Nh)
    b_heads = jnp.concatenate([fc_b, tb, fb])                        # (Nh,)
    n1, n2, n3 = fc_w.shape[0], tw.shape[0], fw.shape[0]
    nh = n1 + n2 + n3
    # identity block emits `f` itself; pad columns to a lane-dense multiple of 128.
    ntot = ((out_dim + nh + 127) // 128) * 128
    w_all = jnp.zeros((out_dim, ntot), jnp.float32)
    w_all = w_all.at[:, :out_dim].set(jnp.eye(out_dim, dtype=jnp.float32))
    w_all = w_all.at[:, out_dim:out_dim + nh].set(w_heads.astype(jnp.float32))
    b_all = jnp.zeros((1, ntot), jnp.float32)
    b_all = b_all.at[0, out_dim:out_dim + nh].set(b_heads.astype(jnp.float32))

    y = fused_backbone_heads(
        xp,
        params["conv1_w"].astype(jnp.bfloat16),
        params["conv1_b"].reshape(1, -1).astype(jnp.float32),
        pool_mat,
        params["conv2_w"].astype(jnp.bfloat16),
        params["conv2_b"].reshape(1, -1).astype(jnp.float32),
        w_all, b_all)                                                 # (B, ntot)

    f = y[:, :out_dim]
    logits = y[:, out_dim:out_dim + n1]
    train_logits = y[:, out_dim + n1:out_dim + n1 + n2]
    energy_logits = y[:, out_dim + n1 + n2:out_dim + nh]
    features = jnp.concatenate([f] * n_conv, axis=1)
    return {
        "logits": logits,
        "train_logits": train_logits,
        "eval_logits": logits,
        "energy_logits": energy_logits,
        "features": features,
    }


# ---------------------------------------------------------------------------
# Reference (pure jnp, matching bf16/f32 numerics) for a sanity check
# ---------------------------------------------------------------------------
def im2col_3x3_same(x_nhwc):
    B, H, W, C = x_nhwc.shape
    xp = jnp.pad(x_nhwc, ((0, 0), (1, 1), (1, 1), (0, 0)))
    pats = [xp[:, dh:dh + H, dw:dw + W, :] for dh in range(3) for dw in range(3)]
    p = jnp.stack(pats, axis=3)                     # (B, H, W, 9, C)
    return p.reshape(B * H * W, 9 * C)


def beef_forward_ref(x_nchw, params, cfg):
    out_dim = cfg["out_dim"]
    task_sizes = cfg["task_sizes"]
    n_conv = cfg["n_convnets"]
    feature_dim = out_dim * n_conv

    def bdot(a, b):
        return jnp.dot(a.astype(jnp.bfloat16), b.astype(jnp.bfloat16),
                       preferred_element_type=jnp.float32)

    x = jnp.transpose(x_nchw, (0, 2, 3, 1))
    B, H, W, C = x.shape
    Cmid = params["conv1_w"].shape[2]

    w1 = params["conv1_w"].reshape(9 * C, Cmid)
    h1 = jnp.maximum(bdot(im2col_3x3_same(x), w1) + params["conv1_b"], 0.0)
    h1 = h1.astype(jnp.bfloat16).astype(jnp.float32).reshape(B, H, W, Cmid)
    p = h1.reshape(B, H // 2, 2, W // 2, 2, Cmid).mean(axis=(2, 4))

    w2 = params["conv2_w"].reshape(9 * Cmid, out_dim)
    h2 = jnp.maximum(bdot(im2col_3x3_same(p), w2) + params["conv2_b"], 0.0)
    f = h2.reshape(B, (H // 2) * (W // 2), out_dim).mean(axis=1)
    features = jnp.concatenate([f] * n_conv, axis=1)

    fc_w, fc_b, tw, tb = merge_beef_fc(params, task_sizes, out_dim, feature_dim)
    logits = features @ fc_w.T + fc_b
    train_logits = features[:, -out_dim:] @ tw.T + tb
    energy_logits = (features[:, -out_dim:] @ params["forward_w"].T
                     + params["forward_b"])
    return {"logits": logits, "train_logits": train_logits, "eval_logits": logits,
            "energy_logits": energy_logits, "features": features}


# ---------------------------------------------------------------------------
# Parameters
# ---------------------------------------------------------------------------
def make_params(key, c_in=4, c_mid=8, out_dim=16, task_sizes=(5, 5)):
    T = len(task_sizes)
    t_old, t_new = sum(task_sizes[:-1]), task_sizes[-1]
    nb_classes = sum(task_sizes)
    ks = jax.random.split(key, 14)
    s = 0.1
    return {
        # conv weights, tap-major layout (9, Cin, Cout)
        # == torch W[cout, cin, kh, kw] permuted to [kh*3+kw, cin, cout]
        "conv1_w": s * jax.random.normal(ks[0], (9, c_in, c_mid), jnp.float32),
        "conv1_b": s * jax.random.normal(ks[1], (c_mid,), jnp.float32),
        "conv2_w": s * jax.random.normal(ks[2], (9, c_mid, out_dim), jnp.float32),
        "conv2_b": s * jax.random.normal(ks[3], (out_dim,), jnp.float32),
        # SimpleLinear params, PyTorch layout (out_features, in_features)
        "old_fc_w": s * jax.random.normal(ks[4], (t_old, out_dim * (T - 1)), jnp.float32),
        "old_fc_b": s * jax.random.normal(ks[5], (t_old,), jnp.float32),
        "new_fc_w": s * jax.random.normal(ks[6], (t_new, out_dim), jnp.float32),
        "new_fc_b": s * jax.random.normal(ks[7], (t_new,), jnp.float32),
        "backward_w": s * jax.random.normal(ks[8], (T - 1, out_dim), jnp.float32),
        "backward_b": s * jax.random.normal(ks[9], (T - 1,), jnp.float32),
        "forward_w": s * jax.random.normal(ks[10], (nb_classes, out_dim), jnp.float32),
        "forward_b": s * jax.random.normal(ks[11], (nb_classes,), jnp.float32),
        # BiasLayer alpha/beta (zeros at init in torch; nonzero here to exercise the path)
        "bias_alpha": 0.1 * jax.random.normal(ks[12], (T - 1,), jnp.float32),
        "bias_beta": 0.1 * jax.random.normal(ks[13], (T - 1,), jnp.float32),
    }


if __name__ == "__main__":
    key = jax.random.PRNGKey(0)
    k_x, k_p = jax.random.split(key)

    B, C, H, W = 2, 4, 16, 16
    x = jax.random.normal(k_x, (B, C, H, W), jnp.float32)    # PyTorch NCHW input

    task_sizes = (5, 5)                                      # two incremental tasks
    cfg = {"out_dim": 16, "task_sizes": task_sizes, "n_convnets": len(task_sizes)}
    params = make_params(k_p, c_in=C, c_mid=8, out_dim=cfg["out_dim"],
                         task_sizes=task_sizes)

    fwd = jax.jit(lambda xx, pp: beef_forward(xx, pp, cfg))
    out = fwd(x, params)
    jax.block_until_ready(out)

    ref = beef_forward_ref(x, params, cfg)
    for name in ("logits", "train_logits", "eval_logits", "energy_logits", "features"):
        np.testing.assert_allclose(np.asarray(out[name]), np.asarray(ref[name]),
                                   rtol=2e-2, atol=2e-3)

    nb_classes = sum(task_sizes)
    assert out["features"].shape == (B, cfg["out_dim"] * cfg["n_convnets"])
    assert out["logits"].shape == (B, nb_classes)
    assert out["train_logits"].shape == (B, (len(task_sizes) - 1) + task_sizes[-1])
    assert out["energy_logits"].shape == (B, nb_classes)

    print("KERNEL_OK")
</pallas_src>

<mosaic_0001>
module attributes {stable_mosaic.version = 11 : i64} {
  func.func @_fused_backbone_heads_kernel(%arg0: i32, %arg1: memref<1x18x18x4xbf16, #tpu.memory_space<vmem>>, %arg2: memref<9x4x8xbf16, #tpu.memory_space<vmem>>, %arg3: memref<1x8xf32, #tpu.memory_space<vmem>>, %arg4: memref<64x256xbf16, #tpu.memory_space<vmem>>, %arg5: memref<9x8x16xbf16, #tpu.memory_space<vmem>>, %arg6: memref<1x16xf32, #tpu.memory_space<vmem>>, %arg7: memref<16x128xf32, #tpu.memory_space<vmem>>, %arg8: memref<1x128xf32, #tpu.memory_space<vmem>>, %arg9: memref<1x1x128xf32, #tpu.memory_space<vmem>>, %arg10: memref<10x10x8xf32, #tpu.memory_space<vmem>>) attributes {dimension_semantics = [#tpu.dimension_semantics<parallel>], iteration_bounds = array<i64: 2>, scalar_prefetch = 0 : i64, scratch_operands = 1 : i64, tpu.core_type = #tpu.core_type<tc>, window_params = [{transform_indices = @transform_0, window_bounds = array<i64: 1, 18, 18, 4>}, {pipeline_mode = #tpu.pipeline_mode<synchronous>, transform_indices = @transform_1, window_bounds = array<i64: 9, 4, 8>}, {pipeline_mode = #tpu.pipeline_mode<synchronous>, transform_indices = @transform_2, window_bounds = array<i64: 1, 8>}, {pipeline_mode = #tpu.pipeline_mode<synchronous>, transform_indices = @transform_3, window_bounds = array<i64: 64, 256>}, {pipeline_mode = #tpu.pipeline_mode<synchronous>, transform_indices = @transform_4, window_bounds = array<i64: 9, 8, 16>}, {pipeline_mode = #tpu.pipeline_mode<synchronous>, transform_indices = @transform_5, window_bounds = array<i64: 1, 16>}, {pipeline_mode = #tpu.pipeline_mode<synchronous>, transform_indices = @transform_6, window_bounds = array<i64: 16, 128>}, {pipeline_mode = #tpu.pipeline_mode<synchronous>, transform_indices = @transform_7, window_bounds = array<i64: 1, 128>}, {transform_indices = @transform_8, window_bounds = array<i64: 1, 1, 128>}]} {
    %cst = arith.constant 0.000000e+00 : f32
    %0 = vector.broadcast %cst : f32 to vector<256x8xf32>
    %c0 = arith.constant 0 : index
    %c0_0 = arith.constant 0 : index
    %c0_1 = arith.constant 0 : index
    %c0_2 = arith.constant 0 : index
    %1 = vector.load %arg1[%c0, %c0_0, %c0_1, %c0_2] : memref<1x18x18x4xbf16, #tpu.memory_space<vmem>>, vector<1x16x16x4xbf16>
    %2 = vector.shape_cast %1 : vector<1x16x16x4xbf16> to vector<16x16x4xbf16>
    %3 = vector.shape_cast %2 : vector<16x16x4xbf16> to vector<256x4xbf16>
    %c0_3 = arith.constant 0 : index
    %c0_4 = arith.constant 0 : index
    %c0_5 = arith.constant 0 : index
    %4 = vector.load %arg2[%c0_3, %c0_4, %c0_5] : memref<9x4x8xbf16, #tpu.memory_space<vmem>>, vector<1x4x8xbf16>
    %5 = vector.shape_cast %4 : vector<1x4x8xbf16> to vector<4x8xbf16>
    %cst_6 = arith.constant dense<0.000000e+00> : vector<256x8xf32>
    %6 = tpu.matmul %3, %5, %cst_6 {dimension_numbers = #tpu.dot_dimension_numbers<[1], [0], [0], [1], [0, 0, 1, 1], [], []>} : vector<256x4xbf16>, vector<4x8xbf16>, vector<256x8xf32> -> vector<256x8xf32>
    %7 = arith.addf %0, %6 : vector<256x8xf32>
    %c0_7 = arith.constant 0 : index
    %c0_8 = arith.constant 0 : index
    %c1 = arith.constant 1 : index
    %c0_9 = arith.constant 0 : index
    %8 = vector.load %arg1[%c0_7, %c0_8, %c1, %c0_9] : memref<1x18x18x4xbf16, #tpu.memory_space<vmem>>, vector<1x16x16x4xbf16>
    %9 = vector.shape_cast %8 : vector<1x16x16x4xbf16> to vector<16x16x4xbf16>
    %10 = vector.shape_cast %9 : vector<16x16x4xbf16> to vector<256x4xbf16>
    %c1_10 = arith.constant 1 : index
    %c0_11 = arith.constant 0 : index
    %c0_12 = arith.constant 0 : index
    %11 = vector.load %arg2[%c1_10, %c0_11, %c0_12] : memref<9x4x8xbf16, #tpu.memory_space<vmem>>, vector<1x4x8xbf16>
    %12 = vector.shape_cast %11 : vector<1x4x8xbf16> to vector<4x8xbf16>
    %cst_13 = arith.constant dense<0.000000e+00> : vector<256x8xf32>
    %13 = tpu.matmul %10, %12, %cst_13 {dimension_numbers = #tpu.dot_dimension_numbers<[1], [0], [0], [1], [0, 0, 1, 1], [], []>} : vector<256x4xbf16>, vector<4x8xbf16>, vector<256x8xf32> -> vector<256x8xf32>
    %14 = arith.addf %7, %13 : vector<256x8xf32>
    %c0_14 = arith.constant 0 : index
    %c0_15 = arith.constant 0 : index
    %c2 = arith.constant 2 : index
    %c0_16 = arith.constant 0 : index
    %15 = vector.load %arg1[%c0_14, %c0_15, %c2, %c0_16] : memref<1x18x18x4xbf16, #tpu.memory_space<vmem>>, vector<1x16x16x4xbf16>
    %16 = vector.shape_cast %15 : vector<1x16x16x4xbf16> to vector<16x16x4xbf16>
    %17 = vector.shape_cast %16 : vector<16x16x4xbf16> to vector<256x4xbf16>
    %c2_17 = arith.constant 2 : index
    %c0_18 = arith.constant 0 : index
    %c0_19 = arith.constant 0 : index
    %18 = vector.load %arg2[%c2_17, %c0_18, %c0_19] : memref<9x4x8xbf16, #tpu.memory_space<vmem>>, vector<1x4x8xbf16>
    %19 = vector.shape_cast %18 : vector<1x4x8xbf16> to vector<4x8xbf16>
    %cst_20 = arith.constant dense<0.000000e+00> : vector<256x8xf32>
    %20 = tpu.matmul %17, %19, %cst_20 {dimension_numbers = #tpu.dot_dimension_numbers<[1], [0], [0], [1], [0, 0, 1, 1], [], []>} : vector<256x4xbf16>, vector<4x8xbf16>, vector<256x8xf32> -> vector<256x8xf32>
    %21 = arith.addf %14, %20 : vector<256x8xf32>
    %c0_21 = arith.constant 0 : index
    %c1_22 = arith.constant 1 : index
    %c0_23 = arith.constant 0 : index
    %c0_24 = arith.constant 0 : index
    %22 = vector.load %arg1[%c0_21, %c1_22, %c0_23, %c0_24] : memref<1x18x18x4xbf16, #tpu.memory_space<vmem>>, vector<1x16x16x4xbf16>
    %23 = vector.shape_cast %22 : vector<1x16x16x4xbf16> to vector<16x16x4xbf16>
    %24 = vector.shape_cast %23 : vector<16x16x4xbf16> to vector<256x4xbf16>
    %c3 = arith.constant 3 : index
    %c0_25 = arith.constant 0 : index
    %c0_26 = arith.constant 0 : index
    %25 = vector.load %arg2[%c3, %c0_25, %c0_26] : memref<9x4x8xbf16, #tpu.memory_space<vmem>>, vector<1x4x8xbf16>
    %26 = vector.shape_cast %25 : vector<1x4x8xbf16> to vector<4x8xbf16>
    %cst_27 = arith.constant dense<0.000000e+00> : vector<256x8xf32>
    %27 = tpu.matmul %24, %26, %cst_27 {dimension_numbers = #tpu.dot_dimension_numbers<[1], [0], [0], [1], [0, 0, 1, 1], [], []>} : vector<256x4xbf16>, vector<4x8xbf16>, vector<256x8xf32> -> vector<256x8xf32>
    %28 = arith.addf %21, %27 : vector<256x8xf32>
    %c0_28 = arith.constant 0 : index
    %c1_29 = arith.constant 1 : index
    %c1_30 = arith.constant 1 : index
    %c0_31 = arith.constant 0 : index
    %29 = vector.load %arg1[%c0_28, %c1_29, %c1_30, %c0_31] : memref<1x18x18x4xbf16, #tpu.memory_space<vmem>>, vector<1x16x16x4xbf16>
    %30 = vector.shape_cast %29 : vector<1x16x16x4xbf16> to vector<16x16x4xbf16>
    %31 = vector.shape_cast %30 : vector<16x16x4xbf16> to vector<256x4xbf16>
    %c4 = arith.constant 4 : index
    %c0_32 = arith.constant 0 : index
    %c0_33 = arith.constant 0 : index
    %32 = vector.load %arg2[%c4, %c0_32, %c0_33] : memref<9x4x8xbf16, #tpu.memory_space<vmem>>, vector<1x4x8xbf16>
    %33 = vector.shape_cast %32 : vector<1x4x8xbf16> to vector<4x8xbf16>
    %cst_34 = arith.constant dense<0.000000e+00> : vector<256x8xf32>
    %34 = tpu.matmul %31, %33, %cst_34 {dimension_numbers = #tpu.dot_dimension_numbers<[1], [0], [0], [1], [0, 0, 1, 1], [], []>} : vector<256x4xbf16>, vector<4x8xbf16>, vector<256x8xf32> -> vector<256x8xf32>
    %35 = arith.addf %28, %34 : vector<256x8xf32>
    %c0_35 = arith.constant 0 : index
    %c1_36 = arith.constant 1 : index
    %c2_37 = arith.constant 2 : index
    %c0_38 = arith.constant 0 : index
    %36 = vector.load %arg1[%c0_35, %c1_36, %c2_37, %c0_38] : memref<1x18x18x4xbf16, #tpu.memory_space<vmem>>, vector<1x16x16x4xbf16>
    %37 = vector.shape_cast %36 : vector<1x16x16x4xbf16> to vector<16x16x4xbf16>
    %38 = vector.shape_cast %37 : vector<16x16x4xbf16> to vector<256x4xbf16>
    %c5 = arith.constant 5 : index
    %c0_39 = arith.constant 0 : index
    %c0_40 = arith.constant 0 : index
    %39 = vector.load %arg2[%c5, %c0_39, %c0_40] : memref<9x4x8xbf16, #tpu.memory_space<vmem>>, vector<1x4x8xbf16>
    %40 = vector.shape_cast %39 : vector<1x4x8xbf16> to vector<4x8xbf16>
    %cst_41 = arith.constant dense<0.000000e+00> : vector<256x8xf32>
    %41 = tpu.matmul %38, %40, %cst_41 {dimension_numbers = #tpu.dot_dimension_numbers<[1], [0], [0], [1], [0, 0, 1, 1], [], []>} : vector<256x4xbf16>, vector<4x8xbf16>, vector<256x8xf32> -> vector<256x8xf32>
    %42 = arith.addf %35, %41 : vector<256x8xf32>
    %c0_42 = arith.constant 0 : index
    %c2_43 = arith.constant 2 : index
    %c0_44 = arith.constant 0 : index
    %c0_45 = arith.constant 0 : index
    %43 = vector.load %arg1[%c0_42, %c2_43, %c0_44, %c0_45] : memref<1x18x18x4xbf16, #tpu.memory_space<vmem>>, vector<1x16x16x4xbf16>
    %44 = vector.shape_cast %43 : vector<1x16x16x4xbf16> to vector<16x16x4xbf16>
    %45 = vector.shape_cast %44 : vector<16x16x4xbf16> to vector<256x4xbf16>
    %c6 = arith.constant 6 : index
    %c0_46 = arith.constant 0 : index
    %c0_47 = arith.constant 0 : index
    %46 = vector.load %arg2[%c6, %c0_46, %c0_47] : memref<9x4x8xbf16, #tpu.memory_space<vmem>>, vector<1x4x8xbf16>
    %47 = vector.shape_cast %46 : vector<1x4x8xbf16> to vector<4x8xbf16>
    %cst_48 = arith.constant dense<0.000000e+00> : vector<256x8xf32>
    %48 = tpu.matmul %45, %47, %cst_48 {dimension_numbers = #tpu.dot_dimension_numbers<[1], [0], [0], [1], [0, 0, 1, 1], [], []>} : vector<256x4xbf16>, vector<4x8xbf16>, vector<256x8xf32> -> vector<256x8xf32>
    %49 = arith.addf %42, %48 : vector<256x8xf32>
    %c0_49 = arith.constant 0 : index
    %c2_50 = arith.constant 2 : index
    %c1_51 = arith.constant 1 : index
    %c0_52 = arith.constant 0 : index
    %50 = vector.load %arg1[%c0_49, %c2_50, %c1_51, %c0_52] : memref<1x18x18x4xbf16, #tpu.memory_space<vmem>>, vector<1x16x16x4xbf16>
    %51 = vector.shape_cast %50 : vector<1x16x16x4xbf16> to vector<16x16x4xbf16>
    %52 = vector.shape_cast %51 : vector<16x16x4xbf16> to vector<256x4xbf16>
    %c7 = arith.constant 7 : index
    %c0_53 = arith.constant 0 : index
    %c0_54 = arith.constant 0 : index
    %53 = vector.load %arg2[%c7, %c0_53, %c0_54] : memref<9x4x8xbf16, #tpu.memory_space<vmem>>, vector<1x4x8xbf16>
    %54 = vector.shape_cast %53 : vector<1x4x8xbf16> to vector<4x8xbf16>
    %cst_55 = arith.constant dense<0.000000e+00> : vector<256x8xf32>
    %55 = tpu.matmul %52, %54, %cst_55 {dimension_numbers = #tpu.dot_dimension_numbers<[1], [0], [0], [1], [0, 0, 1, 1], [], []>} : vector<256x4xbf16>, vector<4x8xbf16>, vector<256x8xf32> -> vector<256x8xf32>
    %56 = arith.addf %49, %55 : vector<256x8xf32>
    %c0_56 = arith.constant 0 : index
    %c2_57 = arith.constant 2 : index
    %c2_58 = arith.constant 2 : index
    %c0_59 = arith.constant 0 : index
    %57 = vector.load %arg1[%c0_56, %c2_57, %c2_58, %c0_59] : memref<1x18x18x4xbf16, #tpu.memory_space<vmem>>, vector<1x16x16x4xbf16>
    %58 = vector.shape_cast %57 : vector<1x16x16x4xbf16> to vector<16x16x4xbf16>
    %59 = vector.shape_cast %58 : vector<16x16x4xbf16> to vector<256x4xbf16>
    %c8 = arith.constant 8 : index
    %c0_60 = arith.constant 0 : index
    %c0_61 = arith.constant 0 : index
    %60 = vector.load %arg2[%c8, %c0_60, %c0_61] : memref<9x4x8xbf16, #tpu.memory_space<vmem>>, vector<1x4x8xbf16>
    %61 = vector.shape_cast %60 : vector<1x4x8xbf16> to vector<4x8xbf16>
    %cst_62 = arith.constant dense<0.000000e+00> : vector<256x8xf32>
    %62 = tpu.matmul %59, %61, %cst_62 {dimension_numbers = #tpu.dot_dimension_numbers<[1], [0], [0], [1], [0, 0, 1, 1], [], []>} : vector<256x4xbf16>, vector<4x8xbf16>, vector<256x8xf32> -> vector<256x8xf32>
    %63 = arith.addf %56, %62 : vector<256x8xf32>
    %c0_63 = arith.constant 0 : index
    %c0_64 = arith.constant 0 : index
    %64 = vector.load %arg3[%c0_63, %c0_64] : memref<1x8xf32, #tpu.memory_space<vmem>>, vector<1x8xf32>
    %65 = vector.broadcast %64 : vector<1x8xf32> to vector<256x8xf32>
    %66 = arith.addf %63, %65 : vector<256x8xf32>
    %cst_65 = arith.constant 0.000000e+00 : f32
    %67 = vector.broadcast %cst_65 : f32 to vector<256x8xf32>
    %68 = arith.maximumf %66, %67 : vector<256x8xf32>
    %69 = arith.truncf %68 : vector<256x8xf32> to vector<256x8xbf16>
    %c0_66 = arith.constant 0 : index
    %c0_67 = arith.constant 0 : index
    %70 = vector.load %arg4[%c0_66, %c0_67] : memref<64x256xbf16, #tpu.memory_space<vmem>>, vector<64x256xbf16>
    %cst_68 = arith.constant dense<0.000000e+00> : vector<64x8xf32>
    %71 = tpu.matmul %70, %69, %cst_68 {dimension_numbers = #tpu.dot_dimension_numbers<[1], [0], [0], [1], [0, 0, 1, 1], [], []>} : vector<64x256xbf16>, vector<256x8xbf16>, vector<64x8xf32> -> vector<64x8xf32>
    %cst_69 = arith.constant 0.000000e+00 : f32
    %72 = vector.broadcast %cst_69 : f32 to vector<10x10x8xf32>
    %c0_70 = arith.constant 0 : index
    %c0_71 = arith.constant 0 : index
    %c0_72 = arith.constant 0 : index
    %73 = vector.load %arg10[%c0_70, %c0_71, %c0_72] : memref<10x10x8xf32, #tpu.memory_space<vmem>>, vector<10x10x8xf32>
    tpu.vector_store %arg10[%c0_70, %c0_71, %c0_72], %72 {strides = array<i32>} : memref<10x10x8xf32, #tpu.memory_space<vmem>>, vector<10x10x8xf32>,
    %74 = vector.shape_cast %71 : vector<64x8xf32> to vector<8x8x8xf32>
    %c1_73 = arith.constant 1 : index
    %c1_74 = arith.constant 1 : index
    %c0_75 = arith.constant 0 : index
    %75 = vector.load %arg10[%c1_73, %c1_74, %c0_75] : memref<10x10x8xf32, #tpu.memory_space<vmem>>, vector<8x8x8xf32>
    tpu.vector_store %arg10[%c1_73, %c1_74, %c0_75], %74 {strides = array<i32>} : memref<10x10x8xf32, #tpu.memory_space<vmem>>, vector<8x8x8xf32>,
    %cst_76 = arith.constant 0.000000e+00 : f32
    %76 = vector.broadcast %cst_76 : f32 to vector<64x16xf32>
    %c0_77 = arith.constant 0 : index
    %c0_78 = arith.constant 0 : index
    %c0_79 = arith.constant 0 : index
    %77 = vector.load %arg10[%c0_77, %c0_78, %c0_79] : memref<10x10x8xf32, #tpu.memory_space<vmem>>, vector<8x8x8xf32>
    %78 = vector.shape_cast %77 : vector<8x8x8xf32> to vector<64x8xf32>
    %79 = arith.truncf %78 : vector<64x8xf32> to vector<64x8xbf16>
    %c0_80 = arith.constant 0 : index
    %c0_81 = arith.constant 0 : index
    %c0_82 = arith.constant 0 : index
    %80 = vector.load %arg5[%c0_80, %c0_81, %c0_82] : memref<9x8x16xbf16, #tpu.memory_space<vmem>>, vector<1x8x16xbf16>
    %81 = vector.shape_cast %80 : vector<1x8x16xbf16> to vector<8x16xbf16>
    %cst_83 = arith.constant dense<0.000000e+00> : vector<64x16xf32>
    %82 = tpu.matmul %79, %81, %cst_83 {dimension_numbers = #tpu.dot_dimension_numbers<[1], [0], [0], [1], [0, 0, 1, 1], [], []>} : vector<64x8xbf16>, vector<8x16xbf16>, vector<64x16xf32> -> vector<64x16xf32>
    %83 = arith.addf %76, %82 : vector<64x16xf32>
    %c0_84 = arith.constant 0 : index
    %c1_85 = arith.constant 1 : index
    %c0_86 = arith.constant 0 : index
    %84 = vector.load %arg10[%c0_84, %c1_85, %c0_86] : memref<10x10x8xf32, #tpu.memory_space<vmem>>, vector<8x8x8xf32>
    %85 = vector.shape_cast %84 : vector<8x8x8xf32> to vector<64x8xf32>
    %86 = arith.truncf %85 : vector<64x8xf32> to vector<64x8xbf16>
    %c1_87 = arith.constant 1 : index
    %c0_88 = arith.constant 0 : index
    %c0_89 = arith.constant 0 : index
    %87 = vector.load %arg5[%c1_87, %c0_88, %c0_89] : memref<9x8x16xbf16, #tpu.memory_space<vmem>>, vector<1x8x16xbf16>
    %88 = vector.shape_cast %87 : vector<1x8x16xbf16> to vector<8x16xbf16>
    %cst_90 = arith.constant dense<0.000000e+00> : vector<64x16xf32>
    %89 = tpu.matmul %86, %88, %cst_90 {dimension_numbers = #tpu.dot_dimension_numbers<[1], [0], [0], [1], [0, 0, 1, 1], [], []>} : vector<64x8xbf16>, vector<8x16xbf16>, vector<64x16xf32> -> vector<64x16xf32>
    %90 = arith.addf %83, %89 : vector<64x16xf32>
    %c0_91 = arith.constant 0 : index
    %c2_92 = arith.constant 2 : index
    %c0_93 = arith.constant 0 : index
    %91 = vector.load %arg10[%c0_91, %c2_92, %c0_93] : memref<10x10x8xf32, #tpu.memory_space<vmem>>, vector<8x8x8xf32>
    %92 = vector.shape_cast %91 : vector<8x8x8xf32> to vector<64x8xf32>
    %93 = arith.truncf %92 : vector<64x8xf32> to vector<64x8xbf16>
    %c2_94 = arith.constant 2 : index
    %c0_95 = arith.constant 0 : index
    %c0_96 = arith.constant 0 : index
    %94 = vector.load %arg5[%c2_94, %c0_95, %c0_96] : memref<9x8x16xbf16, #tpu.memory_space<vmem>>, vector<1x8x16xbf16>
    %95 = vector.shape_cast %94 : vector<1x8x16xbf16> to vector<8x16xbf16>
    %cst_97 = arith.constant dense<0.000000e+00> : vector<64x16xf32>
    %96 = tpu.matmul %93, %95, %cst_97 {dimension_numbers = #tpu.dot_dimension_numbers<[1], [0], [0], [1], [0, 0, 1, 1], [], []>} : vector<64x8xbf16>, vector<8x16xbf16>, vector<64x16xf32> -> vector<64x16xf32>
    %97 = arith.addf %90, %96 : vector<64x16xf32>
    %c1_98 = arith.constant 1 : index
    %c0_99 = arith.constant 0 : index
    %c0_100 = arith.constant 0 : index
    %98 = vector.load %arg10[%c1_98, %c0_99, %c0_100] : memref<10x10x8xf32, #tpu.memory_space<vmem>>, vector<8x8x8xf32>
    %99 = vector.shape_cast %98 : vector<8x8x8xf32> to vector<64x8xf32>
    %100 = arith.truncf %99 : vector<64x8xf32> to vector<64x8xbf16>
    %c3_101 = arith.constant 3 : index
    %c0_102 = arith.constant 0 : index
    %c0_103 = arith.constant 0 : index
    %101 = vector.load %arg5[%c3_101, %c0_102, %c0_103] : memref<9x8x16xbf16, #tpu.memory_space<vmem>>, vector<1x8x16xbf16>
    %102 = vector.shape_cast %101 : vector<1x8x16xbf16> to vector<8x16xbf16>
    %cst_104 = arith.constant dense<0.000000e+00> : vector<64x16xf32>
    %103 = tpu.matmul %100, %102, %cst_104 {dimension_numbers = #tpu.dot_dimension_numbers<[1], [0], [0], [1], [0, 0, 1, 1], [], []>} : vector<64x8xbf16>, vector<8x16xbf16>, vector<64x16xf32> -> vector<64x16xf32>
    %104 = arith.addf %97, %103 : vector<64x16xf32>
    %c1_105 = arith.constant 1 : index
    %c1_106 = arith.constant 1 : index
    %c0_107 = arith.constant 0 : index
    %105 = vector.load %arg10[%c1_105, %c1_106, %c0_107] : memref<10x10x8xf32, #tpu.memory_space<vmem>>, vector<8x8x8xf32>
    %106 = vector.shape_cast %105 : vector<8x8x8xf32> to vector<64x8xf32>
    %107 = arith.truncf %106 : vector<64x8xf32> to vector<64x8xbf16>
    %c4_108 = arith.constant 4 : index
    %c0_109 = arith.constant 0 : index
    %c0_110 = arith.constant 0 : index
    %108 = vector.load %arg5[%c4_108, %c0_109, %c0_110] : memref<9x8x16xbf16, #tpu.memory_space<vmem>>, vector<1x8x16xbf16>
    %109 = vector.shape_cast %108 : vector<1x8x16xbf16> to vector<8x16xbf16>
    %cst_111 = arith.constant dense<0.000000e+00> : vector<64x16xf32>
    %110 = tpu.matmul %107, %109, %cst_111 {dimension_numbers = #tpu.dot_dimension_numbers<[1], [0], [0], [1], [0, 0, 1, 1], [], []>} : vector<64x8xbf16>, vector<8x16xbf16>, vector<64x16xf32> -> vector<64x16xf32>
    %111 = arith.addf %104, %110 : vector<64x16xf32>
    %c1_112 = arith.constant 1 : index
    %c2_113 = arith.constant 2 : index
    %c0_114 = arith.constant 0 : index
    %112 = vector.load %arg10[%c1_112, %c2_113, %c0_114] : memref<10x10x8xf32, #tpu.memory_space<vmem>>, vector<8x8x8xf32>
    %113 = vector.shape_cast %112 : vector<8x8x8xf32> to vector<64x8xf32>
    %114 = arith.truncf %113 : vector<64x8xf32> to vector<64x8xbf16>
    %c5_115 = arith.constant 5 : index
    %c0_116 = arith.constant 0 : index
    %c0_117 = arith.constant 0 : index
    %115 = vector.load %arg5[%c5_115, %c0_116, %c0_117] : memref<9x8x16xbf16, #tpu.memory_space<vmem>>, vector<1x8x16xbf16>
    %116 = vector.shape_cast %115 : vector<1x8x16xbf16> to vector<8x16xbf16>
    %cst_118 = arith.constant dense<0.000000e+00> : vector<64x16xf32>
    %117 = tpu.matmul %114, %116, %cst_118 {dimension_numbers = #tpu.dot_dimension_numbers<[1], [0], [0], [1], [0, 0, 1, 1], [], []>} : vector<64x8xbf16>, vector<8x16xbf16>, vector<64x16xf32> -> vector<64x16xf32>
    %118 = arith.addf %111, %117 : vector<64x16xf32>
    %c2_119 = arith.constant 2 : index
    %c0_120 = arith.constant 0 : index
    %c0_121 = arith.constant 0 : index
    %119 = vector.load %arg10[%c2_119, %c0_120, %c0_121] : memref<10x10x8xf32, #tpu.memory_space<vmem>>, vector<8x8x8xf32>
    %120 = vector.shape_cast %119 : vector<8x8x8xf32> to vector<64x8xf32>
    %121 = arith.truncf %120 : vector<64x8xf32> to vector<64x8xbf16>
    %c6_122 = arith.constant 6 : index
    %c0_123 = arith.constant 0 : index
    %c0_124 = arith.constant 0 : index
    %122 = vector.load %arg5[%c6_122, %c0_123, %c0_124] : memref<9x8x16xbf16, #tpu.memory_space<vmem>>, vector<1x8x16xbf16>
    %123 = vector.shape_cast %122 : vector<1x8x16xbf16> to vector<8x16xbf16>
    %cst_125 = arith.constant dense<0.000000e+00> : vector<64x16xf32>
    %124 = tpu.matmul %121, %123, %cst_125 {dimension_numbers = #tpu.dot_dimension_numbers<[1], [0], [0], [1], [0, 0, 1, 1], [], []>} : vector<64x8xbf16>, vector<8x16xbf16>, vector<64x16xf32> -> vector<64x16xf32>
    %125 = arith.addf %118, %124 : vector<64x16xf32>
    %c2_126 = arith.constant 2 : index
    %c1_127 = arith.constant 1 : index
    %c0_128 = arith.constant 0 : index
    %126 = vector.load %arg10[%c2_126, %c1_127, %c0_128] : memref<10x10x8xf32, #tpu.memory_space<vmem>>, vector<8x8x8xf32>
    %127 = vector.shape_cast %126 : vector<8x8x8xf32> to vector<64x8xf32>
    %128 = arith.truncf %127 : vector<64x8xf32> to vector<64x8xbf16>
    %c7_129 = arith.constant 7 : index
    %c0_130 = arith.constant 0 : index
    %c0_131 = arith.constant 0 : index
    %129 = vector.load %arg5[%c7_129, %c0_130, %c0_131] : memref<9x8x16xbf16, #tpu.memory_space<vmem>>, vector<1x8x16xbf16>
    %130 = vector.shape_cast %129 : vector<1x8x16xbf16> to vector<8x16xbf16>
    %cst_132 = arith.constant dense<0.000000e+00> : vector<64x16xf32>
    %131 = tpu.matmul %128, %130, %cst_132 {dimension_numbers = #tpu.dot_dimension_numbers<[1], [0], [0], [1], [0, 0, 1, 1], [], []>} : vector<64x8xbf16>, vector<8x16xbf16>, vector<64x16xf32> -> vector<64x16xf32>
    %132 = arith.addf %125, %131 : vector<64x16xf32>
    %c2_133 = arith.constant 2 : index
    %c2_134 = arith.constant 2 : index
    %c0_135 = arith.constant 0 : index
    %133 = vector.load %arg10[%c2_133, %c2_134, %c0_135] : memref<10x10x8xf32, #tpu.memory_space<vmem>>, vector<8x8x8xf32>
    %134 = vector.shape_cast %133 : vector<8x8x8xf32> to vector<64x8xf32>
    %135 = arith.truncf %134 : vector<64x8xf32> to vector<64x8xbf16>
    %c8_136 = arith.constant 8 : index
    %c0_137 = arith.constant 0 : index
    %c0_138 = arith.constant 0 : index
    %136 = vector.load %arg5[%c8_136, %c0_137, %c0_138] : memref<9x8x16xbf16, #tpu.memory_space<vmem>>, vector<1x8x16xbf16>
    %137 = vector.shape_cast %136 : vector<1x8x16xbf16> to vector<8x16xbf16>
    %cst_139 = arith.constant dense<0.000000e+00> : vector<64x16xf32>
    %138 = tpu.matmul %135, %137, %cst_139 {dimension_numbers = #tpu.dot_dimension_numbers<[1], [0], [0], [1], [0, 0, 1, 1], [], []>} : vector<64x8xbf16>, vector<8x16xbf16>, vector<64x16xf32> -> vector<64x16xf32>
    %139 = arith.addf %132, %138 : vector<64x16xf32>
    %c0_140 = arith.constant 0 : index
    %c0_141 = arith.constant 0 : index
    %140 = vector.load %arg6[%c0_140, %c0_141] : memref<1x16xf32, #tpu.memory_space<vmem>>, vector<1x16xf32>
    %141 = vector.broadcast %140 : vector<1x16xf32> to vector<64x16xf32>
    %142 = arith.addf %139, %141 : vector<64x16xf32>
    %cst_142 = arith.constant 0.000000e+00 : f32
    %143 = vector.broadcast %cst_142 : f32 to vector<64x16xf32>
    %144 = arith.maximumf %142, %143 : vector<64x16xf32>
    %cst_143 = arith.constant 1.000000e+00 : f32
    %145 = vector.broadcast %cst_143 : f32 to vector<1x64xf32>
    %cst_144 = arith.constant dense<0.000000e+00> : vector<1x16xf32>
    %146 = tpu.matmul %145, %144, %cst_144 {dimension_numbers = #tpu.dot_dimension_numbers<[1], [0], [0], [1], [0, 0, 1, 1], [], []>} : vector<1x64xf32>, vector<64x16xf32>, vector<1x16xf32> -> vector<1x16xf32>
    %cst_145 = arith.constant 1.562500e-02 : f32
    %147 = vector.broadcast %cst_145 : f32 to vector<1x16xf32>
    %148 = arith.mulf %146, %147 : vector<1x16xf32>
    %c0_146 = arith.constant 0 : index
    %c0_147 = arith.constant 0 : index
    %149 = vector.load %arg7[%c0_146, %c0_147] : memref<16x128xf32, #tpu.memory_space<vmem>>, vector<16x128xf32>
    %cst_148 = arith.constant dense<0.000000e+00> : vector<1x128xf32>
    %150 = tpu.matmul %148, %149, %cst_148 {dimension_numbers = #tpu.dot_dimension_numbers<[1], [0], [0], [1], [0, 0, 1, 1], [], []>} : vector<1x16xf32>, vector<16x128xf32>, vector<1x128xf32> -> vector<1x128xf32>
    %c0_149 = arith.constant 0 : index
    %c0_150 = arith.constant 0 : index
    %151 = vector.load %arg8[%c0_149, %c0_150] : memref<1x128xf32, #tpu.memory_space<vmem>>, vector<1x128xf32>
    %152 = arith.addf %150, %151 : vector<1x128xf32>
    %c0_151 = arith.constant 0 : index
    %c0_152 = arith.constant 0 : index
    %c0_153 = arith.constant 0 : index
    %153 = vector.load %arg9[%c0_151, %c0_152, %c0_153] : memref<1x1x128xf32, #tpu.memory_space<vmem>>, vector<1x1x128xf32>
    %154 = vector.shape_cast %153 : vector<1x1x128xf32> to vector<1x128xf32>
    %155 = vector.shape_cast %152 : vector<1x128xf32> to vector<1x1x128xf32>
    tpu.vector_store %arg9[%c0_151, %c0_152, %c0_153], %155 {strides = array<i32>} : memref<1x1x128xf32, #tpu.memory_space<vmem>>, vector<1x1x128xf32>,
    return
  }
  func.func @transform_0(%arg0: i32) -> (i32, i32, i32, i32) {
    %c0_i32 = arith.constant 0 : i32
    %c0_i32_0 = arith.constant 0 : i32
    %c0_i32_1 = arith.constant 0 : i32
    %c0_i32_2 = arith.constant 0 : i32
    return %arg0, %c0_i32, %c0_i32_0, %c0_i32_1 : i32, i32, i32, i32
  }
  func.func @transform_1(%arg0: i32) -> (i32, i32, i32) {
    %c0_i32 = arith.constant 0 : i32
    %c0_i32_0 = arith.constant 0 : i32
    %c0_i32_1 = arith.constant 0 : i32
    %c0_i32_2 = arith.constant 0 : i32
    return %c0_i32, %c0_i32_0, %c0_i32_1 : i32, i32, i32
  }
  func.func @transform_2(%arg0: i32) -> (i32, i32) {
    %c0_i32 = arith.constant 0 : i32
    %c0_i32_0 = arith.constant 0 : i32
    %c0_i32_1 = arith.constant 0 : i32
    return %c0_i32, %c0_i32_0 : i32, i32
  }
  func.func @transform_3(%arg0: i32) -> (i32, i32) {
    %c0_i32 = arith.constant 0 : i32
    %c0_i32_0 = arith.constant 0 : i32
    %c0_i32_1 = arith.constant 0 : i32
    return %c0_i32, %c0_i32_0 : i32, i32
  }
  func.func @transform_4(%arg0: i32) -> (i32, i32, i32) {
    %c0_i32 = arith.constant 0 : i32
    %c0_i32_0 = arith.constant 0 : i32
    %c0_i32_1 = arith.constant 0 : i32
    %c0_i32_2 = arith.constant 0 : i32
    return %c0_i32, %c0_i32_0, %c0_i32_1 : i32, i32, i32
  }
  func.func @transform_5(%arg0: i32) -> (i32, i32) {
    %c0_i32 = arith.constant 0 : i32
    %c0_i32_0 = arith.constant 0 : i32
    %c0_i32_1 = arith.constant 0 : i32
    return %c0_i32, %c0_i32_0 : i32, i32
  }
  func.func @transform_6(%arg0: i32) -> (i32, i32) {
    %c0_i32 = arith.constant 0 : i32
    %c0_i32_0 = arith.constant 0 : i32
    %c0_i32_1 = arith.constant 0 : i32
    return %c0_i32, %c0_i32_0 : i32, i32
  }
  func.func @transform_7(%arg0: i32) -> (i32, i32) {
    %c0_i32 = arith.constant 0 : i32
    %c0_i32_0 = arith.constant 0 : i32
    %c0_i32_1 = arith.constant 0 : i32
    return %c0_i32, %c0_i32_0 : i32, i32
  }
  func.func @transform_8(%arg0: i32) -> (i32, i32, i32) {
    %c0_i32 = arith.constant 0 : i32
    %c0_i32_0 = arith.constant 0 : i32
    %c0_i32_1 = arith.constant 0 : i32
    return %arg0, %c0_i32, %c0_i32_0 : i32, i32, i32
  }
}

</mosaic_0001>

<llo_original>
// kernel: _lambda_.1
$region0: #{_lambda_.1}
  #allocation0 [shape = 'u32[]', space=smem, size = 0x4, offset = 0x4, fixed_abs, tag = 'smem constant byte address 0x4 - core index']
  #allocation1 [shape = 'u32[144,128]{1,0:T(1,128)}', space=vmem, size = 0x12000, scoped, tag = 'internal scratch']
  #allocation2 [shape = 'f32[10,10,8]{2,1,0:T(8,128)}', space=vmem, size = 0x14000, scoped, tag = 'scratch operand']
  %s0 = inlined_call_operand.vmem [shape: bf16[2,18,18,4], index: 0, kind: input, shape index: {}]
  %s1 = inlined_call_operand.vmem [shape: bf16[9,4,8], index: 1, kind: input, shape index: {}]
  %s2 = inlined_call_operand.vmem [shape: f32[1,8], index: 2, kind: input, shape index: {}]
  %s3 = inlined_call_operand.vmem [shape: bf16[64,256], index: 3, kind: input, shape index: {}]
  %s4 = inlined_call_operand.vmem [shape: bf16[9,8,16], index: 4, kind: input, shape index: {}]
  %s5 = inlined_call_operand.vmem [shape: f32[1,16], index: 5, kind: input, shape index: {}]
  %s6 = inlined_call_operand.vmem [shape: f32[16,128], index: 6, kind: input, shape index: {}]
  %s7 = inlined_call_operand.vmem [shape: f32[1,128], index: 7, kind: input, shape index: {}]
  %s8 = inlined_call_operand.vmem [shape: f32[2,1,128], index: 8, kind: output, shape index: {}]
  %s9 = sld [smem:[#allocation0]]
  $region65: #{_lambda_.1} parent=0
    _
  %s11 = ssub.s32 1, %s9
  %s12 = scalar_select 0, %s11, %s9
  loop: start=0, step=1, limit=4
  $region2: #{_lambda_.1} parent=0 // loop_pre_header
    _
  $region3: #{_lambda_.1} parent=0 // loop_header
    %s14 = sphi 0, %s18
    %p15 = scmp.ge.s32.totalorder %s14, 4
    %s24 = sphi 0, %s26
    %s27 = sphi 0, %s24
    %s28 = sphi 0, %s27
    %s44 = sphi 0, %s28
    %s48 = sphi 0, %s48
    %s50 = sphi 0, %s48
    %s51 = sphi 0, %s50
    %s65 = sphi 0, %s51
    %s69 = sphi 0, %s69
    %s71 = sphi 0, %s69
    %s72 = sphi 0, %s71
    %s86 = sphi 0, %s72
    %s90 = sphi 0, %s90
    %s92 = sphi 0, %s90
    %s93 = sphi 0, %s92
    %s107 = sphi 0, %s93
    %s111 = sphi 0, %s111
    %s113 = sphi 0, %s111
    %s114 = sphi 0, %s113
    %s128 = sphi 0, %s114
    %s132 = sphi 0, %s132
    %s134 = sphi 0, %s132
    %s135 = sphi 0, %s134
    %s149 = sphi 0, %s135
    %s153 = sphi 0, %s153
    %s155 = sphi 0, %s153
    %s156 = sphi 0, %s155
    %s170 = sphi 0, %s156
    %s174 = sphi 0, %s174
    %s176 = sphi 0, %s174
    %s177 = sphi 0, %s176
    %s191 = sphi 0, %s177
    %s197 = sphi 0, %s199
    %s200 = sphi 0, %s197
    %s201 = sphi 0, %s200
    %s217 = sphi 0, %s201
  $region4: #{_lambda_.1} parent=0 // loop_header_branch
    %17 = sbr.rel (%p15) target = $region8
  $region5: #{_lambda_.1} parent=0 // loop_body
    %s19 = ssub.s32 %s14, 1
    %s20 = ssub.s32 %s14, 2
    %s21 = sadd.s32 %s14, 1
    %s22 = ssub.s32 %s14, %s21
    %p23 = scmp.eq.s32.totalorder %s22, 0
    %s25 = sadd.s32 %s24, 1
    %s26 = scalar_select %p23, %s24, %s25
    %p29 = pneg %p23
    %p30 = scmp.eq.s32.totalorder %s14, 1
    %p31 = por %p29, %p30
    %p32 = scmp.ne.s32.totalorder %s24, %s27
    %p33 = scmp.eq.s32.totalorder %s14, 0
    %p34 = por %p32, %p33
    %p35 = scmp.ne.s32.totalorder %s24, %s27
    %p36 = scmp.eq.s32.totalorder %s19, 1
    %p37 = por %p35, %p36
    %p38 = scmp.ne.s32.totalorder %s27, %s28
    %p39 = scmp.eq.s32.totalorder %s19, 0
    %p40 = por %p38, %p39
    %p41 = scmp.ne.s32.totalorder %s27, %s28
    %p42 = scmp.eq.s32.totalorder %s20, 1
    %p43 = por %p41, %p42
    %p45 = scmp.ne.s32.totalorder %s28, %s44
    %p46 = scmp.eq.s32.totalorder %s20, 0
    %p47 = por %p45, %p46
    %s49 = sadd.s32 %s48, 1
    %p52 = scmp.eq.s32.totalorder %s14, 1
    %p53 = scmp.ne.s32.totalorder %s48, %s50
    %p54 = scmp.eq.s32.totalorder %s14, 0
    %p55 = por %p53, %p54
    %p56 = scmp.ne.s32.totalorder %s48, %s50
    %p57 = scmp.eq.s32.totalorder %s19, 1
    %p58 = por %p56, %p57
    %p59 = scmp.ne.s32.totalorder %s50, %s51
    %p60 = scmp.eq.s32.totalorder %s19, 0
    %p61 = por %p59, %p60
    %p62 = scmp.ne.s32.totalorder %s50, %s51
    %p63 = scmp.eq.s32.totalorder %s20, 1
    %p64 = por %p62, %p63
    %p66 = scmp.ne.s32.totalorder %s51, %s65
    %p67 = scmp.eq.s32.totalorder %s20, 0
    %p68 = por %p66, %p67
    %s70 = sadd.s32 %s69, 1
    %p73 = scmp.eq.s32.totalorder %s14, 1
    %p74 = scmp.ne.s32.totalorder %s69, %s71
    %p75 = scmp.eq.s32.totalorder %s14, 0
    %p76 = por %p74, %p75
    %p77 = scmp.ne.s32.totalorder %s69, %s71
    %p78 = scmp.eq.s32.totalorder %s19, 1
    %p79 = por %p77, %p78
    %p80 = scmp.ne.s32.totalorder %s71, %s72
    %p81 = scmp.eq.s32.totalorder %s19, 0
    %p82 = por %p80, %p81
    %p83 = scmp.ne.s32.totalorder %s71, %s72
    %p84 = scmp.eq.s32.totalorder %s20, 1
    %p85 = por %p83, %p84
    %p87 = scmp.ne.s32.totalorder %s72, %s86
    %p88 = scmp.eq.s32.totalorder %s20, 0
    %p89 = por %p87, %p88
    %s91 = sadd.s32 %s90, 1
    %p94 = scmp.eq.s32.totalorder %s14, 1
    %p95 = scmp.ne.s32.totalorder %s90, %s92
    %p96 = scmp.eq.s32.totalorder %s14, 0
    %p97 = por %p95, %p96
    %p98 = scmp.ne.s32.totalorder %s90, %s92
    %p99 = scmp.eq.s32.totalorder %s19, 1
    %p100 = por %p98, %p99
    %p101 = scmp.ne.s32.totalorder %s92, %s93
    %p102 = scmp.eq.s32.totalorder %s19, 0
    %p103 = por %p101, %p102
    %p104 = scmp.ne.s32.totalorder %s92, %s93
    %p105 = scmp.eq.s32.totalorder %s20, 1
    %p106 = por %p104, %p105
    %p108 = scmp.ne.s32.totalorder %s93, %s107
    %p109 = scmp.eq.s32.totalorder %s20, 0
    %p110 = por %p108, %p109
    %s112 = sadd.s32 %s111, 1
    %p115 = scmp.eq.s32.totalorder %s14, 1
    %p116 = scmp.ne.s32.totalorder %s111, %s113
    %p117 = scmp.eq.s32.totalorder %s14, 0
    %p118 = por %p116, %p117
    %p119 = scmp.ne.s32.totalorder %s111, %s113
    %p120 = scmp.eq.s32.totalorder %s19, 1
    %p121 = por %p119, %p120
    %p122 = scmp.ne.s32.totalorder %s113, %s114
    %p123 = scmp.eq.s32.totalorder %s19, 0
    %p124 = por %p122, %p123
    %p125 = scmp.ne.s32.totalorder %s113, %s114
    %p126 = scmp.eq.s32.totalorder %s20, 1
    %p127 = por %p125, %p126
    %p129 = scmp.ne.s32.totalorder %s114, %s128
    %p130 = scmp.eq.s32.totalorder %s20, 0
    %p131 = por %p129, %p130
    %s133 = sadd.s32 %s132, 1
    %p136 = scmp.eq.s32.totalorder %s14, 1
    %p137 = scmp.ne.s32.totalorder %s132, %s134
    %p138 = scmp.eq.s32.totalorder %s14, 0
    %p139 = por %p137, %p138
    %p140 = scmp.ne.s32.totalorder %s132, %s134
    %p141 = scmp.eq.s32.totalorder %s19, 1
    %p142 = por %p140, %p141
    %p143 = scmp.ne.s32.totalorder %s134, %s135
    %p144 = scmp.eq.s32.totalorder %s19, 0
    %p145 = por %p143, %p144
    %p146 = scmp.ne.s32.totalorder %s134, %s135
    %p147 = scmp.eq.s32.totalorder %s20, 1
    %p148 = por %p146, %p147
    %p150 = scmp.ne.s32.totalorder %s135, %s149
    %p151 = scmp.eq.s32.totalorder %s20, 0
    %p152 = por %p150, %p151
    %s154 = sadd.s32 %s153, 1
    %p157 = scmp.eq.s32.totalorder %s14, 1
    %p158 = scmp.ne.s32.totalorder %s153, %s155
    %p159 = scmp.eq.s32.totalorder %s14, 0
    %p160 = por %p158, %p159
    %p161 = scmp.ne.s32.totalorder %s153, %s155
    %p162 = scmp.eq.s32.totalorder %s19, 1
    %p163 = por %p161, %p162
    %p164 = scmp.ne.s32.totalorder %s155, %s156
    %p165 = scmp.eq.s32.totalorder %s19, 0
    %p166 = por %p164, %p165
    %p167 = scmp.ne.s32.totalorder %s155, %s156
    %p168 = scmp.eq.s32.totalorder %s20, 1
    %p169 = por %p167, %p168
    %p171 = scmp.ne.s32.totalorder %s156, %s170
    %p172 = scmp.eq.s32.totalorder %s20, 0
    %p173 = por %p171, %p172
    %s175 = sadd.s32 %s174, 1
    %p178 = scmp.eq.s32.totalorder %s14, 1
    %p179 = scmp.ne.s32.totalorder %s174, %s176
    %p180 = scmp.eq.s32.totalorder %s14, 0
    %p181 = por %p179, %p180
    %p182 = scmp.ne.s32.totalorder %s174, %s176
    %p183 = scmp.eq.s32.totalorder %s19, 1
    %p184 = por %p182, %p183
    %p185 = scmp.ne.s32.totalorder %s176, %s177
    %p186 = scmp.eq.s32.totalorder %s19, 0
    %p187 = por %p185, %p186
    %p188 = scmp.ne.s32.totalorder %s176, %s177
    %p189 = scmp.eq.s32.totalorder %s20, 1
    %p190 = por %p188, %p189
    %p192 = scmp.ne.s32.totalorder %s177, %s191
    %p193 = scmp.eq.s32.totalorder %s20, 0
    %p194 = por %p192, %p193
    %s195 = ssub.s32 %s14, %s21
    %p196 = scmp.eq.s32.totalorder %s195, 0
    %s198 = sadd.s32 %s197, 1
    %s199 = scalar_select %p196, %s197, %s198
    %p202 = pneg %p196
    %p203 = scmp.eq.s32.totalorder %s14, 1
    %p204 = por %p202, %p203
    %p205 = scmp.ne.s32.totalorder %s197, %s200
    %p206 = scmp.eq.s32.totalorder %s14, 0
    %p207 = por %p205, %p206
    %p208 = scmp.ne.s32.totalorder %s197, %s200
    %p209 = scmp.eq.s32.totalorder %s19, 1
    %p210 = por %p208, %p209
    %p211 = scmp.ne.s32.totalorder %s200, %s201
    %p212 = scmp.eq.s32.totalorder %s19, 0
    %p213 = por %p211, %p212
    %p214 = scmp.ne.s32.totalorder %s200, %s201
    %p215 = scmp.eq.s32.totalorder %s20, 1
    %p216 = por %p214, %p215
    %p218 = scmp.ne.s32.totalorder %s201, %s217
    %p219 = scmp.eq.s32.totalorder %s20, 0
    %p220 = por %p218, %p219
    %p221 = scmp.le.s32.totalorder 1, %s14
    %p222 = scmp.lt.s32.totalorder %s14, 3
    %p223 = pnand %p221, %p222
    %p224 = pneg %p223
    // Predicated region
    $region9: #{_lambda_.1} parent=5 // pred_check
      _
    $region10: #{_lambda_.1} parent=5 // pred_check_branch
      %226 = sbr.rel (%p223) target = $region12
    $region11: #{_lambda_.1} parent=5 // pred_region
      %s227 = ssub.s32 %s14, 1
      // Predicated region
      $region13: #{_lambda_.1} parent=11 // pred_check
        %p228 = pneg %p61
      $region14: #{_lambda_.1} parent=11 // pred_check_branch
        %230 = sbr.rel (%p228) target = $region16
      $region15: #{_lambda_.1} parent=11 // pred_region
        _
      $region16: #{_lambda_.1} parent=11 // pred_fallthru
        _
      // Predicated region
      $region17: #{_lambda_.1} parent=11 // pred_check
        %p231 = pneg %p82
      $region18: #{_lambda_.1} parent=11 // pred_check_branch
        %233 = sbr.rel (%p231) target = $region20
      $region19: #{_lambda_.1} parent=11 // pred_region
        _
      $region20: #{_lambda_.1} parent=11 // pred_fallthru
        _
      // Predicated region
      $region21: #{_lambda_.1} parent=11 // pred_check
        %p234 = pneg %p103
      $region22: #{_lambda_.1} parent=11 // pred_check_branch
        %236 = sbr.rel (%p234) target = $region24
      $region23: #{_lambda_.1} parent=11 // pred_region
        _
      $region24: #{_lambda_.1} parent=11 // pred_fallthru
        _
      // Predicated region
      $region25: #{_lambda_.1} parent=11 // pred_check
        %p237 = pneg %p124
      $region26: #{_lambda_.1} parent=11 // pred_check_branch
        %239 = sbr.rel (%p237) target = $region28
      $region27: #{_lambda_.1} parent=11 // pred_region
        _
      $region28: #{_lambda_.1} parent=11 // pred_fallthru
        _
      // Predicated region
      $region29: #{_lambda_.1} parent=11 // pred_check
        %p240 = pneg %p145
      $region30: #{_lambda_.1} parent=11 // pred_check_branch
        %242 = sbr.rel (%p240) target = $region32
      $region31: #{_lambda_.1} parent=11 // pred_region
        _
      $region32: #{_lambda_.1} parent=11 // pred_fallthru
        _
      // Predicated region
      $region33: #{_lambda_.1} parent=11 // pred_check
        %p243 = pneg %p166
      $region34: #{_lambda_.1} parent=11 // pred_check_branch
        %245 = sbr.rel (%p243) target = $region36
      $region35: #{_lambda_.1} parent=11 // pred_region
        _
      $region36: #{_lambda_.1} parent=11 // pred_fallthru
        _
      // Predicated region
      $region37: #{_lambda_.1} parent=11 // pred_check
        %p246 = pneg %p187
      $region38: #{_lambda_.1} parent=11 // pred_check_branch
        %248 = sbr.rel (%p246) target = $region40
      $region39: #{_lambda_.1} parent=11 // pred_region
        _
      $region40: #{_lambda_.1} parent=11 // pred_fallthru
        _
    $region12: #{_lambda_.1} parent=5 // pred_fallthru
      _
    %p249 = scmp.lt.s32.totalorder %s14, 2
    // Predicated region
    $region41: #{_lambda_.1} parent=5 // pred_check
      %p250 = pneg %p249
    $region42: #{_lambda_.1} parent=5 // pred_check_branch
      %252 = sbr.rel (%p250) target = $region44
    $region43: #{_lambda_.1} parent=5 // pred_region
      // Predicated region
      $region45: #{_lambda_.1} parent=43 // pred_check
        %p253 = pneg %p34
      $region46: #{_lambda_.1} parent=43 // pred_check_branch
        %255 = sbr.rel (%p253) target = $region48
      $region47: #{_lambda_.1} parent=43 // pred_region
        %p256 = scmp.lt.s32.totalorder %s14, 1
        %s257 = scalar_select %p256, %s14, 1
        %s258 = smul.addr %s257, 54
        %s259 = smul.addr %s258, 4
        %s260 = scalar_lea.vmem %s0, %s259
      $region48: #{_lambda_.1} parent=43 // pred_fallthru
        _
    $region44: #{_lambda_.1} parent=5 // pred_fallthru
      _
    %p261 = scmp.le.s32.totalorder 1, %s14
    %p262 = scmp.lt.s32.totalorder %s14, 3
    %p263 = pnand %p261, %p262
    %p264 = pneg %p263
    // Predicated region
    $region49: #{_lambda_.1} parent=5 // pred_check
      _
    $region50: #{_lambda_.1} parent=5 // pred_check_branch
      %266 = sbr.rel (%p263) target = $region52
    $region51: #{_lambda_.1} parent=5 // pred_region
      %s267 = ssub.s32 %s14, 1
      %p268 = scmp.lt.s32.totalorder %s19, 1
      %s269 = scalar_select %p268, %s19, 1
      %s270 = smul.addr %s269, 54
      %s271 = smul.addr %s270, 4
      %s272 = scalar_lea.vmem %s0, %s271
      %p273 = pneg %p40
      %p274 = pneg %p37
      %p275 = pneg %p61
      %p276 = pneg %p58
      %p277 = pneg %p82
      %p278 = pneg %p79
      %p279 = pneg %p103
      %p280 = pneg %p100
      %p281 = pneg %p124
      %p282 = pneg %p121
      %p283 = pneg %p145
      %p284 = pneg %p142
      %p285 = pneg %p166
      %p286 = pneg %p163
      %p287 = pneg %p187
      %p288 = pneg %p184
      %p289 = pneg %p213
      %p290 = pneg %p210
      %p291 = scmp.lt.s32.totalorder %s19, 1
      %s292 = scalar_select %p291, %s19, 1
      %s293 = scalar_lea.vmem %s8, %s292
      %p294 = scmp.lt.s32.totalorder %s19, 1
      %s295 = scalar_select %p294, %s19, 1
      %s296 = smul.addr %s295, 54
      %s297 = smul.addr %s296, 4
      %s298 = scalar_lea.vmem %s0, %s297
      %p299 = scmp.lt.s32.totalorder %s19, 1
      %s300 = scalar_select %p299, %s19, 1
      %s301 = scalar_lea.vmem %s8, %s300
      %v303 = vld [vmem:[%s298] sm:$0xf]
      %v304 = vld [vmem:[%s298 + $0x4] sm:$0xf]
      %v305 = vld [vmem:[%s298 + $0xc] sm:$0xf]
      %v306 = vld [vmem:[%s298 + $0x10] sm:$0xf]
      %v307 = vld [vmem:[%s298 + $0x18] sm:$0xf]
      %v308 = vld [vmem:[%s298 + $0x1c] sm:$0xf]
      %v309 = vld [vmem:[%s298 + $0x24] sm:$0xf]
      %v310 = vld [vmem:[%s298 + $0x28] sm:$0xf]
      %v311 = vld [vmem:[%s298 + $0x30] sm:$0xf]
      %v312 = vld [vmem:[%s298 + $0x34] sm:$0xf]
      %v313 = vld [vmem:[%s298 + $0x3c] sm:$0xf]
      %v314 = vld [vmem:[%s298 + $0x40] sm:$0xf]
      %v315 = vld [vmem:[%s298 + $0x48] sm:$0xf]
      %v316 = vld [vmem:[%s298 + $0x4c] sm:$0xf]
      %v317 = vld [vmem:[%s298 + $0x54] sm:$0xf]
      %v318 = vld [vmem:[%s298 + $0x58] sm:$0xf]
      %v319 = vld [vmem:[%s298 + $0x60] sm:$0xf]
      %v320 = vld [vmem:[%s298 + $0x64] sm:$0xf]
      %v321 = vld [vmem:[%s298 + $0x6c] sm:$0xf]
      %v322 = vld [vmem:[%s298 + $0x70] sm:$0xf]
      %v323 = vld [vmem:[%s298 + $0x78] sm:$0xf]
      %v324 = vld [vmem:[%s298 + $0x7c] sm:$0xf]
      %v325 = vld [vmem:[%s298 + $0x84] sm:$0xf]
      %v326 = vld [vmem:[%s298 + $0x88] sm:$0xf]
      %v327 = vld [vmem:[%s298 + $0x90] sm:$0xf]
      %v328 = vld [vmem:[%s298 + $0x94] sm:$0xf]
      %v329 = vld [vmem:[%s298 + $0x9c] sm:$0xf]
      %v330 = vld [vmem:[%s298 + $0xa0] sm:$0xf]
      %v331 = vld [vmem:[%s298 + $0xa8] sm:$0xf]
      %v332 = vld [vmem:[%s298 + $0xac] sm:$0xf]
      %v333 = vld [vmem:[%s298 + $0xb4] sm:$0xf]
      %v334 = vld [vmem:[%s298 + $0xb8] sm:$0xf]
      %v335 = vld [vmem:[%s1] sm:$0x3]
      %v336 = vld [vmem:[%s298 + $0x8] sm:$0x1]
      %v337 = vld [vmem:[%s298 + $0x14] sm:$0x1]
      %v338 = vld [vmem:[%s298 + $0x20] sm:$0x1]
      %v339 = vld [vmem:[%s298 + $0x2c] sm:$0x1]
      %v340 = vld [vmem:[%s298 + $0x38] sm:$0x1]
      %v341 = vld [vmem:[%s298 + $0x44] sm:$0x1]
      %v342 = vld [vmem:[%s298 + $0x50] sm:$0x1]
      %v343 = vld [vmem:[%s298 + $0x5c] sm:$0x1]
      %v344 = vld [vmem:[%s298 + $0x68] sm:$0x1]
      %v345 = vld [vmem:[%s298 + $0x74] sm:$0x1]
      %v346 = vld [vmem:[%s298 + $0x80] sm:$0x1]
      %v347 = vld [vmem:[%s298 + $0x8c] sm:$0x1]
      %v348 = vld [vmem:[%s298 + $0x98] sm:$0x1]
      %v349 = vld [vmem:[%s298 + $0xa4] sm:$0x1]
      %v350 = vld [vmem:[%s298 + $0xb0] sm:$0x1]
      %v351 = vld [vmem:[%s298 + $0xbc] sm:$0x1]
      %vm352 = vsmask.f32 3328
      %vm353 = vsmask.f32 7440
      %vm354 = vmor %vm352, %vm353
      %v356 = vshrl.u32 %v303, 16
      %v358 = vrot.slane %v356, 4
      %v359 = vshll.u32 %v303, 16
      %v361 = vrot.slane %v359, 5
      %v362 = vor.u32 %v358, %v361
      %v363 = vrot.slane %v362, 4
      %v365 = vshll.u32 %v304, 16
      %v367 = vrot.slane %v365, 5
      %v368 = vsel %vm354, %v363, %v367
      %v369 = vshrl.u32 %v304, 16
      %v371 = vrot.slane %v369, 4
      %v372 = vor.u32 %v371, %v367
      %v373 = vrot.slane %v372, 4
      %v375 = vshll.u32 %v336, 16
      %v377 = vrot.slane %v375, 5
      %v378 = vsel %vm354, %v373, %v377
      %v380 = vshrl.u32 %v305, 16
      %v382 = vrot.slane %v380, 4
      %v383 = vshll.u32 %v305, 16
      %v385 = vrot.slane %v383, 5
      %v386 = vor.u32 %v382, %v385
      %v387 = vrot.slane %v386, 4
      %v389 = vshll.u32 %v306, 16
      %v391 = vrot.slane %v389, 5
      %v392 = vsel %vm354, %v387, %v391
      %v393 = vshrl.u32 %v306, 16
      %v395 = vrot.slane %v393, 4
      %v396 = vor.u32 %v395, %v391
      %v397 = vrot.slane %v396, 4
      %v399 = vshll.u32 %v337, 16
      %v401 = vrot.slane %v399, 5
      %v402 = vsel %vm354, %v397, %v401
      %v404 = vshrl.u32 %v307, 16
      %v406 = vrot.slane %v404, 4
      %v407 = vshll.u32 %v307, 16
      %v409 = vrot.slane %v407, 5
      %v410 = vor.u32 %v406, %v409
      %v411 = vrot.slane %v410, 4
      %v413 = vshll.u32 %v308, 16
      %v415 = vrot.slane %v413, 5
      %v416 = vsel %vm354, %v411, %v415
      %v417 = vshrl.u32 %v308, 16
      %v419 = vrot.slane %v417, 4
      %v420 = vor.u32 %v419, %v415
      %v421 = vrot.slane %v420, 4
      %v423 = vshll.u32 %v338, 16
      %v425 = vrot.slane %v423, 5
      %v426 = vsel %vm354, %v421, %v425
      %v428 = vshrl.u32 %v309, 16
      %v430 = vrot.slane %v428, 4
      %v431 = vshll.u32 %v309, 16
      %v433 = vrot.slane %v431, 5
      %v434 = vor.u32 %v430, %v433
      %v435 = vrot.slane %v434, 4
      %v437 = vshll.u32 %v310, 16
      %v439 = vrot.slane %v437, 5
      %v440 = vsel %vm354, %v435, %v439
      %v441 = vshrl.u32 %v310, 16
      %v443 = vrot.slane %v441, 4
      %v444 = vor.u32 %v443, %v439
      %v445 = vrot.slane %v444, 4
      %v447 = vshll.u32 %v339, 16
      %v449 = vrot.slane %v447, 5
      %v450 = vsel %vm354, %v445, %v449
      %v452 = vshrl.u32 %v311, 16
      %v454 = vrot.slane %v452, 4
      %v455 = vshll.u32 %v311, 16
      %v457 = vrot.slane %v455, 5
      %v458 = vor.u32 %v454, %v457
      %v459 = vrot.slane %v458, 4
      %v461 = vshll.u32 %v312, 16
      %v463 = vrot.slane %v461, 5
      %v464 = vsel %vm354, %v459, %v463
      %v465 = vshrl.u32 %v312, 16
      %v467 = vrot.slane %v465, 4
      %v468 = vor.u32 %v467, %v463
      %v469 = vrot.slane %v468, 4
      %v471 = vshll.u32 %v340, 16
      %v473 = vrot.slane %v471, 5
      %v474 = vsel %vm354, %v469, %v473
      %v476 = vshrl.u32 %v313, 16
      %v478 = vrot.slane %v476, 4
      %v479 = vshll.u32 %v313, 16
      %v481 = vrot.slane %v479, 5
      %v482 = vor.u32 %v478, %v481
      %v483 = vrot.slane %v482, 4
      %v485 = vshll.u32 %v314, 16
      %v487 = vrot.slane %v485, 5
      %v488 = vsel %vm354, %v483, %v487
      %v489 = vshrl.u32 %v314, 16
      %v491 = vrot.slane %v489, 4
      %v492 = vor.u32 %v491, %v487
      %v493 = vrot.slane %v492, 4
      %v495 = vshll.u32 %v341, 16
      %v497 = vrot.slane %v495, 5
      %v498 = vsel %vm354, %v493, %v497
      %v500 = vshrl.u32 %v315, 16
      %v502 = vrot.slane %v500, 4
      %v503 = vshll.u32 %v315, 16
      %v505 = vrot.slane %v503, 5
      %v506 = vor.u32 %v502, %v505
      %v507 = vrot.slane %v506, 4
      %v509 = vshll.u32 %v316, 16
      %v511 = vrot.slane %v509, 5
      %v512 = vsel %vm354, %v507, %v511
      %v513 = vshrl.u32 %v316, 16
      %v515 = vrot.slane %v513, 4
      %v516 = vor.u32 %v515, %v511
      %v517 = vrot.slane %v516, 4
      %v519 = vshll.u32 %v342, 16
      %v521 = vrot.slane %v519, 5
      %v522 = vsel %vm354, %v517, %v521
      %v524 = vshrl.u32 %v317, 16
      %v526 = vrot.slane %v524, 4
      %v527 = vshll.u32 %v317, 16
      %v529 = vrot.slane %v527, 5
      %v530 = vor.u32 %v526, %v529
      %v531 = vrot.slane %v530, 4
      %v533 = vshll.u32 %v318, 16
      %v535 = vrot.slane %v533, 5
      %v536 = vsel %vm354, %v531, %v535
      %v537 = vshrl.u32 %v318, 16
      %v539 = vrot.slane %v537, 4
      %v540 = vor.u32 %v539, %v535
      %v541 = vrot.slane %v540, 4
      %v543 = vshll.u32 %v343, 16
      %v545 = vrot.slane %v543, 5
      %v546 = vsel %vm354, %v541, %v545
      %v548 = vshrl.u32 %v319, 16
      %v550 = vrot.slane %v548, 4
      %v551 = vshll.u32 %v319, 16
      %v553 = vrot.slane %v551, 5
      %v554 = vor.u32 %v550, %v553
      %v555 = vrot.slane %v554, 4
      %v557 = vshll.u32 %v320, 16
      %v559 = vrot.slane %v557, 5
      %v560 = vsel %vm354, %v555, %v559
      %v561 = vshrl.u32 %v320, 16
      %v563 = vrot.slane %v561, 4
      %v564 = vor.u32 %v563, %v559
      %v565 = vrot.slane %v564, 4
      %v567 = vshll.u32 %v344, 16
      %v569 = vrot.slane %v567, 5
      %v570 = vsel %vm354, %v565, %v569
      %v572 = vshrl.u32 %v321, 16
      %v574 = vrot.slane %v572, 4
      %v575 = vshll.u32 %v321, 16
      %v577 = vrot.slane %v575, 5
      %v578 = vor.u32 %v574, %v577
      %v579 = vrot.slane %v578, 4
      %v581 = vshll.u32 %v322, 16
      %v583 = vrot.slane %v581, 5
      %v584 = vsel %vm354, %v579, %v583
      %v585 = vshrl.u32 %v322, 16
      %v587 = vrot.slane %v585, 4
      %v588 = vor.u32 %v587, %v583
      %v589 = vrot.slane %v588, 4
      %v591 = vshll.u32 %v345, 16
      %v593 = vrot.slane %v591, 5
      %v594 = vsel %vm354, %v589, %v593
      %v596 = vshrl.u32 %v323, 16
      %v598 = vrot.slane %v596, 4
      %v599 = vshll.u32 %v323, 16
      %v601 = vrot.slane %v599, 5
      %v602 = vor.u32 %v598, %v601
      %v603 = vrot.slane %v602, 4
      %v605 = vshll.u32 %v324, 16
      %v607 = vrot.slane %v605, 5
      %v608 = vsel %vm354, %v603, %v607
      %v609 = vshrl.u32 %v324, 16
      %v611 = vrot.slane %v609, 4
      %v612 = vor.u32 %v611, %v607
      %v613 = vrot.slane %v612, 4
      %v615 = vshll.u32 %v346, 16
      %v617 = vrot.slane %v615, 5
      %v618 = vsel %vm354, %v613, %v617
      %v620 = vshrl.u32 %v325, 16
      %v622 = vrot.slane %v620, 4
      %v623 = vshll.u32 %v325, 16
      %v625 = vrot.slane %v623, 5
      %v626 = vor.u32 %v622, %v625
      %v627 = vrot.slane %v626, 4
      %v629 = vshll.u32 %v326, 16
      %v631 = vrot.slane %v629, 5
      %v632 = vsel %vm354, %v627, %v631
      %v633 = vshrl.u32 %v326, 16
      %v635 = vrot.slane %v633, 4
      %v636 = vor.u32 %v635, %v631
      %v637 = vrot.slane %v636, 4
      %v639 = vshll.u32 %v347, 16
      %v641 = vrot.slane %v639, 5
      %v642 = vsel %vm354, %v637, %v641
      %v644 = vshrl.u32 %v327, 16
      %v646 = vrot.slane %v644, 4
      %v647 = vshll.u32 %v327, 16
      %v649 = vrot.slane %v647, 5
      %v650 = vor.u32 %v646, %v649
      %v651 = vrot.slane %v650, 4
      %v653 = vshll.u32 %v328, 16
      %v655 = vrot.slane %v653, 5
      %v656 = vsel %vm354, %v651, %v655
      %v657 = vshrl.u32 %v328, 16
      %v659 = vrot.slane %v657, 4
      %v660 = vor.u32 %v659, %v655
      %v661 = vrot.slane %v660, 4
      %v663 = vshll.u32 %v348, 16
      %v665 = vrot.slane %v663, 5
      %v666 = vsel %vm354, %v661, %v665
      %v668 = vshrl.u32 %v329, 16
      %v670 = vrot.slane %v668, 4
      %v671 = vshll.u32 %v329, 16
      %v673 = vrot.slane %v671, 5
      %v674 = vor.u32 %v670, %v673
      %v675 = vrot.slane %v674, 4
      %v677 = vshll.u32 %v330, 16
      %v679 = vrot.slane %v677, 5
      %v680 = vsel %vm354, %v675, %v679
      %v681 = vshrl.u32 %v330, 16
      %v683 = vrot.slane %v681, 4
      %v684 = vor.u32 %v683, %v679
      %v685 = vrot.slane %v684, 4
      %v687 = vshll.u32 %v349, 16
      %v689 = vrot.slane %v687, 5
      %v690 = vsel %vm354, %v685, %v689
      %v692 = vshrl.u32 %v331, 16
      %v694 = vrot.slane %v692, 4
      %v695 = vshll.u32 %v331, 16
      %v697 = vrot.slane %v695, 5
      %v698 = vor.u32 %v694, %v697
      %v699 = vrot.slane %v698, 4
      %v701 = vshll.u32 %v332, 16
      %v703 = vrot.slane %v701, 5
      %v704 = vsel %vm354, %v699, %v703
      %v705 = vshrl.u32 %v332, 16
      %v707 = vrot.slane %v705, 4
      %v708 = vor.u32 %v707, %v703
      %v709 = vrot.slane %v708, 4
      %v711 = vshll.u32 %v350, 16
      %v713 = vrot.slane %v711, 5
      %v714 = vsel %vm354, %v709, %v713
      %v716 = vshrl.u32 %v333, 16
      %v718 = vrot.slane %v716, 4
      %v719 = vshll.u32 %v333, 16
      %v721 = vrot.slane %v719, 5
      %v722 = vor.u32 %v718, %v721
      %v723 = vrot.slane %v722, 4
      %v725 = vshll.u32 %v334, 16
      %v727 = vrot.slane %v725, 5
      %v728 = vsel %vm354, %v723, %v727
      %v729 = vshrl.u32 %v334, 16
      %v731 = vrot.slane %v729, 4
      %v732 = vor.u32 %v731, %v727
      %v733 = vrot.slane %v732, 4
      %v735 = vshll.u32 %v351, 16
      %v737 = vrot.slane %v735, 5
      %v738 = vsel %vm354, %v733, %v737
      %s739 = scalar_lea.vmem %s1, 2
      %v740 = vld [vmem:[%s739] sm:$0x3]
      %v741 = vunpack.c.l.b16 %v368
      %v742 = vunpack.c.l.b16 %v378
      %v743 = vunpack.c.l.b16 %v392
      %v744 = vunpack.c.l.b16 %v402
      %v745 = vunpack.c.l.b16 %v416
      %v746 = vunpack.c.l.b16 %v426
      %v747 = vunpack.c.l.b16 %v440
      %v748 = vunpack.c.l.b16 %v450
      %v749 = vunpack.c.l.b16 %v464
      %v750 = vunpack.c.l.b16 %v474
      %v751 = vunpack.c.l.b16 %v488
      %v752 = vunpack.c.l.b16 %v498
      %v753 = vunpack.c.l.b16 %v512
      %v754 = vunpack.c.l.b16 %v522
      %v755 = vunpack.c.l.b16 %v536
      %v756 = vunpack.c.l.b16 %v546
      %v757 = vunpack.c.l.b16 %v560
      %v758 = vunpack.c.l.b16 %v570
      %v759 = vunpack.c.l.b16 %v584
      %v760 = vunpack.c.l.b16 %v594
      %v761 = vunpack.c.l.b16 %v608
      %v762 = vunpack.c.l.b16 %v618
      %v763 = vunpack.c.l.b16 %v632
      %v764 = vunpack.c.l.b16 %v642
      %v765 = vunpack.c.l.b16 %v656
      %v766 = vunpack.c.l.b16 %v666
      %v767 = vunpack.c.l.b16 %v680
      %v768 = vunpack.c.l.b16 %v690
      %v769 = vunpack.c.l.b16 %v704
      %v770 = vunpack.c.l.b16 %v714
      %v771 = vunpack.c.l.b16 %v728
      %v772 = vunpack.c.l.b16 %v738
      %v773 = vpack.c.b16 %v742, %v741
      %v774 = vpack.c.b16 %v744, %v743
      %v775 = vpack.c.b16 %v746, %v745
      %v776 = vpack.c.b16 %v748, %v747
      %v777 = vpack.c.b16 %v750, %v749
      %v778 = vpack.c.b16 %v752, %v751
      %v779 = vpack.c.b16 %v754, %v753
      %v780 = vpack.c.b16 %v756, %v755
      %v781 = vpack.c.b16 %v758, %v757
      %v782 = vpack.c.b16 %v760, %v759
      %v783 = vpack.c.b16 %v762, %v761
      %v784 = vpack.c.b16 %v764, %v763
      %v785 = vpack.c.b16 %v766, %v765
      %v786 = vpack.c.b16 %v768, %v767
      %v787 = vpack.c.b16 %v770, %v769
      %v788 = vpack.c.b16 %v772, %v771
      %vm789 = vcmask 31744
      %v791 = vsel %vm789, %v773, 0
      %v794 = vsel %vm789, %v774, 0
      %v797 = vsel %vm789, %v775, 0
      %v800 = vsel %vm789, %v776, 0
      %v803 = vsel %vm789, %v777, 0
      %v806 = vsel %vm789, %v778, 0
      %v809 = vsel %vm789, %v779, 0
      %v812 = vsel %vm789, %v780, 0
      %v815 = vsel %vm789, %v781, 0
      %v818 = vsel %vm789, %v782, 0
      %v821 = vsel %vm789, %v783, 0
      %v824 = vsel %vm789, %v784, 0
      %v827 = vsel %vm789, %v785, 0
      %v830 = vsel %vm789, %v786, 0
      %v833 = vsel %vm789, %v787, 0
      %v836 = vsel %vm789, %v788, 0
      %vm838 = vcmask 1041408
      %v840 = vsel %vm838, %v740, 0
      %842 = vmatprep.subr.bf16.mxu0 0
      %843 = vmatpush1.bf16.msra.mxu0 %v840
      %844 = vmatprep.subr.bf16.mxu0 0
      %845 = vmatpush1.bf16.msra.mxu0 0
      %846 = vmatprep.subr.bf16.mxu0 0
      %847 = vmatpush1.bf16.msra.mxu0 0
      %848 = vmatprep.subr.bf16.mxu0 0
      %849 = vmatpush1.bf16.msra.mxu0 0
      %850 = vmatprep.subr.bf16.mxu0 0
      %851 = vmatpush1.bf16.msra.mxu0 0
      %852 = vmatprep.subr.bf16.mxu0 0
      %853 = vmatpush1.bf16.msra.mxu0 0
      %854 = vmatprep.subr.bf16.mxu0 0
      %855 = vmatpush1.bf16.msra.mxu0 0
      %856 = vmatprep.subr.bf16.mxu0 0
      %857 = vmatpush1.bf16.msra.mxu0 0
      %858 = vmatprep.subr.bf16.mxu0 0
      %859 = vmatpush1.bf16.msra.mxu0 0
      %860 = vmatprep.subr.bf16.mxu0 0
      %861 = vmatpush1.bf16.msra.mxu0 0
      %862 = vmatprep.subr.bf16.mxu0 0
      %863 = vmatpush1.bf16.msra.mxu0 0
      %864 = vmatprep.subr.bf16.mxu0 0
      %865 = vmatpush1.bf16.msra.mxu0 0
      %866 = vmatprep.subr.bf16.mxu0 0
      %867 = vmatpush1.bf16.msra.mxu0 0
      %868 = vmatprep.subr.bf16.mxu0 0
      %869 = vmatpush1.bf16.msra.mxu0 0
      %870 = vmatprep.subr.bf16.mxu0 0
      %871 = vmatpush1.bf16.msra.mxu0 0
      %872 = vmatprep.subr.bf16.mxu0 0
      %873 = vmatpush1.bf16.msra.mxu0 0
      %874 = vmatprep.mubr.bf16.mxu0 0
      %875 = vmatmul.mubr.bf16.gmra.mrb[0].mxu0 %v791
      %v876 = vpop.f32.mrb[0].mxu0
      %v877 = vadd.f32 0.0, %v876
      %v878 = vpop.f32.mrb[0].mxu0
      %v879 = vpop.f32.mrb[0].mxu0
      %v880 = vadd.f32 0.0, %v879
      %v881 = vpop.f32.mrb[0].mxu0
      %882 = vmatprep.mubr.bf16.mxu0 0
      %883 = vmatmul.mubr.bf16.gmra.mrb[0].mxu0 %v794
      %v884 = vpop.f32.mrb[0].mxu0
      %v885 = vadd.f32 0.0, %v884
      %v886 = vpop.f32.mrb[0].mxu0
      %v887 = vpop.f32.mrb[0].mxu0
      %v888 = vadd.f32 0.0, %v887
      %v889 = vpop.f32.mrb[0].mxu0
      %890 = vmatprep.mubr.bf16.mxu0 0
      %891 = vmatmul.mubr.bf16.gmra.mrb[0].mxu0 %v797
      %v892 = vpop.f32.mrb[0].mxu0
      %v893 = vadd.f32 0.0, %v892
      %v894 = vpop.f32.mrb[0].mxu0
      %v895 = vpop.f32.mrb[0].mxu0
      %v896 = vadd.f32 0.0, %v895
      %v897 = vpop.f32.mrb[0].mxu0
      %898 = vmatprep.mubr.bf16.mxu0 0
      %899 = vmatmul.mubr.bf16.gmra.mrb[0].mxu0 %v800
      %v900 = vpop.f32.mrb[0].mxu0
      %v901 = vadd.f32 0.0, %v900
      %v902 = vpop.f32.mrb[0].mxu0
      %v903 = vpop.f32.mrb[0].mxu0
      %v904 = vadd.f32 0.0, %v903
      %v905 = vpop.f32.mrb[0].mxu0
      %906 = vmatprep.mubr.bf16.mxu0 0
      %907 = vmatmul.mubr.bf16.gmra.mrb[0].mxu0 %v803
      %v908 = vpop.f32.mrb[0].mxu0
      %v909 = vadd.f32 0.0, %v908
      %v910 = vpop.f32.mrb[0].mxu0
      %v911 = vpop.f32.mrb[0].mxu0
      %v912 = vadd.f32 0.0, %v911
      %v913 = vpop.f32.mrb[0].mxu0
      %914 = vmatprep.mubr.bf16.mxu0 0
      %915 = vmatmul.mubr.bf16.gmra.mrb[0].mxu0 %v806
      %v916 = vpop.f32.mrb[0].mxu0
      %v917 = vadd.f32 0.0, %v916
      %v918 = vpop.f32.mrb[0].mxu0
      %v919 = vpop.f32.mrb[0].mxu0
      %v920 = vadd.f32 0.0, %v919
      %v921 = vpop.f32.mrb[0].mxu0
      %922 = vmatprep.mubr.bf16.mxu0 0
      %923 = vmatmul.mubr.bf16.gmra.mrb[0].mxu0 %v809
      %v924 = vpop.f32.mrb[0].mxu0
      %v925 = vadd.f32 0.0, %v924
      %v926 = vpop.f32.mrb[0].mxu0
      %v927 = vpop.f32.mrb[0].mxu0
      %v928 = vadd.f32 0.0, %v927
      %v929 = vpop.f32.mrb[0].mxu0
      %930 = vmatprep.mubr.bf16.mxu0 0
      %931 = vmatmul.mubr.bf16.gmra.mrb[0].mxu0 %v812
      %v932 = vpop.f32.mrb[0].mxu0
      %v933 = vadd.f32 0.0, %v932
      %v934 = vpop.f32.mrb[0].mxu0
      %v935 = vpop.f32.mrb[0].mxu0
      %v936 = vadd.f32 0.0, %v935
      %v937 = vpop.f32.mrb[0].mxu0
      %938 = vmatprep.mubr.bf16.mxu0 0
      %939 = vmatmul.mubr.bf16.gmra.mrb[0].mxu0 %v815
      %v940 = vpop.f32.mrb[0].mxu0
      %v941 = vadd.f32 0.0, %v940
      %v942 = vpop.f32.mrb[0].mxu0
      %v943 = vpop.f32.mrb[0].mxu0
      %v944 = vadd.f32 0.0, %v943
      %v945 = vpop.f32.mrb[0].mxu0
      %946 = vmatprep.mubr.bf16.mxu0 0
      %947 = vmatmul.mubr.bf16.gmra.mrb[0].mxu0 %v818
      %v948 = vpop.f32.mrb[0].mxu0
      %v949 = vadd.f32 0.0, %v948
      %v950 = vpop.f32.mrb[0].mxu0
      %v951 = vpop.f32.mrb[0].mxu0
      %v952 = vadd.f32 0.0, %v951
      %v953 = vpop.f32.mrb[0].mxu0
      %954 = vmatprep.mubr.bf16.mxu0 0
      %955 = vmatmul.mubr.bf16.gmra.mrb[0].mxu0 %v821
      %v956 = vpop.f32.mrb[0].mxu0
      %v957 = vadd.f32 0.0, %v956
      %v958 = vpop.f32.mrb[0].mxu0
      %v959 = vpop.f32.mrb[0].mxu0
      %v960 = vadd.f32 0.0, %v959
      %v961 = vpop.f32.mrb[0].mxu0
      %962 = vmatprep.mubr.bf16.mxu0 0
      %963 = vmatmul.mubr.bf16.gmra.mrb[0].mxu0 %v824
      %v964 = vpop.f32.mrb[0].mxu0
      %v965 = vadd.f32 0.0, %v964
      %v966 = vpop.f32.mrb[0].mxu0
      %v967 = vpop.f32.mrb[0].mxu0
      %v968 = vadd.f32 0.0, %v967
      %v969 = vpop.f32.mrb[0].mxu0
      %970 = vmatprep.mubr.bf16.mxu0 0
      %971 = vmatmul.mubr.bf16.gmra.mrb[0].mxu0 %v827
      %v972 = vpop.f32.mrb[0].mxu0
      %v973 = vadd.f32 0.0, %v972
      %v974 = vpop.f32.mrb[0].mxu0
      %v975 = vpop.f32.mrb[0].mxu0
      %v976 = vadd.f32 0.0, %v975
      %v977 = vpop.f32.mrb[0].mxu0
      %978 = vmatprep.mubr.bf16.mxu0 0
      %979 = vmatmul.mubr.bf16.gmra.mrb[0].mxu0 %v830
      %v980 = vpop.f32.mrb[0].mxu0
      %v981 = vadd.f32 0.0, %v980
      %v982 = vpop.f32.mrb[0].mxu0
      %v983 = vpop.f32.mrb[0].mxu0
      %v984 = vadd.f32 0.0, %v983
      %v985 = vpop.f32.mrb[0].mxu0
      %986 = vmatprep.mubr.bf16.mxu0 0
      %987 = vmatmul.mubr.bf16.gmra.mrb[0].mxu0 %v833
      %v988 = vpop.f32.mrb[0].mxu0
      %v989 = vadd.f32 0.0, %v988
      %v990 = vpop.f32.mrb[0].mxu0
      %v991 = vpop.f32.mrb[0].mxu0
      %v992 = vadd.f32 0.0, %v991
      %v993 = vpop.f32.mrb[0].mxu0
      %994 = vmatprep.mubr.bf16.mxu0 0
      %995 = vmatmul.mubr.bf16.gmra.mrb[0].mxu0 %v836
      %v996 = vpop.f32.mrb[0].mxu0
      %v997 = vadd.f32 0.0, %v996
      %v998 = vpop.f32.mrb[0].mxu0
      %v999 = vpop.f32.mrb[0].mxu0
      %v1000 = vadd.f32 0.0, %v999
      %v1001 = vpop.f32.mrb[0].mxu0
      %1002 = vdwg.mxu0
      %v1035 = vunpack.c.l.b16 %v303
      %v1036 = vunpack.c.l.b16 %v304
      %v1037 = vunpack.c.l.b16 %v305
      %v1038 = vunpack.c.l.b16 %v306
      %v1039 = vunpack.c.l.b16 %v307
      %v1040 = vunpack.c.l.b16 %v308
      %v1041 = vunpack.c.l.b16 %v309
      %v1042 = vunpack.c.l.b16 %v310
      %v1043 = vunpack.c.l.b16 %v311
      %v1044 = vunpack.c.l.b16 %v312
      %v1045 = vunpack.c.l.b16 %v313
      %v1046 = vunpack.c.l.b16 %v314
      %v1047 = vunpack.c.l.b16 %v315
      %v1048 = vunpack.c.l.b16 %v316
      %v1049 = vunpack.c.l.b16 %v317
      %v1050 = vunpack.c.l.b16 %v318
      %v1051 = vunpack.c.l.b16 %v319
      %v1052 = vunpack.c.l.b16 %v320
      %v1053 = vunpack.c.l.b16 %v321
      %v1054 = vunpack.c.l.b16 %v322
      %v1055 = vunpack.c.l.b16 %v323
      %v1056 = vunpack.c.l.b16 %v324
      %v1057 = vunpack.c.l.b16 %v325
      %v1058 = vunpack.c.l.b16 %v326
      %v1059 = vunpack.c.l.b16 %v327
      %v1060 = vunpack.c.l.b16 %v328
      %v1061 = vunpack.c.l.b16 %v329
      %v1062 = vunpack.c.l.b16 %v330
      %v1063 = vunpack.c.l.b16 %v331
      %v1064 = vunpack.c.l.b16 %v332
      %v1065 = vunpack.c.l.b16 %v333
      %v1066 = vunpack.c.l.b16 %v334
      %v1067 = vpack.c.b16 %v1036, %v1035
      %v1068 = vpack.c.b16 %v1038, %v1037
      %v1069 = vpack.c.b16 %v1040, %v1039
      %v1070 = vpack.c.b16 %v1042, %v1041
      %v1071 = vpack.c.b16 %v1044, %v1043
      %v1072 = vpack.c.b16 %v1046, %v1045
      %v1073 = vpack.c.b16 %v1048, %v1047
      %v1074 = vpack.c.b16 %v1050, %v1049
      %v1075 = vpack.c.b16 %v1052, %v1051
      %v1076 = vpack.c.b16 %v1054, %v1053
      %v1077 = vpack.c.b16 %v1056, %v1055
      %v1078 = vpack.c.b16 %v1058, %v1057
      %v1079 = vpack.c.b16 %v1060, %v1059
      %v1080 = vpack.c.b16 %v1062, %v1061
      %v1081 = vpack.c.b16 %v1064, %v1063
      %v1082 = vpack.c.b16 %v1066, %v1065
      %v1084 = vsel %vm789, %v1067, 0
      %v1087 = vsel %vm789, %v1068, 0
      %v1090 = vsel %vm789, %v1069, 0
      %v1093 = vsel %vm789, %v1070, 0
      %v1096 = vsel %vm789, %v1071, 0
      %v1099 = vsel %vm789, %v1072, 0
      %v1102 = vsel %vm789, %v1073, 0
      %v1105 = vsel %vm789, %v1074, 0
      %v1108 = vsel %vm789, %v1075, 0
      %v1111 = vsel %vm789, %v1076, 0
      %v1114 = vsel %vm789, %v1077, 0
      %v1117 = vsel %vm789, %v1078, 0
      %v1120 = vsel %vm789, %v1079, 0
      %v1123 = vsel %vm789, %v1080, 0
      %v1126 = vsel %vm789, %v1081, 0
      %v1129 = vsel %vm789, %v1082, 0
      %v1132 = vsel %vm838, %v335, 0
      %1134 = vmatprep.subr.bf16.mxu0 0
      %1135 = vmatpush1.bf16.msra.mxu0 %v1132
      %1136 = vmatprep.subr.bf16.mxu0 0
      %1137 = vmatpush1.bf16.msra.mxu0 0
      %1138 = vmatprep.subr.bf16.mxu0 0
      %1139 = vmatpush1.bf16.msra.mxu0 0
      %1140 = vmatprep.subr.bf16.mxu0 0
      %1141 = vmatpush1.bf16.msra.mxu0 0
      %1142 = vmatprep.subr.bf16.mxu0 0
      %1143 = vmatpush1.bf16.msra.mxu0 0
      %1144 = vmatprep.subr.bf16.mxu0 0
      %1145 = vmatpush1.bf16.msra.mxu0 0
      %1146 = vmatprep.subr.bf16.mxu0 0
      %1147 = vmatpush1.bf16.msra.mxu0 0
      %1148 = vmatprep.subr.bf16.mxu0 0
      %1149 = vmatpush1.bf16.msra.mxu0 0
      %1150 = vmatprep.subr.bf16.mxu0 0
      %1151 = vmatpush1.bf16.msra.mxu0 0
      %1152 = vmatprep.subr.bf16.mxu0 0
      %1153 = vmatpush1.bf16.msra.mxu0 0
      %1154 = vmatprep.subr.bf16.mxu0 0
      %1155 = vmatpush1.bf16.msra.mxu0 0
      %1156 = vmatprep.subr.bf16.mxu0 0
      %1157 = vmatpush1.bf16.msra.mxu0 0
      %1158 = vmatprep.subr.bf16.mxu0 0
      %1159 = vmatpush1.bf16.msra.mxu0 0
      %1160 = vmatprep.subr.bf16.mxu0 0
      %1161 = vmatpush1.bf16.msra.mxu0 0
      %1162 = vmatprep.subr.bf16.mxu0 0
      %1163 = vmatpush1.bf16.msra.mxu0 0
      %1164 = vmatprep.subr.bf16.mxu0 0
      %1165 = vmatpush1.bf16.msra.mxu0 0
      %1166 = vmatprep.mubr.bf16.mxu0 0
      %1167 = vmatmul.mubr.bf16.gmra.mrb[0].mxu0 %v1084
      %v1168 = vpop.f32.mrb[0].mxu0
      %v1169 = vadd.f32 %v877, %v1168
      %v1170 = vpop.f32.mrb[0].mxu0
      %v1171 = vpop.f32.mrb[0].mxu0
      %v1172 = vadd.f32 %v880, %v1171
      %v1173 = vpop.f32.mrb[0].mxu0
      %1174 = vmatprep.mubr.bf16.mxu0 0
      %1175 = vmatmul.mubr.bf16.gmra.mrb[0].mxu0 %v1087
      %v1176 = vpop.f32.mrb[0].mxu0
      %v1177 = vadd.f32 %v885, %v1176
      %v1178 = vpop.f32.mrb[0].mxu0
      %v1179 = vpop.f32.mrb[0].mxu0
      %v1180 = vadd.f32 %v888, %v1179
      %v1181 = vpop.f32.mrb[0].mxu0
      %1182 = vmatprep.mubr.bf16.mxu0 0
      %1183 = vmatmul.mubr.bf16.gmra.mrb[0].mxu0 %v1090
      %v1184 = vpop.f32.mrb[0].mxu0
      %v1185 = vadd.f32 %v893, %v1184
      %v1186 = vpop.f32.mrb[0].mxu0
      %v1187 = vpop.f32.mrb[0].mxu0
      %v1188 = vadd.f32 %v896, %v1187
      %v1189 = vpop.f32.mrb[0].mxu0
      %1190 = vmatprep.mubr.bf16.mxu0 0
      %1191 = vmatmul.mubr.bf16.gmra.mrb[0].mxu0 %v1093
      %v1192 = vpop.f32.mrb[0].mxu0
      %v1193 = vadd.f32 %v901, %v1192
      %v1194 = vpop.f32.mrb[0].mxu0
      %v1195 = vpop.f32.mrb[0].mxu0
      %v1196 = vadd.f32 %v904, %v1195
      %v1197 = vpop.f32.mrb[0].mxu0
      %1198 = vmatprep.mubr.bf16.mxu0 0
      %1199 = vmatmul.mubr.bf16.gmra.mrb[0].mxu0 %v1096
      %v1200 = vpop.f32.mrb[0].mxu0
      %v1201 = vadd.f32 %v909, %v1200
      %v1202 = vpop.f32.mrb[0].mxu0
      %v1203 = vpop.f32.mrb[0].mxu0
      %v1204 = vadd.f32 %v912, %v1203
      %v1205 = vpop.f32.mrb[0].mxu0
      %1206 = vmatprep.mubr.bf16.mxu0 0
      %1207 = vmatmul.mubr.bf16.gmra.mrb[0].mxu0 %v1099
      %v1208 = vpop.f32.mrb[0].mxu0
      %v1209 = vadd.f32 %v917, %v1208
      %v1210 = vpop.f32.mrb[0].mxu0
      %v1211 = vpop.f32.mrb[0].mxu0
      %v1212 = vadd.f32 %v920, %v1211
      %v1213 = vpop.f32.mrb[0].mxu0
      %1214 = vmatprep.mubr.bf16.mxu0 0
      %1215 = vmatmul.mubr.bf16.gmra.mrb[0].mxu0 %v1102
      %v1216 = vpop.f32.mrb[0].mxu0
      %v1217 = vadd.f32 %v925, %v1216
      %v1218 = vpop.f32.mrb[0].mxu0
      %v1219 = vpop.f32.mrb[0].mxu0
      %v1220 = vadd.f32 %v928, %v1219
      %v1221 = vpop.f32.mrb[0].mxu0
      %1222 = vmatprep.mubr.bf16.mxu0 0
      %1223 = vmatmul.mubr.bf16.gmra.mrb[0].mxu0 %v1105
      %v1224 = vpop.f32.mrb[0].mxu0
      %v1225 = vadd.f32 %v933, %v1224
      %v1226 = vpop.f32.mrb[0].mxu0
      %v1227 = vpop.f32.mrb[0].mxu0
      %v1228 = vadd.f32 %v936, %v1227
      %v1229 = vpop.f32.mrb[0].mxu0
      %1230 = vmatprep.mubr.bf16.mxu0 0
      %1231 = vmatmul.mubr.bf16.gmra.mrb[0].mxu0 %v1108
      %v1232 = vpop.f32.mrb[0].mxu0
      %v1233 = vadd.f32 %v941, %v1232
      %v1234 = vpop.f32.mrb[0].mxu0
      %v1235 = vpop.f32.mrb[0].mxu0
      %v1236 = vadd.f32 %v944, %v1235
      %v1237 = vpop.f32.mrb[0].mxu0
      %1238 = vmatprep.mubr.bf16.mxu0 0
      %1239 = vmatmul.mubr.bf16.gmra.mrb[0].mxu0 %v1111
      %v1240 = vpop.f32.mrb[0].mxu0
      %v1241 = vadd.f32 %v949, %v1240
      %v1242 = vpop.f32.mrb[0].mxu0
      %v1243 = vpop.f32.mrb[0].mxu0
      %v1244 = vadd.f32 %v952, %v1243
      %v1245 = vpop.f32.mrb[0].mxu0
      %1246 = vmatprep.mubr.bf16.mxu0 0
      %1247 = vmatmul.mubr.bf16.gmra.mrb[0].mxu0 %v1114
      %v1248 = vpop.f32.mrb[0].mxu0
      %v1249 = vadd.f32 %v957, %v1248
      %v1250 = vpop.f32.mrb[0].mxu0
      %v1251 = vpop.f32.mrb[0].mxu0
      %v1252 = vadd.f32 %v960, %v1251
      %v1253 = vpop.f32.mrb[0].mxu0
      %1254 = vmatprep.mubr.bf16.mxu0 0
      %1255 = vmatmul.mubr.bf16.gmra.mrb[0].mxu0 %v1117
      %v1256 = vpop.f32.mrb[0].mxu0
      %v1257 = vadd.f32 %v965, %v1256
      %v1258 = vpop.f32.mrb[0].mxu0
      %v1259 = vpop.f32.mrb[0].mxu0
      %v1260 = vadd.f32 %v968, %v1259
      %v1261 = vpop.f32.mrb[0].mxu0
      %1262 = vmatprep.mubr.bf16.mxu0 0
      %1263 = vmatmul.mubr.bf16.gmra.mrb[0].mxu0 %v1120
      %v1264 = vpop.f32.mrb[0].mxu0
      %v1265 = vadd.f32 %v973, %v1264
      %v1266 = vpop.f32.mrb[0].mxu0
      %v1267 = vpop.f32.mrb[0].mxu0
      %v1268 = vadd.f32 %v976, %v1267
      %v1269 = vpop.f32.mrb[0].mxu0
      %1270 = vmatprep.mubr.bf16.mxu0 0
      %1271 = vmatmul.mubr.bf16.gmra.mrb[0].mxu0 %v1123
      %v1272 = vpop.f32.mrb[0].mxu0
      %v1273 = vadd.f32 %v981, %v1272
      %v1274 = vpop.f32.mrb[0].mxu0
      %v1275 = vpop.f32.mrb[0].mxu0
      %v1276 = vadd.f32 %v984, %v1275
      %v1277 = vpop.f32.mrb[0].mxu0
      %1278 = vmatprep.mubr.bf16.mxu0 0
      %1279 = vmatmul.mubr.bf16.gmra.mrb[0].mxu0 %v1126
      %v1280 = vpop.f32.mrb[0].mxu0
      %v1281 = vadd.f32 %v989, %v1280
      %v1282 = vpop.f32.mrb[0].mxu0
      %v1283 = vpop.f32.mrb[0].mxu0
      %v1284 = vadd.f32 %v992, %v1283
      %v1285 = vpop.f32.mrb[0].mxu0
      %1286 = vmatprep.mubr.bf16.mxu0 0
      %1287 = vmatmul.mubr.bf16.gmra.mrb[0].mxu0 %v1129
      %v1288 = vpop.f32.mrb[0].mxu0
      %v1289 = vadd.f32 %v997, %v1288
      %v1290 = vpop.f32.mrb[0].mxu0
      %v1291 = vpop.f32.mrb[0].mxu0
      %v1292 = vadd.f32 %v1000, %v1291
      %v1293 = vpop.f32.mrb[0].mxu0
      %1294 = vdwg.mxu0
      %v1295 = vld [vmem:[%s298] sm:$0xe]
      %v1296 = vld [vmem:[%s298 + $0xc] sm:$0xe]
      %v1297 = vld [vmem:[%s298 + $0x18] sm:$0xe]
      %v1298 = vld [vmem:[%s298 + $0x24] sm:$0xe]
      %v1299 = vld [vmem:[%s298 + $0x30] sm:$0xe]
      %v1300 = vld [vmem:[%s298 + $0x3c] sm:$0xe]
      %v1301 = vld [vmem:[%s298 + $0x48] sm:$0xe]
      %v1302 = vld [vmem:[%s298 + $0x54] sm:$0xe]
      %v1303 = vld [vmem:[%s298 + $0x60] sm:$0xe]
      %v1304 = vld [vmem:[%s298 + $0x6c] sm:$0xe]
      %v1305 = vld [vmem:[%s298 + $0x78] sm:$0xe]
      %v1306 = vld [vmem:[%s298 + $0x84] sm:$0xe]
      %v1307 = vld [vmem:[%s298 + $0x90] sm:$0xe]
      %v1308 = vld [vmem:[%s298 + $0x9c] sm:$0xe]
      %v1309 = vld [vmem:[%s298 + $0xa8] sm:$0xe]
      %v1310 = vld [vmem:[%s298 + $0xb4] sm:$0xe]
      %vm1343 = vcmask 1042432
      %vm1344 = vcmask 1046532
      %vm1345 = vmor %vm1343, %vm1344
      %v1346 = vrot.slane %v1295, 5
      %v1347 = vrot.slane %v1346, 4
      %v1348 = vrot.slane %v304, 5
      %v1349 = vsel %vm1345, %v1347, %v1348
      %v1350 = vrot.slane %v1348, 4
      %v1351 = vrot.slane %v336, 5
      %v1352 = vsel %vm1345, %v1350, %v1351
      %v1353 = vrot.slane %v1296, 5
      %v1354 = vrot.slane %v1353, 4
      %v1355 = vrot.slane %v306, 5
      %v1356 = vsel %vm1345, %v1354, %v1355
      %v1357 = vrot.slane %v1355, 4
      %v1358 = vrot.slane %v337, 5
      %v1359 = vsel %vm1345, %v1357, %v1358
      %v1360 = vrot.slane %v1297, 5
      %v1361 = vrot.slane %v1360, 4
      %v1362 = vrot.slane %v308, 5
      %v1363 = vsel %vm1345, %v1361, %v1362
      %v1364 = vrot.slane %v1362, 4
      %v1365 = vrot.slane %v338, 5
      %v1366 = vsel %vm1345, %v1364, %v1365
      %v1367 = vrot.slane %v1298, 5
      %v1368 = vrot.slane %v1367, 4
      %v1369 = vrot.slane %v310, 5
      %v1370 = vsel %vm1345, %v1368, %v1369
      %v1371 = vrot.slane %v1369, 4
      %v1372 = vrot.slane %v339, 5
      %v1373 = vsel %vm1345, %v1371, %v1372
      %v1374 = vrot.slane %v1299, 5
      %v1375 = vrot.slane %v1374, 4
      %v1376 = vrot.slane %v312, 5
      %v1377 = vsel %vm1345, %v1375, %v1376
      %v1378 = vrot.slane %v1376, 4
      %v1379 = vrot.slane %v340, 5
      %v1380 = vsel %vm1345, %v1378, %v1379
      %v1381 = vrot.slane %v1300, 5
      %v1382 = vrot.slane %v1381, 4
      %v1383 = vrot.slane %v314, 5
      %v1384 = vsel %vm1345, %v1382, %v1383
      %v1385 = vrot.slane %v1383, 4
      %v1386 = vrot.slane %v341, 5
      %v1387 = vsel %vm1345, %v1385, %v1386
      %v1388 = vrot.slane %v1301, 5
      %v1389 = vrot.slane %v1388, 4
      %v1390 = vrot.slane %v316, 5
      %v1391 = vsel %vm1345, %v1389, %v1390
      %v1392 = vrot.slane %v1390, 4
      %v1393 = vrot.slane %v342, 5
      %v1394 = vsel %vm1345, %v1392, %v1393
      %v1395 = vrot.slane %v1302, 5
      %v1396 = vrot.slane %v1395, 4
      %v1397 = vrot.slane %v318, 5
      %v1398 = vsel %vm1345, %v1396, %v1397
      %v1399 = vrot.slane %v1397, 4
      %v1400 = vrot.slane %v343, 5
      %v1401 = vsel %vm1345, %v1399, %v1400
      %v1402 = vrot.slane %v1303, 5
      %v1403 = vrot.slane %v1402, 4
      %v1404 = vrot.slane %v320, 5
      %v1405 = vsel %vm1345, %v1403, %v1404
      %v1406 = vrot.slane %v1404, 4
      %v1407 = vrot.slane %v344, 5
      %v1408 = vsel %vm1345, %v1406, %v1407
      %v1409 = vrot.slane %v1304, 5
      %v1410 = vrot.slane %v1409, 4
      %v1411 = vrot.slane %v322, 5
      %v1412 = vsel %vm1345, %v1410, %v1411
      %v1413 = vrot.slane %v1411, 4
      %v1414 = vrot.slane %v345, 5
      %v1415 = vsel %vm1345, %v1413, %v1414
      %v1416 = vrot.slane %v1305, 5
      %v1417 = vrot.slane %v1416, 4
      %v1418 = vrot.slane %v324, 5
      %v1419 = vsel %vm1345, %v1417, %v1418
      %v1420 = vrot.slane %v1418, 4
      %v1421 = vrot.slane %v346, 5
      %v1422 = vsel %vm1345, %v1420, %v1421
      %v1423 = vrot.slane %v1306, 5
      %v1424 = vrot.slane %v1423, 4
      %v1425 = vrot.slane %v326, 5
      %v1426 = vsel %vm1345, %v1424, %v1425
      %v1427 = vrot.slane %v1425, 4
      %v1428 = vrot.slane %v347, 5
      %v1429 = vsel %vm1345, %v1427, %v1428
      %v1430 = vrot.slane %v1307, 5
      %v1431 = vrot.slane %v1430, 4
      %v1432 = vrot.slane %v328, 5
      %v1433 = vsel %vm1345, %v1431, %v1432
      %v1434 = vrot.slane %v1432, 4
      %v1435 = vrot.slane %v348, 5
      %v1436 = vsel %vm1345, %v1434, %v1435
      %v1437 = vrot.slane %v1308, 5
      %v1438 = vrot.slane %v1437, 4
      %v1439 = vrot.slane %v330, 5
      %v1440 = vsel %vm1345, %v1438, %v1439
      %v1441 = vrot.slane %v1439, 4
      %v1442 = vrot.slane %v349, 5
      %v1443 = vsel %vm1345, %v1441, %v1442
      %v1444 = vrot.slane %v1309, 5
      %v1445 = vrot.slane %v1444, 4
      %v1446 = vrot.slane %v332, 5
      %v1447 = vsel %vm1345, %v1445, %v1446
      %v1448 = vrot.slane %v1446, 4
      %v1449 = vrot.slane %v350, 5
      %v1450 = vsel %vm1345, %v1448, %v1449
      %v1451 = vrot.slane %v1310, 5
      %v1452 = vrot.slane %v1451, 4
      %v1453 = vrot.slane %v334, 5
      %v1454 = vsel %vm1345, %v1452, %v1453
      %v1455 = vrot.slane %v1453, 4
      %v1456 = vrot.slane %v351, 5
      %v1457 = vsel %vm1345, %v1455, %v1456
      %s1458 = scalar_lea.vmem %s1, 4
      %v1459 = vld [vmem:[%s1458] sm:$0x3]
      %v1460 = vunpack.c.l.b16 %v1349
      %v1461 = vunpack.c.l.b16 %v1352
      %v1462 = vunpack.c.l.b16 %v1356
      %v1463 = vunpack.c.l.b16 %v1359
      %v1464 = vunpack.c.l.b16 %v1363
      %v1465 = vunpack.c.l.b16 %v1366
      %v1466 = vunpack.c.l.b16 %v1370
      %v1467 = vunpack.c.l.b16 %v1373
      %v1468 = vunpack.c.l.b16 %v1377
      %v1469 = vunpack.c.l.b16 %v1380
      %v1470 = vunpack.c.l.b16 %v1384
      %v1471 = vunpack.c.l.b16 %v1387
      %v1472 = vunpack.c.l.b16 %v1391
      %v1473 = vunpack.c.l.b16 %v1394
      %v1474 = vunpack.c.l.b16 %v1398
      %v1475 = vunpack.c.l.b16 %v1401
      %v1476 = vunpack.c.l.b16 %v1405
      %v1477 = vunpack.c.l.b16 %v1408
      %v1478 = vunpack.c.l.b16 %v1412
      %v1479 = vunpack.c.l.b16 %v1415
      %v1480 = vunpack.c.l.b16 %v1419
      %v1481 = vunpack.c.l.b16 %v1422
      %v1482 = vunpack.c.l.b16 %v1426
      %v1483 = vunpack.c.l.b16 %v1429
      %v1484 = vunpack.c.l.b16 %v1433
      %v1485 = vunpack.c.l.b16 %v1436
      %v1486 = vunpack.c.l.b16 %v1440
      %v1487 = vunpack.c.l.b16 %v1443
      %v1488 = vunpack.c.l.b16 %v1447
      %v1489 = vunpack.c.l.b16 %v1450
      %v1490 = vunpack.c.l.b16 %v1454
      %v1491 = vunpack.c.l.b16 %v1457
      %v1492 = vpack.c.b16 %v1461, %v1460
      %v1493 = vpack.c.b16 %v1463, %v1462
      %v1494 = vpack.c.b16 %v1465, %v1464
      %v1495 = vpack.c.b16 %v1467, %v1466
      %v1496 = vpack.c.b16 %v1469, %v1468
      %v1497 = vpack.c.b16 %v1471, %v1470
      %v1498 = vpack.c.b16 %v1473, %v1472
      %v1499 = vpack.c.b16 %v1475, %v1474
      %v1500 = vpack.c.b16 %v1477, %v1476
      %v1501 = vpack.c.b16 %v1479, %v1478
      %v1502 = vpack.c.b16 %v1481, %v1480
      %v1503 = vpack.c.b16 %v1483, %v1482
      %v1504 = vpack.c.b16 %v1485, %v1484
      %v1505 = vpack.c.b16 %v1487, %v1486
      %v1506 = vpack.c.b16 %v1489, %v1488
      %v1507 = vpack.c.b16 %v1491, %v1490
      %v1509 = vsel %vm789, %v1492, 0
      %v1512 = vsel %vm789, %v1493, 0
      %v1515 = vsel %vm789, %v1494, 0
      %v1518 = vsel %vm789, %v1495, 0
      %v1521 = vsel %vm789, %v1496, 0
      %v1524 = vsel %vm789, %v1497, 0
      %v1527 = vsel %vm789, %v1498, 0
      %v1530 = vsel %vm789, %v1499, 0
      %v1533 = vsel %vm789, %v1500, 0
      %v1536 = vsel %vm789, %v1501, 0
      %v1539 = vsel %vm789, %v1502, 0
      %v1542 = vsel %vm789, %v1503, 0
      %v1545 = vsel %vm789, %v1504, 0
      %v1548 = vsel %vm789, %v1505, 0
      %v1551 = vsel %vm789, %v1506, 0
      %v1554 = vsel %vm789, %v1507, 0
      %v1557 = vsel %vm838, %v1459, 0
      %1559 = vmatprep.subr.bf16.mxu0 0
      %1560 = vmatpush1.bf16.msra.mxu0 %v1557
      %1561 = vmatprep.subr.bf16.mxu0 0
      %1562 = vmatpush1.bf16.msra.mxu0 0
      %1563 = vmatprep.subr.bf16.mxu0 0
      %1564 = vmatpush1.bf16.msra.mxu0 0
      %1565 = vmatprep.subr.bf16.mxu0 0
      %1566 = vmatpush1.bf16.msra.mxu0 0
      %1567 = vmatprep.subr.bf16.mxu0 0
      %1568 = vmatpush1.bf16.msra.mxu0 0
      %1569 = vmatprep.subr.bf16.mxu0 0
      %1570 = vmatpush1.bf16.msra.mxu0 0
      %1571 = vmatprep.subr.bf16.mxu0 0
      %1572 = vmatpush1.bf16.msra.mxu0 0
      %1573 = vmatprep.subr.bf16.mxu0 0
      %1574 = vmatpush1.bf16.msra.mxu0 0
      %1575 = vmatprep.subr.bf16.mxu0 0
      %1576 = vmatpush1.bf16.msra.mxu0 0
      %1577 = vmatprep.subr.bf16.mxu0 0
      %1578 = vmatpush1.bf16.msra.mxu0 0
      %1579 = vmatprep.subr.bf16.mxu0 0
      %1580 = vmatpush1.bf16.msra.mxu0 0
      %1581 = vmatprep.subr.bf16.mxu0 0
      %1582 = vmatpush1.bf16.msra.mxu0 0
      %1583 = vmatprep.subr.bf16.mxu0 0
      %1584 = vmatpush1.bf16.msra.mxu0 0
      %1585 = vmatprep.subr.bf16.mxu0 0
      %1586 = vmatpush1.bf16.msra.mxu0 0
      %1587 = vmatprep.subr.bf16.mxu0 0
      %1588 = vmatpush1.bf16.msra.mxu0 0
      %1589 = vmatprep.subr.bf16.mxu0 0
      %1590 = vmatpush1.bf16.msra.mxu0 0
      %1591 = vmatprep.mubr.bf16.mxu0 0
      %1592 = vmatmul.mubr.bf16.gmra.mrb[0].mxu0 %v1509
      %v1593 = vpop.f32.mrb[0].mxu0
      %v1594 = vadd.f32 0.0, %v1593
      %v1595 = vpop.f32.mrb[0].mxu0
      %v1596 = vpop.f32.mrb[0].mxu0
      %v1597 = vadd.f32 0.0, %v1596
      %v1598 = vpop.f32.mrb[0].mxu0
      %1599 = vmatprep.mubr.bf16.mxu0 0
      %1600 = vmatmul.mubr.bf16.gmra.mrb[0].mxu0 %v1512
      %v1601 = vpop.f32.mrb[0].mxu0
      %v1602 = vadd.f32 0.0, %v1601
      %v1603 = vpop.f32.mrb[0].mxu0
      %v1604 = vpop.f32.mrb[0].mxu0
      %v1605 = vadd.f32 0.0, %v1604
      %v1606 = vpop.f32.mrb[0].mxu0
      %1607 = vmatprep.mubr.bf16.mxu0 0
      %1608 = vmatmul.mubr.bf16.gmra.mrb[0].mxu0 %v1515
      %v1609 = vpop.f32.mrb[0].mxu0
      %v1610 = vadd.f32 0.0, %v1609
      %v1611 = vpop.f32.mrb[0].mxu0
      %v1612 = vpop.f32.mrb[0].mxu0
      %v1613 = vadd.f32 0.0, %v1612
      %v1614 = vpop.f32.mrb[0].mxu0
      %1615 = vmatprep.mubr.bf16.mxu0 0
      %1616 = vmatmul.mubr.bf16.gmra.mrb[0].mxu0 %v1518
      %v1617 = vpop.f32.mrb[0].mxu0
      %v1618 = vadd.f32 0.0, %v1617
      %v1619 = vpop.f32.mrb[0].mxu0
      %v1620 = vpop.f32.mrb[0].mxu0
      %v1621 = vadd.f32 0.0, %v1620
      %v1622 = vpop.f32.mrb[0].mxu0
      %1623 = vmatprep.mubr.bf16.mxu0 0
      %1624 = vmatmul.mubr.bf16.gmra.mrb[0].mxu0 %v1521
      %v1625 = vpop.f32.mrb[0].mxu0
      %v1626 = vadd.f32 0.0, %v1625
      %v1627 = vpop.f32.mrb[0].mxu0
      %v1628 = vpop.f32.mrb[0].mxu0
      %v1629 = vadd.f32 0.0, %v1628
      %v1630 = vpop.f32.mrb[0].mxu0
      %1631 = vmatprep.mubr.bf16.mxu0 0
      %1632 = vmatmul.mubr.bf16.gmra.mrb[0].mxu0 %v1524
      %v1633 = vpop.f32.mrb[0].mxu0
      %v1634 = vadd.f32 0.0, %v1633
      %v1635 = vpop.f32.mrb[0].mxu0
      %v1636 = vpop.f32.mrb[0].mxu0
      %v1637 = vadd.f32 0.0, %v1636
      %v1638 = vpop.f32.mrb[0].mxu0
      %1639 = vmatprep.mubr.bf16.mxu0 0
      %1640 = vmatmul.mubr.bf16.gmra.mrb[0].mxu0 %v1527
      %v1641 = vpop.f32.mrb[0].mxu0
      %v1642 = vadd.f32 0.0, %v1641
      %v1643 = vpop.f32.mrb[0].mxu0
      %v1644 = vpop.f32.mrb[0].mxu0
      %v1645 = vadd.f32 0.0, %v1644
      %v1646 = vpop.f32.mrb[0].mxu0
      %1647 = vmatprep.mubr.bf16.mxu0 0
      %1648 = vmatmul.mubr.bf16.gmra.mrb[0].mxu0 %v1530
      %v1649 = vpop.f32.mrb[0].mxu0
      %v1650 = vadd.f32 0.0, %v1649
      %v1651 = vpop.f32.mrb[0].mxu0
      %v1652 = vpop.f32.mrb[0].mxu0
      %v1653 = vadd.f32 0.0, %v1652
      %v1654 = vpop.f32.mrb[0].mxu0
      %1655 = vmatprep.mubr.bf16.mxu0 0
      %1656 = vmatmul.mubr.bf16.gmra.mrb[0].mxu0 %v1533
      %v1657 = vpop.f32.mrb[0].mxu0
      %v1658 = vadd.f32 0.0, %v1657
      %v1659 = vpop.f32.mrb[0].mxu0
      %v1660 = vpop.f32.mrb[0].mxu0
      %v1661 = vadd.f32 0.0, %v1660
      %v1662 = vpop.f32.mrb[0].mxu0
      %1663 = vmatprep.mubr.bf16.mxu0 0
      %1664 = vmatmul.mubr.bf16.gmra.mrb[0].mxu0 %v1536
      %v1665 = vpop.f32.mrb[0].mxu0
      %v1666 = vadd.f32 0.0, %v1665
      %v1667 = vpop.f32.mrb[0].mxu0
      %v1668 = vpop.f32.mrb[0].mxu0
      %v1669 = vadd.f32 0.0, %v1668
      %v1670 = vpop.f32.mrb[0].mxu0
      %1671 = vmatprep.mubr.bf16.mxu0 0
      %1672 = vmatmul.mubr.bf16.gmra.mrb[0].mxu0 %v1539
      %v1673 = vpop.f32.mrb[0].mxu0
      %v1674 = vadd.f32 0.0, %v1673
      %v1675 = vpop.f32.mrb[0].mxu0
      %v1676 = vpop.f32.mrb[0].mxu0
      %v1677 = vadd.f32 0.0, %v1676
      %v1678 = vpop.f32.mrb[0].mxu0
      %1679 = vmatprep.mubr.bf16.mxu0 0
      %1680 = vmatmul.mubr.bf16.gmra.mrb[0].mxu0 %v1542
      %v1681 = vpop.f32.mrb[0].mxu0
      %v1682 = vadd.f32 0.0, %v1681
      %v1683 = vpop.f32.mrb[0].mxu0
      %v1684 = vpop.f32.mrb[0].mxu0
      %v1685 = vadd.f32 0.0, %v1684
      %v1686 = vpop.f32.mrb[0].mxu0
      %1687 = vmatprep.mubr.bf16.mxu0 0
      %1688 = vmatmul.mubr.bf16.gmra.mrb[0].mxu0 %v1545
      %v1689 = vpop.f32.mrb[0].mxu0
      %v1690 = vadd.f32 0.0, %v1689
      %v1691 = vpop.f32.mrb[0].mxu0
      %v1692 = vpop.f32.mrb[0].mxu0
      %v1693 = vadd.f32 0.0, %v1692
      %v1694 = vpop.f32.mrb[0].mxu0
      %1695 = vmatprep.mubr.bf16.mxu0 0
      %1696 = vmatmul.mubr.bf16.gmra.mrb[0].mxu0 %v1548
      %v1697 = vpop.f32.mrb[0].mxu0
      %v1698 = vadd.f32 0.0, %v1697
      %v1699 = vpop.f32.mrb[0].mxu0
      %v1700 = vpop.f32.mrb[0].mxu0
      %v1701 = vadd.f32 0.0, %v1700
      %v1702 = vpop.f32.mrb[0].mxu0
      %1703 = vmatprep.mubr.bf16.mxu0 0
      %1704 = vmatmul.mubr.bf16.gmra.mrb[0].mxu0 %v1551
      %v1705 = vpop.f32.mrb[0].mxu0
      %v1706 = vadd.f32 0.0, %v1705
      %v1707 = vpop.f32.mrb[0].mxu0
      %v1708 = vpop.f32.mrb[0].mxu0
      %v1709 = vadd.f32 0.0, %v1708
      %v1710 = vpop.f32.mrb[0].mxu0
      %1711 = vmatprep.mubr.bf16.mxu0 0
      %1712 = vmatmul.mubr.bf16.gmra.mrb[0].mxu0 %v1554
      %v1713 = vpop.f32.mrb[0].mxu0
      %v1714 = vadd.f32 0.0, %v1713
      %v1715 = vpop.f32.mrb[0].mxu0
      %v1716 = vpop.f32.mrb[0].mxu0
      %v1717 = vadd.f32 0.0, %v1716
      %v1718 = vpop.f32.mrb[0].mxu0
      %1719 = vdwg.mxu0
      %v1720 = vadd.f32 %v1169, %v1594
      %v1721 = vadd.f32 %v1172, %v1597
      %v1722 = vadd.f32 %v1177, %v1602
      %v1723 = vadd.f32 %v1180, %v1605
      %v1724 = vadd.f32 %v1185, %v1610
      %v1725 = vadd.f32 %v1188, %v1613
      %v1726 = vadd.f32 %v1193, %v1618
      %v1727 = vadd.f32 %v1196, %v1621
      %v1728 = vadd.f32 %v1201, %v1626
      %v1729 = vadd.f32 %v1204, %v1629
      %v1730 = vadd.f32 %v1209, %v1634
      %v1731 = vadd.f32 %v1212, %v1637
      %v1732 = vadd.f32 %v1217, %v1642
      %v1733 = vadd.f32 %v1220, %v1645
      %v1734 = vadd.f32 %v1225, %v1650
      %v1735 = vadd.f32 %v1228, %v1653
      %v1736 = vadd.f32 %v1233, %v1658
      %v1737 = vadd.f32 %v1236, %v1661
      %v1738 = vadd.f32 %v1241, %v1666
      %v1739 = vadd.f32 %v1244, %v1669
      %v1740 = vadd.f32 %v1249, %v1674
      %v1741 = vadd.f32 %v1252, %v1677
      %v1742 = vadd.f32 %v1257, %v1682
      %v1743 = vadd.f32 %v1260, %v1685
      %v1744 = vadd.f32 %v1265, %v1690
      %v1745 = vadd.f32 %v1268, %v1693
      %v1746 = vadd.f32 %v1273, %v1698
      %v1747 = vadd.f32 %v1276, %v1701
      %v1748 = vadd.f32 %v1281, %v1706
      %v1749 = vadd.f32 %v1284, %v1709
      %v1750 = vadd.f32 %v1289, %v1714
      %v1751 = vadd.f32 %v1292, %v1717
      %s1752 = scalar_lea.vmem %s298, 12
      %v1753 = vld [vmem:[%s1752] sm:$0xf]
      %v1754 = vld [vmem:[%s1752 + $0x4] sm:$0xf]
      %v1755 = vld [vmem:[%s1752 + $0xc] sm:$0xf]
      %v1756 = vld [vmem:[%s1752 + $0x10] sm:$0xf]
      %v1757 = vld [vmem:[%s1752 + $0x18] sm:$0xf]
      %v1758 = vld [vmem:[%s1752 + $0x1c] sm:$0xf]
      %v1759 = vld [vmem:[%s1752 + $0x24] sm:$0xf]
      %v1760 = vld [vmem:[%s1752 + $0x28] sm:$0xf]
      %v1761 = vld [vmem:[%s1752 + $0x30] sm:$0xf]
      %v1762 = vld [vmem:[%s1752 + $0x34] sm:$0xf]
      %v1763 = vld [vmem:[%s1752 + $0x3c] sm:$0xf]
      %v1764 = vld [vmem:[%s1752 + $0x40] sm:$0xf]
      %v1765 = vld [vmem:[%s1752 + $0x48] sm:$0xf]
      %v1766 = vld [vmem:[%s1752 + $0x4c] sm:$0xf]
      %v1767 = vld [vmem:[%s1752 + $0x54] sm:$0xf]
      %v1768 = vld [vmem:[%s1752 + $0x58] sm:$0xf]
      %v1769 = vld [vmem:[%s1752 + $0x60] sm:$0xf]
      %v1770 = vld [vmem:[%s1752 + $0x64] sm:$0xf]
      %v1771 = vld [vmem:[%s1752 + $0x6c] sm:$0xf]
      %v1772 = vld [vmem:[%s1752 + $0x70] sm:$0xf]
      %v1773 = vld [vmem:[%s1752 + $0x78] sm:$0xf]
      %v1774 = vld [vmem:[%s1752 + $0x7c] sm:$0xf]
      %v1775 = vld [vmem:[%s1752 + $0x84] sm:$0xf]
      %v1776 = vld [vmem:[%s1752 + $0x88] sm:$0xf]
      %v1777 = vld [vmem:[%s1752 + $0x90] sm:$0xf]
      %v1778 = vld [vmem:[%s1752 + $0x94] sm:$0xf]
      %v1779 = vld [vmem:[%s1752 + $0x9c] sm:$0xf]
      %v1780 = vld [vmem:[%s1752 + $0xa0] sm:$0xf]
      %v1781 = vld [vmem:[%s1752 + $0xa8] sm:$0xf]
      %v1782 = vld [vmem:[%s1752 + $0xac] sm:$0xf]
      %v1783 = vld [vmem:[%s1752 + $0xb4] sm:$0xf]
      %v1784 = vld [vmem:[%s1752 + $0xb8] sm:$0xf]
      %s1785 = scalar_lea.vmem %s1, 6
      %v1786 = vld [vmem:[%s1785] sm:$0x3]
      %v1819 = vunpack.c.l.b16 %v1753
      %v1820 = vunpack.c.l.b16 %v1754
      %v1821 = vunpack.c.l.b16 %v1755
      %v1822 = vunpack.c.l.b16 %v1756
      %v1823 = vunpack.c.l.b16 %v1757
      %v1824 = vunpack.c.l.b16 %v1758
      %v1825 = vunpack.c.l.b16 %v1759
      %v1826 = vunpack.c.l.b16 %v1760
      %v1827 = vunpack.c.l.b16 %v1761
      %v1828 = vunpack.c.l.b16 %v1762
      %v1829 = vunpack.c.l.b16 %v1763
      %v1830 = vunpack.c.l.b16 %v1764
      %v1831 = vunpack.c.l.b16 %v1765
      %v1832 = vunpack.c.l.b16 %v1766
      %v1833 = vunpack.c.l.b16 %v1767
      %v1834 = vunpack.c.l.b16 %v1768
      %v1835 = vunpack.c.l.b16 %v1769
      %v1836 = vunpack.c.l.b16 %v1770
      %v1837 = vunpack.c.l.b16 %v1771
      %v1838 = vunpack.c.l.b16 %v1772
      %v1839 = vunpack.c.l.b16 %v1773
      %v1840 = vunpack.c.l.b16 %v1774
      %v1841 = vunpack.c.l.b16 %v1775
      %v1842 = vunpack.c.l.b16 %v1776
      %v1843 = vunpack.c.l.b16 %v1777
      %v1844 = vunpack.c.l.b16 %v1778
      %v1845 = vunpack.c.l.b16 %v1779
      %v1846 = vunpack.c.l.b16 %v1780
      %v1847 = vunpack.c.l.b16 %v1781
      %v1848 = vunpack.c.l.b16 %v1782
      %v1849 = vunpack.c.l.b16 %v1783
      %v1850 = vunpack.c.l.b16 %v1784
      %v1851 = vpack.c.b16 %v1820, %v1819
      %v1852 = vpack.c.b16 %v1822, %v1821
      %v1853 = vpack.c.b16 %v1824, %v1823
      %v1854 = vpack.c.b16 %v1826, %v1825
      %v1855 = vpack.c.b16 %v1828, %v1827
      %v1856 = vpack.c.b16 %v1830, %v1829
      %v1857 = vpack.c.b16 %v1832, %v1831
      %v1858 = vpack.c.b16 %v1834, %v1833
      %v1859 = vpack.c.b16 %v1836, %v1835
      %v1860 = vpack.c.b16 %v1838, %v1837
      %v1861 = vpack.c.b16 %v1840, %v1839
      %v1862 = vpack.c.b16 %v1842, %v1841
      %v1863 = vpack.c.b16 %v1844, %v1843
      %v1864 = vpack.c.b16 %v1846, %v1845
      %v1865 = vpack.c.b16 %v1848, %v1847
      %v1866 = vpack.c.b16 %v1850, %v1849
      %v1868 = vsel %vm789, %v1851, 0
      %v1871 = vsel %vm789, %v1852, 0
      %v1874 = vsel %vm789, %v1853, 0
      %v1877 = vsel %vm789, %v1854, 0
      %v1880 = vsel %vm789, %v1855, 0
      %v1883 = vsel %vm789, %v1856, 0
      %v1886 = vsel %vm789, %v1857, 0
      %v1889 = vsel %vm789, %v1858, 0
      %v1892 = vsel %vm789, %v1859, 0
      %v1895 = vsel %vm789, %v1860, 0
      %v1898 = vsel %vm789, %v1861, 0
      %v1901 = vsel %vm789, %v1862, 0
      %v1904 = vsel %vm789, %v1863, 0
      %v1907 = vsel %vm789, %v1864, 0
      %v1910 = vsel %vm789, %v1865, 0
      %v1913 = vsel %vm789, %v1866, 0
      %v1916 = vsel %vm838, %v1786, 0
      %1918 = vmatprep.subr.bf16.mxu0 0
      %1919 = vmatpush1.bf16.msra.mxu0 %v1916
      %1920 = vmatprep.subr.bf16.mxu0 0
      %1921 = vmatpush1.bf16.msra.mxu0 0
      %1922 = vmatprep.subr.bf16.mxu0 0
      %1923 = vmatpush1.bf16.msra.mxu0 0
      %1924 = vmatprep.subr.bf16.mxu0 0
      %1925 = vmatpush1.bf16.msra.mxu0 0
      %1926 = vmatprep.subr.bf16.mxu0 0
      %1927 = vmatpush1.bf16.msra.mxu0 0
      %1928 = vmatprep.subr.bf16.mxu0 0
      %1929 = vmatpush1.bf16.msra.mxu0 0
      %1930 = vmatprep.subr.bf16.mxu0 0
      %1931 = vmatpush1.bf16.msra.mxu0 0
      %1932 = vmatprep.subr.bf16.mxu0 0
      %1933 = vmatpush1.bf16.msra.mxu0 0
      %1934 = vmatprep.subr.bf16.mxu0 0
      %1935 = vmatpush1.bf16.msra.mxu0 0
      %1936 = vmatprep.subr.bf16.mxu0 0
      %1937 = vmatpush1.bf16.msra.mxu0 0
      %1938 = vmatprep.subr.bf16.mxu0 0
      %1939 = vmatpush1.bf16.msra.mxu0 0
      %1940 = vmatprep.subr.bf16.mxu0 0
      %1941 = vmatpush1.bf16.msra.mxu0 0
      %1942 = vmatprep.subr.bf16.mxu0 0
      %1943 = vmatpush1.bf16.msra.mxu0 0
      %1944 = vmatprep.subr.bf16.mxu0 0
      %1945 = vmatpush1.bf16.msra.mxu0 0
      %1946 = vmatprep.subr.bf16.mxu0 0
      %1947 = vmatpush1.bf16.msra.mxu0 0
      %1948 = vmatprep.subr.bf16.mxu0 0
      %1949 = vmatpush1.bf16.msra.mxu0 0
      %1950 = vmatprep.mubr.bf16.mxu0 0
      %1951 = vmatmul.mubr.bf16.gmra.mrb[0].mxu0 %v1868
      %v1952 = vpop.f32.mrb[0].mxu0
      %v1953 = vadd.f32 0.0, %v1952
      %v1954 = vpop.f32.mrb[0].mxu0
      %v1955 = vpop.f32.mrb[0].mxu0
      %v1956 = vadd.f32 0.0, %v1955
      %v1957 = vpop.f32.mrb[0].mxu0
      %1958 = vmatprep.mubr.bf16.mxu0 0
      %1959 = vmatmul.mubr.bf16.gmra.mrb[0].mxu0 %v1871
      %v1960 = vpop.f32.mrb[0].mxu0
      %v1961 = vadd.f32 0.0, %v1960
      %v1962 = vpop.f32.mrb[0].mxu0
      %v1963 = vpop.f32.mrb[0].mxu0
      %v1964 = vadd.f32 0.0, %v1963
      %v1965 = vpop.f32.mrb[0].mxu0
      %1966 = vmatprep.mubr.bf16.mxu0 0
      %1967 = vmatmul.mubr.bf16.gmra.mrb[0].mxu0 %v1874
      %v1968 = vpop.f32.mrb[0].mxu0
      %v1969 = vadd.f32 0.0, %v1968
      %v1970 = vpop.f32.mrb[0].mxu0
      %v1971 = vpop.f32.mrb[0].mxu0
      %v1972 = vadd.f32 0.0, %v1971
      %v1973 = vpop.f32.mrb[0].mxu0
      %1974 = vmatprep.mubr.bf16.mxu0 0
      %1975 = vmatmul.mubr.bf16.gmra.mrb[0].mxu0 %v1877
      %v1976 = vpop.f32.mrb[0].mxu0
      %v1977 = vadd.f32 0.0, %v1976
      %v1978 = vpop.f32.mrb[0].mxu0
      %v1979 = vpop.f32.mrb[0].mxu0
      %v1980 = vadd.f32 0.0, %v1979
      %v1981 = vpop.f32.mrb[0].mxu0
      %1982 = vmatprep.mubr.bf16.mxu0 0
      %1983 = vmatmul.mubr.bf16.gmra.mrb[0].mxu0 %v1880
      %v1984 = vpop.f32.mrb[0].mxu0
      %v1985 = vadd.f32 0.0, %v1984
      %v1986 = vpop.f32.mrb[0].mxu0
      %v1987 = vpop.f32.mrb[0].mxu0
      %v1988 = vadd.f32 0.0, %v1987
      %v1989 = vpop.f32.mrb[0].mxu0
      %1990 = vmatprep.mubr.bf16.mxu0 0
      %1991 = vmatmul.mubr.bf16.gmra.mrb[0].mxu0 %v1883
      %v1992 = vpop.f32.mrb[0].mxu0
      %v1993 = vadd.f32 0.0, %v1992
      %v1994 = vpop.f32.mrb[0].mxu0
      %v1995 = vpop.f32.mrb[0].mxu0
      %v1996 = vadd.f32 0.0, %v1995
      %v1997 = vpop.f32.mrb[0].mxu0
      %1998 = vmatprep.mubr.bf16.mxu0 0
      %1999 = vmatmul.mubr.bf16.gmra.mrb[0].mxu0 %v1886
      %v2000 = vpop.f32.mrb[0].mxu0
      %v2001 = vadd.f32 0.0, %v2000
      %v2002 = vpop.f32.mrb[0].mxu0
      %v2003 = vpop.f32.mrb[0].mxu0
      %v2004 = vadd.f32 0.0, %v2003
      %v2005 = vpop.f32.mrb[0].mxu0
      %2006 = vmatprep.mubr.bf16.mxu0 0
      %2007 = vmatmul.mubr.bf16.gmra.mrb[0].mxu0 %v1889
      %v2008 = vpop.f32.mrb[0].mxu0
      %v2009 = vadd.f32 0.0, %v2008
      %v2010 = vpop.f32.mrb[0].mxu0
      %v2011 = vpop.f32.mrb[0].mxu0
      %v2012 = vadd.f32 0.0, %v2011
      %v2013 = vpop.f32.mrb[0].mxu0
      %2014 = vmatprep.mubr.bf16.mxu0 0
      %2015 = vmatmul.mubr.bf16.gmra.mrb[0].mxu0 %v1892
      %v2016 = vpop.f32.mrb[0].mxu0
      %v2017 = vadd.f32 0.0, %v2016
      %v2018 = vpop.f32.mrb[0].mxu0
      %v2019 = vpop.f32.mrb[0].mxu0
      %v2020 = vadd.f32 0.0, %v2019
      %v2021 = vpop.f32.mrb[0].mxu0
      %2022 = vmatprep.mubr.bf16.mxu0 0
      %2023 = vmatmul.mubr.bf16.gmra.mrb[0].mxu0 %v1895
      %v2024 = vpop.f32.mrb[0].mxu0
      %v2025 = vadd.f32 0.0, %v2024
      %v2026 = vpop.f32.mrb[0].mxu0
      %v2027 = vpop.f32.mrb[0].mxu0
      %v2028 = vadd.f32 0.0, %v2027
      %v2029 = vpop.f32.mrb[0].mxu0
      %2030 = vmatprep.mubr.bf16.mxu0 0
      %2031 = vmatmul.mubr.bf16.gmra.mrb[0].mxu0 %v1898
      %v2032 = vpop.f32.mrb[0].mxu0
      %v2033 = vadd.f32 0.0, %v2032
      %v2034 = vpop.f32.mrb[0].mxu0
      %v2035 = vpop.f32.mrb[0].mxu0
      %v2036 = vadd.f32 0.0, %v2035
      %v2037 = vpop.f32.mrb[0].mxu0
      %2038 = vmatprep.mubr.bf16.mxu0 0
      %2039 = vmatmul.mubr.bf16.gmra.mrb[0].mxu0 %v1901
      %v2040 = vpop.f32.mrb[0].mxu0
      %v2041 = vadd.f32 0.0, %v2040
      %v2042 = vpop.f32.mrb[0].mxu0
      %v2043 = vpop.f32.mrb[0].mxu0
      %v2044 = vadd.f32 0.0, %v2043
      %v2045 = vpop.f32.mrb[0].mxu0
      %2046 = vmatprep.mubr.bf16.mxu0 0
      %2047 = vmatmul.mubr.bf16.gmra.mrb[0].mxu0 %v1904
      %v2048 = vpop.f32.mrb[0].mxu0
      %v2049 = vadd.f32 0.0, %v2048
      %v2050 = vpop.f32.mrb[0].mxu0
      %v2051 = vpop.f32.mrb[0].mxu0
      %v2052 = vadd.f32 0.0, %v2051
      %v2053 = vpop.f32.mrb[0].mxu0
      %2054 = vmatprep.mubr.bf16.mxu0 0
      %2055 = vmatmul.mubr.bf16.gmra.mrb[0].mxu0 %v1907
      %v2056 = vpop.f32.mrb[0].mxu0
      %v2057 = vadd.f32 0.0, %v2056
      %v2058 = vpop.f32.mrb[0].mxu0
      %v2059 = vpop.f32.mrb[0].mxu0
      %v2060 = vadd.f32 0.0, %v2059
      %v2061 = vpop.f32.mrb[0].mxu0
      %2062 = vmatprep.mubr.bf16.mxu0 0
      %2063 = vmatmul.mubr.bf16.gmra.mrb[0].mxu0 %v1910
      %v2064 = vpop.f32.mrb[0].mxu0
      %v2065 = vadd.f32 0.0, %v2064
      %v2066 = vpop.f32.mrb[0].mxu0
      %v2067 = vpop.f32.mrb[0].mxu0
      %v2068 = vadd.f32 0.0, %v2067
      %v2069 = vpop.f32.mrb[0].mxu0
      %2070 = vmatprep.mubr.bf16.mxu0 0
      %2071 = vmatmul.mubr.bf16.gmra.mrb[0].mxu0 %v1913
      %v2072 = vpop.f32.mrb[0].mxu0
      %v2073 = vadd.f32 0.0, %v2072
      %v2074 = vpop.f32.mrb[0].mxu0
      %v2075 = vpop.f32.mrb[0].mxu0
      %v2076 = vadd.f32 0.0, %v2075
      %v2077 = vpop.f32.mrb[0].mxu0
      %2078 = vdwg.mxu0
      %v2079 = vadd.f32 %v1720, %v1953
      %v2080 = vadd.f32 %v1721, %v1956
      %v2081 = vadd.f32 %v1722, %v1961
      %v2082 = vadd.f32 %v1723, %v1964
      %v2083 = vadd.f32 %v1724, %v1969
      %v2084 = vadd.f32 %v1725, %v1972
      %v2085 = vadd.f32 %v1726, %v1977
      %v2086 = vadd.f32 %v1727, %v1980
      %v2087 = vadd.f32 %v1728, %v1985
      %v2088 = vadd.f32 %v1729, %v1988
      %v2089 = vadd.f32 %v1730, %v1993
      %v2090 = vadd.f32 %v1731, %v1996
      %v2091 = vadd.f32 %v1732, %v2001
      %v2092 = vadd.f32 %v1733, %v2004
      %v2093 = vadd.f32 %v1734, %v2009
      %v2094 = vadd.f32 %v1735, %v2012
      %v2095 = vadd.f32 %v1736, %v2017
      %v2096 = vadd.f32 %v1737, %v2020
      %v2097 = vadd.f32 %v1738, %v2025
      %v2098 = vadd.f32 %v1739, %v2028
      %v2099 = vadd.f32 %v1740, %v2033
      %v2100 = vadd.f32 %v1741, %v2036
      %v2101 = vadd.f32 %v1742, %v2041
      %v2102 = vadd.f32 %v1743, %v2044
      %v2103 = vadd.f32 %v1744, %v2049
      %v2104 = vadd.f32 %v1745, %v2052
      %v2105 = vadd.f32 %v1746, %v2057
      %v2106 = vadd.f32 %v1747, %v2060
      %v2107 = vadd.f32 %v1748, %v2065
      %v2108 = vadd.f32 %v1749, %v2068
      %v2109 = vadd.f32 %v1750, %v2073
      %v2110 = vadd.f32 %v1751, %v2076
      %v2111 = vld [vmem:[%s1752] sm:$0xf]
      %v2112 = vld [vmem:[%s1752 + $0x4] sm:$0xf]
      %v2113 = vld [vmem:[%s1752 + $0x8] sm:$0x1]
      %v2114 = vld [vmem:[%s1752 + $0xc] sm:$0xf]
      %v2115 = vld [vmem:[%s1752 + $0x10] sm:$0xf]
      %v2116 = vld [vmem:[%s1752 + $0x14] sm:$0x1]
      %v2117 = vld [vmem:[%s1752 + $0x18] sm:$0xf]
      %v2118 = vld [vmem:[%s1752 + $0x1c] sm:$0xf]
      %v2119 = vld [vmem:[%s1752 + $0x20] sm:$0x1]
      %v2120 = vld [vmem:[%s1752 + $0x24] sm:$0xf]
      %v2121 = vld [vmem:[%s1752 + $0x28] sm:$0xf]
      %v2122 = vld [vmem:[%s1752 + $0x2c] sm:$0x1]
      %v2123 = vld [vmem:[%s1752 + $0x30] sm:$0xf]
      %v2124 = vld [vmem:[%s1752 + $0x34] sm:$0xf]
      %v2125 = vld [vmem:[%s1752 + $0x38] sm:$0x1]
      %v2126 = vld [vmem:[%s1752 + $0x3c] sm:$0xf]
      %v2127 = vld [vmem:[%s1752 + $0x40] sm:$0xf]
      %v2128 = vld [vmem:[%s1752 + $0x44] sm:$0x1]
      %v2129 = vld [vmem:[%s1752 + $0x48] sm:$0xf]
      %v2130 = vld [vmem:[%s1752 + $0x4c] sm:$0xf]
      %v2131 = vld [vmem:[%s1752 + $0x50] sm:$0x1]
      %v2132 = vld [vmem:[%s1752 + $0x54] sm:$0xf]
      %v2133 = vld [vmem:[%s1752 + $0x58] sm:$0xf]
      %v2134 = vld [vmem:[%s1752 + $0x5c] sm:$0x1]
      %v2135 = vld [vmem:[%s1752 + $0x60] sm:$0xf]
      %v2136 = vld [vmem:[%s1752 + $0x64] sm:$0xf]
      %v2137 = vld [vmem:[%s1752 + $0x68] sm:$0x1]
      %v2138 = vld [vmem:[%s1752 + $0x6c] sm:$0xf]
      %v2139 = vld [vmem:[%s1752 + $0x70] sm:$0xf]
      %v2140 = vld [vmem:[%s1752 + $0x74] sm:$0x1]
      %v2141 = vld [vmem:[%s1752 + $0x78] sm:$0xf]
      %v2142 = vld [vmem:[%s1752 + $0x7c] sm:$0xf]
      %v2143 = vld [vmem:[%s1752 + $0x80] sm:$0x1]
      %v2144 = vld [vmem:[%s1752 + $0x84] sm:$0xf]
      %v2145 = vld [vmem:[%s1752 + $0x88] sm:$0xf]
      %v2146 = vld [vmem:[%s1752 + $0x8c] sm:$0x1]
      %v2147 = vld [vmem:[%s1752 + $0x90] sm:$0xf]
      %v2148 = vld [vmem:[%s1752 + $0x94] sm:$0xf]
      %v2149 = vld [vmem:[%s1752 + $0x98] sm:$0x1]
      %v2150 = vld [vmem:[%s1752 + $0x9c] sm:$0xf]
      %v2151 = vld [vmem:[%s1752 + $0xa0] sm:$0xf]
      %v2152 = vld [vmem:[%s1752 + $0xa4] sm:$0x1]
      %v2153 = vld [vmem:[%s1752 + $0xa8] sm:$0xf]
      %v2154 = vld [vmem:[%s1752 + $0xac] sm:$0xf]
      %v2155 = vld [vmem:[%s1752 + $0xb0] sm:$0x1]
      %v2156 = vld [vmem:[%s1752 + $0xb4] sm:$0xf]
      %v2157 = vld [vmem:[%s1752 + $0xb8] sm:$0xf]
      %v2158 = vld [vmem:[%s1752 + $0xbc] sm:$0x1]
      %v2160 = vshrl.u32 %v2111, 16
      %v2162 = vrot.slane %v2160, 4
      %v2163 = vshll.u32 %v2111, 16
      %v2165 = vrot.slane %v2163, 5
      %v2166 = vor.u32 %v2162, %v2165
      %v2167 = vrot.slane %v2166, 4
      %v2169 = vshll.u32 %v2112, 16
      %v2171 = vrot.slane %v2169, 5
      %v2172 = vsel %vm354, %v2167, %v2171
      %v2173 = vshrl.u32 %v2112, 16
      %v2175 = vrot.slane %v2173, 4
      %v2176 = vor.u32 %v2175, %v2171
      %v2177 = vrot.slane %v2176, 4
      %v2179 = vshll.u32 %v2113, 16
      %v2181 = vrot.slane %v2179, 5
      %v2182 = vsel %vm354, %v2177, %v2181
      %v2184 = vshrl.u32 %v2114, 16
      %v2186 = vrot.slane %v2184, 4
      %v2187 = vshll.u32 %v2114, 16
      %v2189 = vrot.slane %v2187, 5
      %v2190 = vor.u32 %v2186, %v2189
      %v2191 = vrot.slane %v2190, 4
      %v2193 = vshll.u32 %v2115, 16
      %v2195 = vrot.slane %v2193, 5
      %v2196 = vsel %vm354, %v2191, %v2195
      %v2197 = vshrl.u32 %v2115, 16
      %v2199 = vrot.slane %v2197, 4
      %v2200 = vor.u32 %v2199, %v2195
      %v2201 = vrot.slane %v2200, 4
      %v2203 = vshll.u32 %v2116, 16
      %v2205 = vrot.slane %v2203, 5
      %v2206 = vsel %vm354, %v2201, %v2205
      %v2208 = vshrl.u32 %v2117, 16
      %v2210 = vrot.slane %v2208, 4
      %v2211 = vshll.u32 %v2117, 16
      %v2213 = vrot.slane %v2211, 5
      %v2214 = vor.u32 %v2210, %v2213
      %v2215 = vrot.slane %v2214, 4
      %v2217 = vshll.u32 %v2118, 16
      %v2219 = vrot.slane %v2217, 5
      %v2220 = vsel %vm354, %v2215, %v2219
      %v2221 = vshrl.u32 %v2118, 16
      %v2223 = vrot.slane %v2221, 4
      %v2224 = vor.u32 %v2223, %v2219
      %v2225 = vrot.slane %v2224, 4
      %v2227 = vshll.u32 %v2119, 16
      %v2229 = vrot.slane %v2227, 5
      %v2230 = vsel %vm354, %v2225, %v2229
      %v2232 = vshrl.u32 %v2120, 16
      %v2234 = vrot.slane %v2232, 4
      %v2235 = vshll.u32 %v2120, 16
      %v2237 = vrot.slane %v2235, 5
      %v2238 = vor.u32 %v2234, %v2237
      %v2239 = vrot.slane %v2238, 4
      %v2241 = vshll.u32 %v2121, 16
      %v2243 = vrot.slane %v2241, 5
      %v2244 = vsel %vm354, %v2239, %v2243
      %v2245 = vshrl.u32 %v2121, 16
      %v2247 = vrot.slane %v2245, 4
      %v2248 = vor.u32 %v2247, %v2243
      %v2249 = vrot.slane %v2248, 4
      %v2251 = vshll.u32 %v2122, 16
      %v2253 = vrot.slane %v2251, 5
      %v2254 = vsel %vm354, %v2249, %v2253
      %v2256 = vshrl.u32 %v2123, 16
      %v2258 = vrot.slane %v2256, 4
      %v2259 = vshll.u32 %v2123, 16
      %v2261 = vrot.slane %v2259, 5
      %v2262 = vor.u32 %v2258, %v2261
      %v2263 = vrot.slane %v2262, 4
      %v2265 = vshll.u32 %v2124, 16
      %v2267 = vrot.slane %v2265, 5
      %v2268 = vsel %vm354, %v2263, %v2267
      %v2269 = vshrl.u32 %v2124, 16
      %v2271 = vrot.slane %v2269, 4
      %v2272 = vor.u32 %v2271, %v2267
      %v2273 = vrot.slane %v2272, 4
      %v2275 = vshll.u32 %v2125, 16
      %v2277 = vrot.slane %v2275, 5
      %v2278 = vsel %vm354, %v2273, %v2277
      %v2280 = vshrl.u32 %v2126, 16
      %v2282 = vrot.slane %v2280, 4
      %v2283 = vshll.u32 %v2126, 16
      %v2285 = vrot.slane %v2283, 5
      %v2286 = vor.u32 %v2282, %v2285
      %v2287 = vrot.slane %v2286, 4
      %v2289 = vshll.u32 %v2127, 16
      %v2291 = vrot.slane %v2289, 5
      %v2292 = vsel %vm354, %v2287, %v2291
      %v2293 = vshrl.u32 %v2127, 16
      %v2295 = vrot.slane %v2293, 4
      %v2296 = vor.u32 %v2295, %v2291
      %v2297 = vrot.slane %v2296, 4
      %v2299 = vshll.u32 %v2128, 16
      %v2301 = vrot.slane %v2299, 5
      %v2302 = vsel %vm354, %v2297, %v2301
      %v2304 = vshrl.u32 %v2129, 16
      %v2306 = vrot.slane %v2304, 4
      %v2307 = vshll.u32 %v2129, 16
      %v2309 = vrot.slane %v2307, 5
      %v2310 = vor.u32 %v2306, %v2309
      %v2311 = vrot.slane %v2310, 4
      %v2313 = vshll.u32 %v2130, 16
      %v2315 = vrot.slane %v2313, 5
      %v2316 = vsel %vm354, %v2311, %v2315
      %v2317 = vshrl.u32 %v2130, 16
      %v2319 = vrot.slane %v2317, 4
      %v2320 = vor.u32 %v2319, %v2315
      %v2321 = vrot.slane %v2320, 4
      %v2323 = vshll.u32 %v2131, 16
      %v2325 = vrot.slane %v2323, 5
      %v2326 = vsel %vm354, %v2321, %v2325
      %v2328 = vshrl.u32 %v2132, 16
      %v2330 = vrot.slane %v2328, 4
      %v2331 = vshll.u32 %v2132, 16
      %v2333 = vrot.slane %v2331, 5
      %v2334 = vor.u32 %v2330, %v2333
      %v2335 = vrot.slane %v2334, 4
      %v2337 = vshll.u32 %v2133, 16
      %v2339 = vrot.slane %v2337, 5
      %v2340 = vsel %vm354, %v2335, %v2339
      %v2341 = vshrl.u32 %v2133, 16
      %v2343 = vrot.slane %v2341, 4
      %v2344 = vor.u32 %v2343, %v2339
      %v2345 = vrot.slane %v2344, 4
      %v2347 = vshll.u32 %v2134, 16
      %v2349 = vrot.slane %v2347, 5
      %v2350 = vsel %vm354, %v2345, %v2349
      %v2352 = vshrl.u32 %v2135, 16
      %v2354 = vrot.slane %v2352, 4
      %v2355 = vshll.u32 %v2135, 16
      %v2357 = vrot.slane %v2355, 5
      %v2358 = vor.u32 %v2354, %v2357
      %v2359 = vrot.slane %v2358, 4
      %v2361 = vshll.u32 %v2136, 16
      %v2363 = vrot.slane %v2361, 5
      %v2364 = vsel %vm354, %v2359, %v2363
      %v2365 = vshrl.u32 %v2136, 16
      %v2367 = vrot.slane %v2365, 4
      %v2368 = vor.u32 %v2367, %v2363
      %v2369 = vrot.slane %v2368, 4
      %v2371 = vshll.u32 %v2137, 16
      %v2373 = vrot.slane %v2371, 5
      %v2374 = vsel %vm354, %v2369, %v2373
      %v2376 = vshrl.u32 %v2138, 16
      %v2378 = vrot.slane %v2376, 4
      %v2379 = vshll.u32 %v2138, 16
      %v2381 = vrot.slane %v2379, 5
      %v2382 = vor.u32 %v2378, %v2381
      %v2383 = vrot.slane %v2382, 4
      %v2385 = vshll.u32 %v2139, 16
      %v2387 = vrot.slane %v2385, 5
      %v2388 = vsel %vm354, %v2383, %v2387
      %v2389 = vshrl.u32 %v2139, 16
      %v2391 = vrot.slane %v2389, 4
      %v2392 = vor.u32 %v2391, %v2387
      %v2393 = vrot.slane %v2392, 4
      %v2395 = vshll.u32 %v2140, 16
      %v2397 = vrot.slane %v2395, 5
      %v2398 = vsel %vm354, %v2393, %v2397
      %v2400 = vshrl.u32 %v2141, 16
      %v2402 = vrot.slane %v2400, 4
      %v2403 = vshll.u32 %v2141, 16
      %v2405 = vrot.slane %v2403, 5
      %v2406 = vor.u32 %v2402, %v2405
      %v2407 = vrot.slane %v2406, 4
      %v2409 = vshll.u32 %v2142, 16
      %v2411 = vrot.slane %v2409, 5
      %v2412 = vsel %vm354, %v2407, %v2411
      %v2413 = vshrl.u32 %v2142, 16
      %v2415 = vrot.slane %v2413, 4
      %v2416 = vor.u32 %v2415, %v2411
      %v2417 = vrot.slane %v2416, 4
      %v2419 = vshll.u32 %v2143, 16
      %v2421 = vrot.slane %v2419, 5
      %v2422 = vsel %vm354, %v2417, %v2421
      %v2424 = vshrl.u32 %v2144, 16
      %v2426 = vrot.slane %v2424, 4
      %v2427 = vshll.u32 %v2144, 16
      %v2429 = vrot.slane %v2427, 5
      %v2430 = vor.u32 %v2426, %v2429
      %v2431 = vrot.slane %v2430, 4
      %v2433 = vshll.u32 %v2145, 16
      %v2435 = vrot.slane %v2433, 5
      %v2436 = vsel %vm354, %v2431, %v2435
      %v2437 = vshrl.u32 %v2145, 16
      %v2439 = vrot.slane %v2437, 4
      %v2440 = vor.u32 %v2439, %v2435
      %v2441 = vrot.slane %v2440, 4
      %v2443 = vshll.u32 %v2146, 16
      %v2445 = vrot.slane %v2443, 5
      %v2446 = vsel %vm354, %v2441, %v2445
      %v2448 = vshrl.u32 %v2147, 16
      %v2450 = vrot.slane %v2448, 4
      %v2451 = vshll.u32 %v2147, 16
      %v2453 = vrot.slane %v2451, 5
      %v2454 = vor.u32 %v2450, %v2453
      %v2455 = vrot.slane %v2454, 4
      %v2457 = vshll.u32 %v2148, 16
      %v2459 = vrot.slane %v2457, 5
      %v2460 = vsel %vm354, %v2455, %v2459
      %v2461 = vshrl.u32 %v2148, 16
      %v2463 = vrot.slane %v2461, 4
      %v2464 = vor.u32 %v2463, %v2459
      %v2465 = vrot.slane %v2464, 4
      %v2467 = vshll.u32 %v2149, 16
      %v2469 = vrot.slane %v2467, 5
      %v2470 = vsel %vm354, %v2465, %v2469
      %v2472 = vshrl.u32 %v2150, 16
      %v2474 = vrot.slane %v2472, 4
      %v2475 = vshll.u32 %v2150, 16
      %v2477 = vrot.slane %v2475, 5
      %v2478 = vor.u32 %v2474, %v2477
      %v2479 = vrot.slane %v2478, 4
      %v2481 = vshll.u32 %v2151, 16
      %v2483 = vrot.slane %v2481, 5
      %v2484 = vsel %vm354, %v2479, %v2483
      %v2485 = vshrl.u32 %v2151, 16
      %v2487 = vrot.slane %v2485, 4
      %v2488 = vor.u32 %v2487, %v2483
      %v2489 = vrot.slane %v2488, 4
      %v2491 = vshll.u32 %v2152, 16
      %v2493 = vrot.slane %v2491, 5
      %v2494 = vsel %vm354, %v2489, %v2493
      %v2496 = vshrl.u32 %v2153, 16
      %v2498 = vrot.slane %v2496, 4
      %v2499 = vshll.u32 %v2153, 16
      %v2501 = vrot.slane %v2499, 5
      %v2502 = vor.u32 %v2498, %v2501
      %v2503 = vrot.slane %v2502, 4
      %v2505 = vshll.u32 %v2154, 16
      %v2507 = vrot.slane %v2505, 5
      %v2508 = vsel %vm354, %v2503, %v2507
      %v2509 = vshrl.u32 %v2154, 16
      %v2511 = vrot.slane %v2509, 4
      %v2512 = vor.u32 %v2511, %v2507
      %v2513 = vrot.slane %v2512, 4
      %v2515 = vshll.u32 %v2155, 16
      %v2517 = vrot.slane %v2515, 5
      %v2518 = vsel %vm354, %v2513, %v2517
      %v2520 = vshrl.u32 %v2156, 16
      %v2522 = vrot.slane %v2520, 4
      %v2523 = vshll.u32 %v2156, 16
      %v2525 = vrot.slane %v2523, 5
      %v2526 = vor.u32 %v2522, %v2525
      %v2527 = vrot.slane %v2526, 4
      %v2529 = vshll.u32 %v2157, 16
      %v2531 = vrot.slane %v2529, 5
      %v2532 = vsel %vm354, %v2527, %v2531
      %v2533 = vshrl.u32 %v2157, 16
      %v2535 = vrot.slane %v2533, 4
      %v2536 = vor.u32 %v2535, %v2531
      %v2537 = vrot.slane %v2536, 4
      %v2539 = vshll.u32 %v2158, 16
      %v2541 = vrot.slane %v2539, 5
      %v2542 = vsel %vm354, %v2537, %v2541
      %s2543 = scalar_lea.vmem %s1, 8
      %v2544 = vld [vmem:[%s2543] sm:$0x3]
      %v2545 = vunpack.c.l.b16 %v2172
      %v2546 = vunpack.c.l.b16 %v2182
      %v2547 = vunpack.c.l.b16 %v2196
      %v2548 = vunpack.c.l.b16 %v2206
      %v2549 = vunpack.c.l.b16 %v2220
      %v2550 = vunpack.c.l.b16 %v2230
      %v2551 = vunpack.c.l.b16 %v2244
      %v2552 = vunpack.c.l.b16 %v2254
      %v2553 = vunpack.c.l.b16 %v2268
      %v2554 = vunpack.c.l.b16 %v2278
      %v2555 = vunpack.c.l.b16 %v2292
      %v2556 = vunpack.c.l.b16 %v2302
      %v2557 = vunpack.c.l.b16 %v2316
      %v2558 = vunpack.c.l.b16 %v2326
      %v2559 = vunpack.c.l.b16 %v2340
      %v2560 = vunpack.c.l.b16 %v2350
      %v2561 = vunpack.c.l.b16 %v2364
      %v2562 = vunpack.c.l.b16 %v2374
      %v2563 = vunpack.c.l.b16 %v2388
      %v2564 = vunpack.c.l.b16 %v2398
      %v2565 = vunpack.c.l.b16 %v2412
      %v2566 = vunpack.c.l.b16 %v2422
      %v2567 = vunpack.c.l.b16 %v2436
      %v2568 = vunpack.c.l.b16 %v2446
      %v2569 = vunpack.c.l.b16 %v2460
      %v2570 = vunpack.c.l.b16 %v2470
      %v2571 = vunpack.c.l.b16 %v2484
      %v2572 = vunpack.c.l.b16 %v2494
      %v2573 = vunpack.c.l.b16 %v2508
      %v2574 = vunpack.c.l.b16 %v2518
      %v2575 = vunpack.c.l.b16 %v2532
      %v2576 = vunpack.c.l.b16 %v2542
      %v2577 = vpack.c.b16 %v2546, %v2545
      %v2578 = vpack.c.b16 %v2548, %v2547
      %v2579 = vpack.c.b16 %v2550, %v2549
      %v2580 = vpack.c.b16 %v2552, %v2551
      %v2581 = vpack.c.b16 %v2554, %v2553
      %v2582 = vpack.c.b16 %v2556, %v2555
      %v2583 = vpack.c.b16 %v2558, %v2557
      %v2584 = vpack.c.b16 %v2560, %v2559
      %v2585 = vpack.c.b16 %v2562, %v2561
      %v2586 = vpack.c.b16 %v2564, %v2563
      %v2587 = vpack.c.b16 %v2566, %v2565
      %v2588 = vpack.c.b16 %v2568, %v2567
      %v2589 = vpack.c.b16 %v2570, %v2569
      %v2590 = vpack.c.b16 %v2572, %v2571
      %v2591 = vpack.c.b16 %v2574, %v2573
      %v2592 = vpack.c.b16 %v2576, %v2575
      %v2594 = vsel %vm789, %v2577, 0
      %v2597 = vsel %vm789, %v2578, 0
      %v2600 = vsel %vm789, %v2579, 0
      %v2603 = vsel %vm789, %v2580, 0
      %v2606 = vsel %vm789, %v2581, 0
      %v2609 = vsel %vm789, %v2582, 0
      %v2612 = vsel %vm789, %v2583, 0
      %v2615 = vsel %vm789, %v2584, 0
      %v2618 = vsel %vm789, %v2585, 0
      %v2621 = vsel %vm789, %v2586, 0
      %v2624 = vsel %vm789, %v2587, 0
      %v2627 = vsel %vm789, %v2588, 0
      %v2630 = vsel %vm789, %v2589, 0
      %v2633 = vsel %vm789, %v2590, 0
      %v2636 = vsel %vm789, %v2591, 0
      %v2639 = vsel %vm789, %v2592, 0
      %v2642 = vsel %vm838, %v2544, 0
      %2644 = vmatprep.subr.bf16.mxu0 0
      %2645 = vmatpush1.bf16.msra.mxu0 %v2642
      %2646 = vmatprep.subr.bf16.mxu0 0
      %2647 = vmatpush1.bf16.msra.mxu0 0
      %2648 = vmatprep.subr.bf16.mxu0 0
      %2649 = vmatpush1.bf16.msra.mxu0 0
      %2650 = vmatprep.subr.bf16.mxu0 0
      %2651 = vmatpush1.bf16.msra.mxu0 0
      %2652 = vmatprep.subr.bf16.mxu0 0
      %2653 = vmatpush1.bf16.msra.mxu0 0
      %2654 = vmatprep.subr.bf16.mxu0 0
      %2655 = vmatpush1.bf16.msra.mxu0 0
      %2656 = vmatprep.subr.bf16.mxu0 0
      %2657 = vmatpush1.bf16.msra.mxu0 0
      %2658 = vmatprep.subr.bf16.mxu0 0
      %2659 = vmatpush1.bf16.msra.mxu0 0
      %2660 = vmatprep.subr.bf16.mxu0 0
      %2661 = vmatpush1.bf16.msra.mxu0 0
      %2662 = vmatprep.subr.bf16.mxu0 0
      %2663 = vmatpush1.bf16.msra.mxu0 0
      %2664 = vmatprep.subr.bf16.mxu0 0
      %2665 = vmatpush1.bf16.msra.mxu0 0
      %2666 = vmatprep.subr.bf16.mxu0 0
      %2667 = vmatpush1.bf16.msra.mxu0 0
      %2668 = vmatprep.subr.bf16.mxu0 0
      %2669 = vmatpush1.bf16.msra.mxu0 0
      %2670 = vmatprep.subr.bf16.mxu0 0
      %2671 = vmatpush1.bf16.msra.mxu0 0
      %2672 = vmatprep.subr.bf16.mxu0 0
      %2673 = vmatpush1.bf16.msra.mxu0 0
      %2674 = vmatprep.subr.bf16.mxu0 0
      %2675 = vmatpush1.bf16.msra.mxu0 0
      %2676 = vmatprep.mubr.bf16.mxu0 0
      %2677 = vmatmul.mubr.bf16.gmra.mrb[0].mxu0 %v2594
      %v2678 = vpop.f32.mrb[0].mxu0
      %v2679 = vadd.f32 0.0, %v2678
      %v2680 = vpop.f32.mrb[0].mxu0
      %v2681 = vpop.f32.mrb[0].mxu0
      %v2682 = vadd.f32 0.0, %v2681
      %v2683 = vpop.f32.mrb[0].mxu0
      %2684 = vmatprep.mubr.bf16.mxu0 0
      %2685 = vmatmul.mubr.bf16.gmra.mrb[0].mxu0 %v2597
      %v2686 = vpop.f32.mrb[0].mxu0
      %v2687 = vadd.f32 0.0, %v2686
      %v2688 = vpop.f32.mrb[0].mxu0
      %v2689 = vpop.f32.mrb[0].mxu0
      %v2690 = vadd.f32 0.0, %v2689
      %v2691 = vpop.f32.mrb[0].mxu0
      %2692 = vmatprep.mubr.bf16.mxu0 0
      %2693 = vmatmul.mubr.bf16.gmra.mrb[0].mxu0 %v2600
      %v2694 = vpop.f32.mrb[0].mxu0
      %v2695 = vadd.f32 0.0, %v2694
      %v2696 = vpop.f32.mrb[0].mxu0
      %v2697 = vpop.f32.mrb[0].mxu0
      %v2698 = vadd.f32 0.0, %v2697
      %v2699 = vpop.f32.mrb[0].mxu0
      %2700 = vmatprep.mubr.bf16.mxu0 0
      %2701 = vmatmul.mubr.bf16.gmra.mrb[0].mxu0 %v2603
      %v2702 = vpop.f32.mrb[0].mxu0
      %v2703 = vadd.f32 0.0, %v2702
      %v2704 = vpop.f32.mrb[0].mxu0
      %v2705 = vpop.f32.mrb[0].mxu0
      %v2706 = vadd.f32 0.0, %v2705
      %v2707 = vpop.f32.mrb[0].mxu0
      %2708 = vmatprep.mubr.bf16.mxu0 0
      %2709 = vmatmul.mubr.bf16.gmra.mrb[0].mxu0 %v2606
      %v2710 = vpop.f32.mrb[0].mxu0
      %v2711 = vadd.f32 0.0, %v2710
      %v2712 = vpop.f32.mrb[0].mxu0
      %v2713 = vpop.f32.mrb[0].mxu0
      %v2714 = vadd.f32 0.0, %v2713
      %v2715 = vpop.f32.mrb[0].mxu0
      %2716 = vmatprep.mubr.bf16.mxu0 0
      %2717 = vmatmul.mubr.bf16.gmra.mrb[0].mxu0 %v2609
      %v2718 = vpop.f32.mrb[0].mxu0
      %v2719 = vadd.f32 0.0, %v2718
      %v2720 = vpop.f32.mrb[0].mxu0
      %v2721 = vpop.f32.mrb[0].mxu0
      %v2722 = vadd.f32 0.0, %v2721
      %v2723 = vpop.f32.mrb[0].mxu0
      %2724 = vmatprep.mubr.bf16.mxu0 0
      %2725 = vmatmul.mubr.bf16.gmra.mrb[0].mxu0 %v2612
      %v2726 = vpop.f32.mrb[0].mxu0
      %v2727 = vadd.f32 0.0, %v2726
      %v2728 = vpop.f32.mrb[0].mxu0
      %v2729 = vpop.f32.mrb[0].mxu0
      %v2730 = vadd.f32 0.0, %v2729
      %v2731 = vpop.f32.mrb[0].mxu0
      %2732 = vmatprep.mubr.bf16.mxu0 0
      %2733 = vmatmul.mubr.bf16.gmra.mrb[0].mxu0 %v2615
      %v2734 = vpop.f32.mrb[0].mxu0
      %v2735 = vadd.f32 0.0, %v2734
      %v2736 = vpop.f32.mrb[0].mxu0
      %v2737 = vpop.f32.mrb[0].mxu0
      %v2738 = vadd.f32 0.0, %v2737
      %v2739 = vpop.f32.mrb[0].mxu0
      %2740 = vmatprep.mubr.bf16.mxu0 0
      %2741 = vmatmul.mubr.bf16.gmra.mrb[0].mxu0 %v2618
      %v2742 = vpop.f32.mrb[0].mxu0
      %v2743 = vadd.f32 0.0, %v2742
      %v2744 = vpop.f32.mrb[0].mxu0
      %v2745 = vpop.f32.mrb[0].mxu0
      %v2746 = vadd.f32 0.0, %v2745
      %v2747 = vpop.f32.mrb[0].mxu0
      %2748 = vmatprep.mubr.bf16.mxu0 0
      %2749 = vmatmul.mubr.bf16.gmra.mrb[0].mxu0 %v2621
      %v2750 = vpop.f32.mrb[0].mxu0
      %v2751 = vadd.f32 0.0, %v2750
      %v2752 = vpop.f32.mrb[0].mxu0
      %v2753 = vpop.f32.mrb[0].mxu0
      %v2754 = vadd.f32 0.0, %v2753
      %v2755 = vpop.f32.mrb[0].mxu0
      %2756 = vmatprep.mubr.bf16.mxu0 0
      %2757 = vmatmul.mubr.bf16.gmra.mrb[0].mxu0 %v2624
      %v2758 = vpop.f32.mrb[0].mxu0
      %v2759 = vadd.f32 0.0, %v2758
      %v2760 = vpop.f32.mrb[0].mxu0
      %v2761 = vpop.f32.mrb[0].mxu0
      %v2762 = vadd.f32 0.0, %v2761
      %v2763 = vpop.f32.mrb[0].mxu0
      %2764 = vmatprep.mubr.bf16.mxu0 0
      %2765 = vmatmul.mubr.bf16.gmra.mrb[0].mxu0 %v2627
      %v2766 = vpop.f32.mrb[0].mxu0
      %v2767 = vadd.f32 0.0, %v2766
      %v2768 = vpop.f32.mrb[0].mxu0
      %v2769 = vpop.f32.mrb[0].mxu0
      %v2770 = vadd.f32 0.0, %v2769
      %v2771 = vpop.f32.mrb[0].mxu0
      %2772 = vmatprep.mubr.bf16.mxu0 0
      %2773 = vmatmul.mubr.bf16.gmra.mrb[0].mxu0 %v2630
      %v2774 = vpop.f32.mrb[0].mxu0
      %v2775 = vadd.f32 0.0, %v2774
      %v2776 = vpop.f32.mrb[0].mxu0
      %v2777 = vpop.f32.mrb[0].mxu0
      %v2778 = vadd.f32 0.0, %v2777
      %v2779 = vpop.f32.mrb[0].mxu0
      %2780 = vmatprep.mubr.bf16.mxu0 0
      %2781 = vmatmul.mubr.bf16.gmra.mrb[0].mxu0 %v2633
      %v2782 = vpop.f32.mrb[0].mxu0
      %v2783 = vadd.f32 0.0, %v2782
      %v2784 = vpop.f32.mrb[0].mxu0
      %v2785 = vpop.f32.mrb[0].mxu0
      %v2786 = vadd.f32 0.0, %v2785
      %v2787 = vpop.f32.mrb[0].mxu0
      %2788 = vmatprep.mubr.bf16.mxu0 0
      %2789 = vmatmul.mubr.bf16.gmra.mrb[0].mxu0 %v2636
      %v2790 = vpop.f32.mrb[0].mxu0
      %v2791 = vadd.f32 0.0, %v2790
      %v2792 = vpop.f32.mrb[0].mxu0
      %v2793 = vpop.f32.mrb[0].mxu0
      %v2794 = vadd.f32 0.0, %v2793
      %v2795 = vpop.f32.mrb[0].mxu0
      %2796 = vmatprep.mubr.bf16.mxu0 0
      %2797 = vmatmul.mubr.bf16.gmra.mrb[0].mxu0 %v2639
      %v2798 = vpop.f32.mrb[0].mxu0
      %v2799 = vadd.f32 0.0, %v2798
      %v2800 = vpop.f32.mrb[0].mxu0
      %v2801 = vpop.f32.mrb[0].mxu0
      %v2802 = vadd.f32 0.0, %v2801
      %v2803 = vpop.f32.mrb[0].mxu0
      %2804 = vdwg.mxu0
      %v2805 = vadd.f32 %v2079, %v2679
      %v2806 = vadd.f32 %v2080, %v2682
      %v2807 = vadd.f32 %v2081, %v2687
      %v2808 = vadd.f32 %v2082, %v2690
      %v2809 = vadd.f32 %v2083, %v2695
      %v2810 = vadd.f32 %v2084, %v2698
      %v2811 = vadd.f32 %v2085, %v2703
      %v2812 = vadd.f32 %v2086, %v2706
      %v2813 = vadd.f32 %v2087, %v2711
      %v2814 = vadd.f32 %v2088, %v2714
      %v2815 = vadd.f32 %v2089, %v2719
      %v2816 = vadd.f32 %v2090, %v2722
      %v2817 = vadd.f32 %v2091, %v2727
      %v2818 = vadd.f32 %v2092, %v2730
      %v2819 = vadd.f32 %v2093, %v2735
      %v2820 = vadd.f32 %v2094, %v2738
      %v2821 = vadd.f32 %v2095, %v2743
      %v2822 = vadd.f32 %v2096, %v2746
      %v2823 = vadd.f32 %v2097, %v2751
      %v2824 = vadd.f32 %v2098, %v2754
      %v2825 = vadd.f32 %v2099, %v2759
      %v2826 = vadd.f32 %v2100, %v2762
      %v2827 = vadd.f32 %v2101, %v2767
      %v2828 = vadd.f32 %v2102, %v2770
      %v2829 = vadd.f32 %v2103, %v2775
      %v2830 = vadd.f32 %v2104, %v2778
      %v2831 = vadd.f32 %v2105, %v2783
      %v2832 = vadd.f32 %v2106, %v2786
      %v2833 = vadd.f32 %v2107, %v2791
      %v2834 = vadd.f32 %v2108, %v2794
      %v2835 = vadd.f32 %v2109, %v2799
      %v2836 = vadd.f32 %v2110, %v2802
      %v2837 = vld [vmem:[%s1752] sm:$0xe]
      %v2838 = vld [vmem:[%s1752 + $0xc] sm:$0xe]
      %v2839 = vld [vmem:[%s1752 + $0x18] sm:$0xe]
      %v2840 = vld [vmem:[%s1752 + $0x24] sm:$0xe]
      %v2841 = vld [vmem:[%s1752 + $0x30] sm:$0xe]
      %v2842 = vld [vmem:[%s1752 + $0x3c] sm:$0xe]
      %v2843 = vld [vmem:[%s1752 + $0x48] sm:$0xe]
      %v2844 = vld [vmem:[%s1752 + $0x54] sm:$0xe]
      %v2845 = vld [vmem:[%s1752 + $0x60] sm:$0xe]
      %v2846 = vld [vmem:[%s1752 + $0x6c] sm:$0xe]
      %v2847 = vld [vmem:[%s1752 + $0x78] sm:$0xe]
      %v2848 = vld [vmem:[%s1752 + $0x84] sm:$0xe]
      %v2849 = vld [vmem:[%s1752 + $0x90] sm:$0xe]
      %v2850 = vld [vmem:[%s1752 + $0x9c] sm:$0xe]
      %v2851 = vld [vmem:[%s1752 + $0xa8] sm:$0xe]
      %v2852 = vld [vmem:[%s1752 + $0xb4] sm:$0xe]
      %v2901 = vrot.slane %v2837, 5
      %v2902 = vrot.slane %v2901, 4
      %v2903 = vrot.slane %v2112, 5
      %v2904 = vsel %vm1345, %v2902, %v2903
      %v2905 = vrot.slane %v2903, 4
      %v2906 = vrot.slane %v2113, 5
      %v2907 = vsel %vm1345, %v2905, %v2906
      %v2908 = vrot.slane %v2838, 5
      %v2909 = vrot.slane %v2908, 4
      %v2910 = vrot.slane %v2115, 5
      %v2911 = vsel %vm1345, %v2909, %v2910
      %v2912 = vrot.slane %v2910, 4
      %v2913 = vrot.slane %v2116, 5
      %v2914 = vsel %vm1345, %v2912, %v2913
      %v2915 = vrot.slane %v2839, 5
      %v2916 = vrot.slane %v2915, 4
      %v2917 = vrot.slane %v2118, 5
      %v2918 = vsel %vm1345, %v2916, %v2917
      %v2919 = vrot.slane %v2917, 4
      %v2920 = vrot.slane %v2119, 5
      %v2921 = vsel %vm1345, %v2919, %v2920
      %v2922 = vrot.slane %v2840, 5
      %v2923 = vrot.slane %v2922, 4
      %v2924 = vrot.slane %v2121, 5
      %v2925 = vsel %vm1345, %v2923, %v2924
      %v2926 = vrot.slane %v2924, 4
      %v2927 = vrot.slane %v2122, 5
      %v2928 = vsel %vm1345, %v2926, %v2927
      %v2929 = vrot.slane %v2841, 5
      %v2930 = vrot.slane %v2929, 4
      %v2931 = vrot.slane %v2124, 5
      %v2932 = vsel %vm1345, %v2930, %v2931
      %v2933 = vrot.slane %v2931, 4
      %v2934 = vrot.slane %v2125, 5
      %v2935 = vsel %vm1345, %v2933, %v2934
      %v2936 = vrot.slane %v2842, 5
      %v2937 = vrot.slane %v2936, 4
      %v2938 = vrot.slane %v2127, 5
      %v2939 = vsel %vm1345, %v2937, %v2938
      %v2940 = vrot.slane %v2938, 4
      %v2941 = vrot.slane %v2128, 5
      %v2942 = vsel %vm1345, %v2940, %v2941
      %v2943 = vrot.slane %v2843, 5
      %v2944 = vrot.slane %v2943, 4
      %v2945 = vrot.slane %v2130, 5
      %v2946 = vsel %vm1345, %v2944, %v2945
      %v2947 = vrot.slane %v2945, 4
      %v2948 = vrot.slane %v2131, 5
      %v2949 = vsel %vm1345, %v2947, %v2948
      %v2950 = vrot.slane %v2844, 5
      %v2951 = vrot.slane %v2950, 4
      %v2952 = vrot.slane %v2133, 5
      %v2953 = vsel %vm1345, %v2951, %v2952
      %v2954 = vrot.slane %v2952, 4
      %v2955 = vrot.slane %v2134, 5
      %v2956 = vsel %vm1345, %v2954, %v2955
      %v2957 = vrot.slane %v2845, 5
      %v2958 = vrot.slane %v2957, 4
      %v2959 = vrot.slane %v2136, 5
      %v2960 = vsel %vm1345, %v2958, %v2959
      %v2961 = vrot.slane %v2959, 4
      %v2962 = vrot.slane %v2137, 5
      %v2963 = vsel %vm1345, %v2961, %v2962
      %v2964 = vrot.slane %v2846, 5
      %v2965 = vrot.slane %v2964, 4
      %v2966 = vrot.slane %v2139, 5
      %v2967 = vsel %vm1345, %v2965, %v2966
      %v2968 = vrot.slane %v2966, 4
      %v2969 = vrot.slane %v2140, 5
      %v2970 = vsel %vm1345, %v2968, %v2969
      %v2971 = vrot.slane %v2847, 5
      %v2972 = vrot.slane %v2971, 4
      %v2973 = vrot.slane %v2142, 5
      %v2974 = vsel %vm1345, %v2972, %v2973
      %v2975 = vrot.slane %v2973, 4
      %v2976 = vrot.slane %v2143, 5
      %v2977 = vsel %vm1345, %v2975, %v2976
      %v2978 = vrot.slane %v2848, 5
      %v2979 = vrot.slane %v2978, 4
      %v2980 = vrot.slane %v2145, 5
      %v2981 = vsel %vm1345, %v2979, %v2980
      %v2982 = vrot.slane %v2980, 4
      %v2983 = vrot.slane %v2146, 5
      %v2984 = vsel %vm1345, %v2982, %v2983
      %v2985 = vrot.slane %v2849, 5
      %v2986 = vrot.slane %v2985, 4
      %v2987 = vrot.slane %v2148, 5
      %v2988 = vsel %vm1345, %v2986, %v2987
      %v2989 = vrot.slane %v2987, 4
      %v2990 = vrot.slane %v2149, 5
      %v2991 = vsel %vm1345, %v2989, %v2990
      %v2992 = vrot.slane %v2850, 5
      %v2993 = vrot.slane %v2992, 4
      %v2994 = vrot.slane %v2151, 5
      %v2995 = vsel %vm1345, %v2993, %v2994
      %v2996 = vrot.slane %v2994, 4
      %v2997 = vrot.slane %v2152, 5
      %v2998 = vsel %vm1345, %v2996, %v2997
      %v2999 = vrot.slane %v2851, 5
      %v3000 = vrot.slane %v2999, 4
      %v3001 = vrot.slane %v2154, 5
      %v3002 = vsel %vm1345, %v3000, %v3001
      %v3003 = vrot.slane %v3001, 4
      %v3004 = vrot.slane %v2155, 5
      %v3005 = vsel %vm1345, %v3003, %v3004
      %v3006 = vrot.slane %v2852, 5
      %v3007 = vrot.slane %v3006, 4
      %v3008 = vrot.slane %v2157, 5
      %v3009 = vsel %vm1345, %v3007, %v3008
      %v3010 = vrot.slane %v3008, 4
      %v3011 = vrot.slane %v2158, 5
      %v3012 = vsel %vm1345, %v3010, %v3011
      %s3013 = scalar_lea.vmem %s1, 10
      %v3014 = vld [vmem:[%s3013] sm:$0x3]
      %v3015 = vunpack.c.l.b16 %v2904
      %v3016 = vunpack.c.l.b16 %v2907
      %v3017 = vunpack.c.l.b16 %v2911
      %v3018 = vunpack.c.l.b16 %v2914
      %v3019 = vunpack.c.l.b16 %v2918
      %v3020 = vunpack.c.l.b16 %v2921
      %v3021 = vunpack.c.l.b16 %v2925
      %v3022 = vunpack.c.l.b16 %v2928
      %v3023 = vunpack.c.l.b16 %v2932
      %v3024 = vunpack.c.l.b16 %v2935
      %v3025 = vunpack.c.l.b16 %v2939
      %v3026 = vunpack.c.l.b16 %v2942
      %v3027 = vunpack.c.l.b16 %v2946
      %v3028 = vunpack.c.l.b16 %v2949
      %v3029 = vunpack.c.l.b16 %v2953
      %v3030 = vunpack.c.l.b16 %v2956
      %v3031 = vunpack.c.l.b16 %v2960
      %v3032 = vunpack.c.l.b16 %v2963
      %v3033 = vunpack.c.l.b16 %v2967
      %v3034 = vunpack.c.l.b16 %v2970
      %v3035 = vunpack.c.l.b16 %v2974
      %v3036 = vunpack.c.l.b16 %v2977
      %v3037 = vunpack.c.l.b16 %v2981
      %v3038 = vunpack.c.l.b16 %v2984
      %v3039 = vunpack.c.l.b16 %v2988
      %v3040 = vunpack.c.l.b16 %v2991
      %v3041 = vunpack.c.l.b16 %v2995
      %v3042 = vunpack.c.l.b16 %v2998
      %v3043 = vunpack.c.l.b16 %v3002
      %v3044 = vunpack.c.l.b16 %v3005
      %v3045 = vunpack.c.l.b16 %v3009
      %v3046 = vunpack.c.l.b16 %v3012
      %v3047 = vpack.c.b16 %v3016, %v3015
      %v3048 = vpack.c.b16 %v3018, %v3017
      %v3049 = vpack.c.b16 %v3020, %v3019
      %v3050 = vpack.c.b16 %v3022, %v3021
      %v3051 = vpack.c.b16 %v3024, %v3023
      %v3052 = vpack.c.b16 %v3026, %v3025
      %v3053 = vpack.c.b16 %v3028, %v3027
      %v3054 = vpack.c.b16 %v3030, %v3029
      %v3055 = vpack.c.b16 %v3032, %v3031
      %v3056 = vpack.c.b16 %v3034, %v3033
      %v3057 = vpack.c.b16 %v3036, %v3035
      %v3058 = vpack.c.b16 %v3038, %v3037
      %v3059 = vpack.c.b16 %v3040, %v3039
      %v3060 = vpack.c.b16 %v3042, %v3041
      %v3061 = vpack.c.b16 %v3044, %v3043
      %v3062 = vpack.c.b16 %v3046, %v3045
      %v3064 = vsel %vm789, %v3047, 0
      %v3067 = vsel %vm789, %v3048, 0
      %v3070 = vsel %vm789, %v3049, 0
      %v3073 = vsel %vm789, %v3050, 0
      %v3076 = vsel %vm789, %v3051, 0
      %v3079 = vsel %vm789, %v3052, 0
      %v3082 = vsel %vm789, %v3053, 0
      %v3085 = vsel %vm789, %v3054, 0
      %v3088 = vsel %vm789, %v3055, 0
      %v3091 = vsel %vm789, %v3056, 0
      %v3094 = vsel %vm789, %v3057, 0
      %v3097 = vsel %vm789, %v3058, 0
      %v3100 = vsel %vm789, %v3059, 0
      %v3103 = vsel %vm789, %v3060, 0
      %v3106 = vsel %vm789, %v3061, 0
      %v3109 = vsel %vm789, %v3062, 0
      %v3112 = vsel %vm838, %v3014, 0
      %3114 = vmatprep.subr.bf16.mxu0 0
      %3115 = vmatpush1.bf16.msra.mxu0 %v3112
      %3116 = vmatprep.subr.bf16.mxu0 0
      %3117 = vmatpush1.bf16.msra.mxu0 0
      %3118 = vmatprep.subr.bf16.mxu0 0
      %3119 = vmatpush1.bf16.msra.mxu0 0
      %3120 = vmatprep.subr.bf16.mxu0 0
      %3121 = vmatpush1.bf16.msra.mxu0 0
      %3122 = vmatprep.subr.bf16.mxu0 0
      %3123 = vmatpush1.bf16.msra.mxu0 0
      %3124 = vmatprep.subr.bf16.mxu0 0
      %3125 = vmatpush1.bf16.msra.mxu0 0
      %3126 = vmatprep.subr.bf16.mxu0 0
      %3127 = vmatpush1.bf16.msra.mxu0 0
      %3128 = vmatprep.subr.bf16.mxu0 0
      %3129 = vmatpush1.bf16.msra.mxu0 0
      %3130 = vmatprep.subr.bf16.mxu0 0
      %3131 = vmatpush1.bf16.msra.mxu0 0
      %3132 = vmatprep.subr.bf16.mxu0 0
      %3133 = vmatpush1.bf16.msra.mxu0 0
      %3134 = vmatprep.subr.bf16.mxu0 0
      %3135 = vmatpush1.bf16.msra.mxu0 0
      %3136 = vmatprep.subr.bf16.mxu0 0
      %3137 = vmatpush1.bf16.msra.mxu0 0
      %3138 = vmatprep.subr.bf16.mxu0 0
      %3139 = vmatpush1.bf16.msra.mxu0 0
      %3140 = vmatprep.subr.bf16.mxu0 0
      %3141 = vmatpush1.bf16.msra.mxu0 0
      %3142 = vmatprep.subr.bf16.mxu0 0
      %3143 = vmatpush1.bf16.msra.mxu0 0
      %3144 = vmatprep.subr.bf16.mxu0 0
      %3145 = vmatpush1.bf16.msra.mxu0 0
      %3146 = vmatprep.mubr.bf16.mxu0 0
      %3147 = vmatmul.mubr.bf16.gmra.mrb[0].mxu0 %v3064
      %v3148 = vpop.f32.mrb[0].mxu0
      %v3149 = vadd.f32 0.0, %v3148
      %v3150 = vpop.f32.mrb[0].mxu0
      %v3151 = vpop.f32.mrb[0].mxu0
      %v3152 = vadd.f32 0.0, %v3151
      %v3153 = vpop.f32.mrb[0].mxu0
      %3154 = vmatprep.mubr.bf16.mxu0 0
      %3155 = vmatmul.mubr.bf16.gmra.mrb[0].mxu0 %v3067
      %v3156 = vpop.f32.mrb[0].mxu0
      %v3157 = vadd.f32 0.0, %v3156
      %v3158 = vpop.f32.mrb[0].mxu0
      %v3159 = vpop.f32.mrb[0].mxu0
      %v3160 = vadd.f32 0.0, %v3159
      %v3161 = vpop.f32.mrb[0].mxu0
      %3162 = vmatprep.mubr.bf16.mxu0 0
      %3163 = vmatmul.mubr.bf16.gmra.mrb[0].mxu0 %v3070
      %v3164 = vpop.f32.mrb[0].mxu0
      %v3165 = vadd.f32 0.0, %v3164
      %v3166 = vpop.f32.mrb[0].mxu0
      %v3167 = vpop.f32.mrb[0].mxu0
      %v3168 = vadd.f32 0.0, %v3167
      %v3169 = vpop.f32.mrb[0].mxu0
      %3170 = vmatprep.mubr.bf16.mxu0 0
      %3171 = vmatmul.mubr.bf16.gmra.mrb[0].mxu0 %v3073
      %v3172 = vpop.f32.mrb[0].mxu0
      %v3173 = vadd.f32 0.0, %v3172
      %v3174 = vpop.f32.mrb[0].mxu0
      %v3175 = vpop.f32.mrb[0].mxu0
      %v3176 = vadd.f32 0.0, %v3175
      %v3177 = vpop.f32.mrb[0].mxu0
      %3178 = vmatprep.mubr.bf16.mxu0 0
      %3179 = vmatmul.mubr.bf16.gmra.mrb[0].mxu0 %v3076
      %v3180 = vpop.f32.mrb[0].mxu0
      %v3181 = vadd.f32 0.0, %v3180
      %v3182 = vpop.f32.mrb[0].mxu0
      %v3183 = vpop.f32.mrb[0].mxu0
      %v3184 = vadd.f32 0.0, %v3183
      %v3185 = vpop.f32.mrb[0].mxu0
      %3186 = vmatprep.mubr.bf16.mxu0 0
      %3187 = vmatmul.mubr.bf16.gmra.mrb[0].mxu0 %v3079
      %v3188 = vpop.f32.mrb[0].mxu0
      %v3189 = vadd.f32 0.0, %v3188
      %v3190 = vpop.f32.mrb[0].mxu0
      %v3191 = vpop.f32.mrb[0].mxu0
      %v3192 = vadd.f32 0.0, %v3191
      %v3193 = vpop.f32.mrb[0].mxu0
      %3194 = vmatprep.mubr.bf16.mxu0 0
      %3195 = vmatmul.mubr.bf16.gmra.mrb[0].mxu0 %v3082
      %v3196 = vpop.f32.mrb[0].mxu0
      %v3197 = vadd.f32 0.0, %v3196
      %v3198 = vpop.f32.mrb[0].mxu0
      %v3199 = vpop.f32.mrb[0].mxu0
      %v3200 = vadd.f32 0.0, %v3199
      %v3201 = vpop.f32.mrb[0].mxu0
      %3202 = vmatprep.mubr.bf16.mxu0 0
      %3203 = vmatmul.mubr.bf16.gmra.mrb[0].mxu0 %v3085
      %v3204 = vpop.f32.mrb[0].mxu0
      %v3205 = vadd.f32 0.0, %v3204
      %v3206 = vpop.f32.mrb[0].mxu0
      %v3207 = vpop.f32.mrb[0].mxu0
      %v3208 = vadd.f32 0.0, %v3207
      %v3209 = vpop.f32.mrb[0].mxu0
      %3210 = vmatprep.mubr.bf16.mxu0 0
      %3211 = vmatmul.mubr.bf16.gmra.mrb[0].mxu0 %v3088
      %v3212 = vpop.f32.mrb[0].mxu0
      %v3213 = vadd.f32 0.0, %v3212
      %v3214 = vpop.f32.mrb[0].mxu0
      %v3215 = vpop.f32.mrb[0].mxu0
      %v3216 = vadd.f32 0.0, %v3215
      %v3217 = vpop.f32.mrb[0].mxu0
      %3218 = vmatprep.mubr.bf16.mxu0 0
      %3219 = vmatmul.mubr.bf16.gmra.mrb[0].mxu0 %v3091
      %v3220 = vpop.f32.mrb[0].mxu0
      %v3221 = vadd.f32 0.0, %v3220
      %v3222 = vpop.f32.mrb[0].mxu0
      %v3223 = vpop.f32.mrb[0].mxu0
      %v3224 = vadd.f32 0.0, %v3223
      %v3225 = vpop.f32.mrb[0].mxu0
      %3226 = vmatprep.mubr.bf16.mxu0 0
      %3227 = vmatmul.mubr.bf16.gmra.mrb[0].mxu0 %v3094
      %v3228 = vpop.f32.mrb[0].mxu0
      %v3229 = vadd.f32 0.0, %v3228
      %v3230 = vpop.f32.mrb[0].mxu0
      %v3231 = vpop.f32.mrb[0].mxu0
      %v3232 = vadd.f32 0.0, %v3231
      %v3233 = vpop.f32.mrb[0].mxu0
      %3234 = vmatprep.mubr.bf16.mxu0 0
      %3235 = vmatmul.mubr.bf16.gmra.mrb[0].mxu0 %v3097
      %v3236 = vpop.f32.mrb[0].mxu0
      %v3237 = vadd.f32 0.0, %v3236
      %v3238 = vpop.f32.mrb[0].mxu0
      %v3239 = vpop.f32.mrb[0].mxu0
      %v3240 = vadd.f32 0.0, %v3239
      %v3241 = vpop.f32.mrb[0].mxu0
      %3242 = vmatprep.mubr.bf16.mxu0 0
      %3243 = vmatmul.mubr.bf16.gmra.mrb[0].mxu0 %v3100
      %v3244 = vpop.f32.mrb[0].mxu0
      %v3245 = vadd.f32 0.0, %v3244
      %v3246 = vpop.f32.mrb[0].mxu0
      %v3247 = vpop.f32.mrb[0].mxu0
      %v3248 = vadd.f32 0.0, %v3247
      %v3249 = vpop.f32.mrb[0].mxu0
      %3250 = vmatprep.mubr.bf16.mxu0 0
      %3251 = vmatmul.mubr.bf16.gmra.mrb[0].mxu0 %v3103
      %v3252 = vpop.f32.mrb[0].mxu0
      %v3253 = vadd.f32 0.0, %v3252
      %v3254 = vpop.f32.mrb[0].mxu0
      %v3255 = vpop.f32.mrb[0].mxu0
      %v3256 = vadd.f32 0.0, %v3255
      %v3257 = vpop.f32.mrb[0].mxu0
      %3258 = vmatprep.mubr.bf16.mxu0 0
      %3259 = vmatmul.mubr.bf16.gmra.mrb[0].mxu0 %v3106
      %v3260 = vpop.f32.mrb[0].mxu0
      %v3261 = vadd.f32 0.0, %v3260
      %v3262 = vpop.f32.mrb[0].mxu0
      %v3263 = vpop.f32.mrb[0].mxu0
      %v3264 = vadd.f32 0.0, %v3263
      %v3265 = vpop.f32.mrb[0].mxu0
      %3266 = vmatprep.mubr.bf16.mxu0 0
      %3267 = vmatmul.mubr.bf16.gmra.mrb[0].mxu0 %v3109
      %v3268 = vpop.f32.mrb[0].mxu0
      %v3269 = vadd.f32 0.0, %v3268
      %v3270 = vpop.f32.mrb[0].mxu0
      %v3271 = vpop.f32.mrb[0].mxu0
      %v3272 = vadd.f32 0.0, %v3271
      %v3273 = vpop.f32.mrb[0].mxu0
      %3274 = vdwg.mxu0
      %v3275 = vadd.f32 %v2805, %v3149
      %v3276 = vadd.f32 %v2806, %v3152
      %v3277 = vadd.f32 %v2807, %v3157
      %v3278 = vadd.f32 %v2808, %v3160
      %v3279 = vadd.f32 %v2809, %v3165
      %v3280 = vadd.f32 %v2810, %v3168
      %v3281 = vadd.f32 %v2811, %v3173
      %v3282 = vadd.f32 %v2812, %v3176
      %v3283 = vadd.f32 %v2813, %v3181
      %v3284 = vadd.f32 %v2814, %v3184
      %v3285 = vadd.f32 %v2815, %v3189
      %v3286 = vadd.f32 %v2816, %v3192
      %v3287 = vadd.f32 %v2817, %v3197
      %v3288 = vadd.f32 %v2818, %v3200
      %v3289 = vadd.f32 %v2819, %v3205
      %v3290 = vadd.f32 %v2820, %v3208
      %v3291 = vadd.f32 %v2821, %v3213
      %v3292 = vadd.f32 %v2822, %v3216
      %v3293 = vadd.f32 %v2823, %v3221
      %v3294 = vadd.f32 %v2824, %v3224
      %v3295 = vadd.f32 %v2825, %v3229
      %v3296 = vadd.f32 %v2826, %v3232
      %v3297 = vadd.f32 %v2827, %v3237
      %v3298 = vadd.f32 %v2828, %v3240
      %v3299 = vadd.f32 %v2829, %v3245
      %v3300 = vadd.f32 %v2830, %v3248
      %v3301 = vadd.f32 %v2831, %v3253
      %v3302 = vadd.f32 %v2832, %v3256
      %v3303 = vadd.f32 %v2833, %v3261
      %v3304 = vadd.f32 %v2834, %v3264
      %v3305 = vadd.f32 %v2835, %v3269
      %v3306 = vadd.f32 %v2836, %v3272
      %s3307 = scalar_lea.vmem %s298, 24
      %v3308 = vld [vmem:[%s3307] sm:$0xf]
      %v3309 = vld [vmem:[%s3307 + $0x4] sm:$0xf]
      %v3310 = vld [vmem:[%s3307 + $0xc] sm:$0xf]
      %v3311 = vld [vmem:[%s3307 + $0x10] sm:$0xf]
      %v3312 = vld [vmem:[%s3307 + $0x18] sm:$0xf]
      %v3313 = vld [vmem:[%s3307 + $0x1c] sm:$0xf]
      %v3314 = vld [vmem:[%s3307 + $0x24] sm:$0xf]
      %v3315 = vld [vmem:[%s3307 + $0x28] sm:$0xf]
      %v3316 = vld [vmem:[%s3307 + $0x30] sm:$0xf]
      %v3317 = vld [vmem:[%s3307 + $0x34] sm:$0xf]
      %v3318 = vld [vmem:[%s3307 + $0x3c] sm:$0xf]
      %v3319 = vld [vmem:[%s3307 + $0x40] sm:$0xf]
      %v3320 = vld [vmem:[%s3307 + $0x48] sm:$0xf]
      %v3321 = vld [vmem:[%s3307 + $0x4c] sm:$0xf]
      %v3322 = vld [vmem:[%s3307 + $0x54] sm:$0xf]
      %v3323 = vld [vmem:[%s3307 + $0x58] sm:$0xf]
      %v3324 = vld [vmem:[%s3307 + $0x60] sm:$0xf]
      %v3325 = vld [vmem:[%s3307 + $0x64] sm:$0xf]
      %v3326 = vld [vmem:[%s3307 + $0x6c] sm:$0xf]
      %v3327 = vld [vmem:[%s3307 + $0x70] sm:$0xf]
      %v3328 = vld [vmem:[%s3307 + $0x78] sm:$0xf]
      %v3329 = vld [vmem:[%s3307 + $0x7c] sm:$0xf]
      %v3330 = vld [vmem:[%s3307 + $0x84] sm:$0xf]
      %v3331 = vld [vmem:[%s3307 + $0x88] sm:$0xf]
      %v3332 = vld [vmem:[%s3307 + $0x90] sm:$0xf]
      %v3333 = vld [vmem:[%s3307 + $0x94] sm:$0xf]
      %v3334 = vld [vmem:[%s3307 + $0x9c] sm:$0xf]
      %v3335 = vld [vmem:[%s3307 + $0xa0] sm:$0xf]
      %v3336 = vld [vmem:[%s3307 + $0xa8] sm:$0xf]
      %v3337 = vld [vmem:[%s3307 + $0xac] sm:$0xf]
      %v3338 = vld [vmem:[%s3307 + $0xb4] sm:$0xf]
      %v3339 = vld [vmem:[%s3307 + $0xb8] sm:$0xf]
      %s3340 = scalar_lea.vmem %s1, 12
      %v3341 = vld [vmem:[%s3340] sm:$0x3]
      %v3374 = vunpack.c.l.b16 %v3308
      %v3375 = vunpack.c.l.b16 %v3309
      %v3376 = vunpack.c.l.b16 %v3310
      %v3377 = vunpack.c.l.b16 %v3311
      %v3378 = vunpack.c.l.b16 %v3312
      %v3379 = vunpack.c.l.b16 %v3313
      %v3380 = vunpack.c.l.b16 %v3314
      %v3381 = vunpack.c.l.b16 %v3315
      %v3382 = vunpack.c.l.b16 %v3316
      %v3383 = vunpack.c.l.b16 %v3317
      %v3384 = vunpack.c.l.b16 %v3318
      %v3385 = vunpack.c.l.b16 %v3319
      %v3386 = vunpack.c.l.b16 %v3320
      %v3387 = vunpack.c.l.b16 %v3321
      %v3388 = vunpack.c.l.b16 %v3322
      %v3389 = vunpack.c.l.b16 %v3323
      %v3390 = vunpack.c.l.b16 %v3324
      %v3391 = vunpack.c.l.b16 %v3325
      %v3392 = vunpack.c.l.b16 %v3326
      %v3393 = vunpack.c.l.b16 %v3327
      %v3394 = vunpack.c.l.b16 %v3328
      %v3395 = vunpack.c.l.b16 %v3329
      %v3396 = vunpack.c.l.b16 %v3330
      %v3397 = vunpack.c.l.b16 %v3331
      %v3398 = vunpack.c.l.b16 %v3332
      %v3399 = vunpack.c.l.b16 %v3333
      %v3400 = vunpack.c.l.b16 %v3334
      %v3401 = vunpack.c.l.b16 %v3335
      %v3402 = vunpack.c.l.b16 %v3336
      %v3403 = vunpack.c.l.b16 %v3337
      %v3404 = vunpack.c.l.b16 %v3338
      %v3405 = vunpack.c.l.b16 %v3339
      %v3406 = vpack.c.b16 %v3375, %v3374
      %v3407 = vpack.c.b16 %v3377, %v3376
      %v3408 = vpack.c.b16 %v3379, %v3378
      %v3409 = vpack.c.b16 %v3381, %v3380
      %v3410 = vpack.c.b16 %v3383, %v3382
      %v3411 = vpack.c.b16 %v3385, %v3384
      %v3412 = vpack.c.b16 %v3387, %v3386
      %v3413 = vpack.c.b16 %v3389, %v3388
      %v3414 = vpack.c.b16 %v3391, %v3390
      %v3415 = vpack.c.b16 %v3393, %v3392
      %v3416 = vpack.c.b16 %v3395, %v3394
      %v3417 = vpack.c.b16 %v3397, %v3396
      %v3418 = vpack.c.b16 %v3399, %v3398
      %v3419 = vpack.c.b16 %v3401, %v3400
      %v3420 = vpack.c.b16 %v3403, %v3402
      %v3421 = vpack.c.b16 %v3405, %v3404
      %v3423 = vsel %vm789, %v3406, 0
      %v3426 = vsel %vm789, %v3407, 0
      %v3429 = vsel %vm789, %v3408, 0
      %v3432 = vsel %vm789, %v3409, 0
      %v3435 = vsel %vm789, %v3410, 0
      %v3438 = vsel %vm789, %v3411, 0
      %v3441 = vsel %vm789, %v3412, 0
      %v3444 = vsel %vm789, %v3413, 0
      %v3447 = vsel %vm789, %v3414, 0
      %v3450 = vsel %vm789, %v3415, 0
      %v3453 = vsel %vm789, %v3416, 0
      %v3456 = vsel %vm789, %v3417, 0
      %v3459 = vsel %vm789, %v3418, 0
      %v3462 = vsel %vm789, %v3419, 0
      %v3465 = vsel %vm789, %v3420, 0
      %v3468 = vsel %vm789, %v3421, 0
      %v3471 = vsel %vm838, %v3341, 0
      %3473 = vmatprep.subr.bf16.mxu0 0
      %3474 = vmatpush1.bf16.msra.mxu0 %v3471
      %3475 = vmatprep.subr.bf16.mxu0 0
      %3476 = vmatpush1.bf16.msra.mxu0 0
      %3477 = vmatprep.subr.bf16.mxu0 0
      %3478 = vmatpush1.bf16.msra.mxu0 0
      %3479 = vmatprep.subr.bf16.mxu0 0
      %3480 = vmatpush1.bf16.msra.mxu0 0
      %3481 = vmatprep.subr.bf16.mxu0 0
      %3482 = vmatpush1.bf16.msra.mxu0 0
      %3483 = vmatprep.subr.bf16.mxu0 0
      %3484 = vmatpush1.bf16.msra.mxu0 0
      %3485 = vmatprep.subr.bf16.mxu0 0
      %3486 = vmatpush1.bf16.msra.mxu0 0
      %3487 = vmatprep.subr.bf16.mxu0 0
      %3488 = vmatpush1.bf16.msra.mxu0 0
      %3489 = vmatprep.subr.bf16.mxu0 0
      %3490 = vmatpush1.bf16.msra.mxu0 0
      %3491 = vmatprep.subr.bf16.mxu0 0
      %3492 = vmatpush1.bf16.msra.mxu0 0
      %3493 = vmatprep.subr.bf16.mxu0 0
      %3494 = vmatpush1.bf16.msra.mxu0 0
      %3495 = vmatprep.subr.bf16.mxu0 0
      %3496 = vmatpush1.bf16.msra.mxu0 0
      %3497 = vmatprep.subr.bf16.mxu0 0
      %3498 = vmatpush1.bf16.msra.mxu0 0
      %3499 = vmatprep.subr.bf16.mxu0 0
      %3500 = vmatpush1.bf16.msra.mxu0 0
      %3501 = vmatprep.subr.bf16.mxu0 0
      %3502 = vmatpush1.bf16.msra.mxu0 0
      %3503 = vmatprep.subr.bf16.mxu0 0
      %3504 = vmatpush1.bf16.msra.mxu0 0
      %3505 = vmatprep.mubr.bf16.mxu0 0
      %3506 = vmatmul.mubr.bf16.gmra.mrb[0].mxu0 %v3423
      %v3507 = vpop.f32.mrb[0].mxu0
      %v3508 = vadd.f32 0.0, %v3507
      %v3509 = vpop.f32.mrb[0].mxu0
      %v3510 = vpop.f32.mrb[0].mxu0
      %v3511 = vadd.f32 0.0, %v3510
      %v3512 = vpop.f32.mrb[0].mxu0
      %3513 = vmatprep.mubr.bf16.mxu0 0
      %3514 = vmatmul.mubr.bf16.gmra.mrb[0].mxu0 %v3426
      %v3515 = vpop.f32.mrb[0].mxu0
      %v3516 = vadd.f32 0.0, %v3515
      %v3517 = vpop.f32.mrb[0].mxu0
      %v3518 = vpop.f32.mrb[0].mxu0
      %v3519 = vadd.f32 0.0, %v3518
      %v3520 = vpop.f32.mrb[0].mxu0
      %3521 = vmatprep.mubr.bf16.mxu0 0
      %3522 = vmatmul.mubr.bf16.gmra.mrb[0].mxu0 %v3429
      %v3523 = vpop.f32.mrb[0].mxu0
      %v3524 = vadd.f32 0.0, %v3523
      %v3525 = vpop.f32.mrb[0].mxu0
      %v3526 = vpop.f32.mrb[0].mxu0
      %v3527 = vadd.f32 0.0, %v3526
      %v3528 = vpop.f32.mrb[0].mxu0
      %3529 = vmatprep.mubr.bf16.mxu0 0
      %3530 = vmatmul.mubr.bf16.gmra.mrb[0].mxu0 %v3432
      %v3531 = vpop.f32.mrb[0].mxu0
      %v3532 = vadd.f32 0.0, %v3531
      %v3533 = vpop.f32.mrb[0].mxu0
      %v3534 = vpop.f32.mrb[0].mxu0
      %v3535 = vadd.f32 0.0, %v3534
      %v3536 = vpop.f32.mrb[0].mxu0
      %3537 = vmatprep.mubr.bf16.mxu0 0
      %3538 = vmatmul.mubr.bf16.gmra.mrb[0].mxu0 %v3435
      %v3539 = vpop.f32.mrb[0].mxu0
      %v3540 = vadd.f32 0.0, %v3539
      %v3541 = vpop.f32.mrb[0].mxu0
      %v3542 = vpop.f32.mrb[0].mxu0
      %v3543 = vadd.f32 0.0, %v3542
      %v3544 = vpop.f32.mrb[0].mxu0
      %3545 = vmatprep.mubr.bf16.mxu0 0
      %3546 = vmatmul.mubr.bf16.gmra.mrb[0].mxu0 %v3438
      %v3547 = vpop.f32.mrb[0].mxu0
      %v3548 = vadd.f32 0.0, %v3547
      %v3549 = vpop.f32.mrb[0].mxu0
      %v3550 = vpop.f32.mrb[0].mxu0
      %v3551 = vadd.f32 0.0, %v3550
      %v3552 = vpop.f32.mrb[0].mxu0
      %3553 = vmatprep.mubr.bf16.mxu0 0
      %3554 = vmatmul.mubr.bf16.gmra.mrb[0].mxu0 %v3441
      %v3555 = vpop.f32.mrb[0].mxu0
      %v3556 = vadd.f32 0.0, %v3555
      %v3557 = vpop.f32.mrb[0].mxu0
      %v3558 = vpop.f32.mrb[0].mxu0
      %v3559 = vadd.f32 0.0, %v3558
      %v3560 = vpop.f32.mrb[0].mxu0
      %3561 = vmatprep.mubr.bf16.mxu0 0
      %3562 = vmatmul.mubr.bf16.gmra.mrb[0].mxu0 %v3444
      %v3563 = vpop.f32.mrb[0].mxu0
      %v3564 = vadd.f32 0.0, %v3563
      %v3565 = vpop.f32.mrb[0].mxu0
      %v3566 = vpop.f32.mrb[0].mxu0
      %v3567 = vadd.f32 0.0, %v3566
      %v3568 = vpop.f32.mrb[0].mxu0
      %3569 = vmatprep.mubr.bf16.mxu0 0
      %3570 = vmatmul.mubr.bf16.gmra.mrb[0].mxu0 %v3447
      %v3571 = vpop.f32.mrb[0].mxu0
      %v3572 = vadd.f32 0.0, %v3571
      %v3573 = vpop.f32.mrb[0].mxu0
      %v3574 = vpop.f32.mrb[0].mxu0
      %v3575 = vadd.f32 0.0, %v3574
      %v3576 = vpop.f32.mrb[0].mxu0
      %3577 = vmatprep.mubr.bf16.mxu0 0
      %3578 = vmatmul.mubr.bf16.gmra.mrb[0].mxu0 %v3450
      %v3579 = vpop.f32.mrb[0].mxu0
      %v3580 = vadd.f32 0.0, %v3579
      %v3581 = vpop.f32.mrb[0].mxu0
      %v3582 = vpop.f32.mrb[0].mxu0
      %v3583 = vadd.f32 0.0, %v3582
      %v3584 = vpop.f32.mrb[0].mxu0
      %3585 = vmatprep.mubr.bf16.mxu0 0
      %3586 = vmatmul.mubr.bf16.gmra.mrb[0].mxu0 %v3453
      %v3587 = vpop.f32.mrb[0].mxu0
      %v3588 = vadd.f32 0.0, %v3587
      %v3589 = vpop.f32.mrb[0].mxu0
      %v3590 = vpop.f32.mrb[0].mxu0
      %v3591 = vadd.f32 0.0, %v3590
      %v3592 = vpop.f32.mrb[0].mxu0
      %3593 = vmatprep.mubr.bf16.mxu0 0
      %3594 = vmatmul.mubr.bf16.gmra.mrb[0].mxu0 %v3456
      %v3595 = vpop.f32.mrb[0].mxu0
      %v3596 = vadd.f32 0.0, %v3595
      %v3597 = vpop.f32.mrb[0].mxu0
      %v3598 = vpop.f32.mrb[0].mxu0
      %v3599 = vadd.f32 0.0, %v3598
      %v3600 = vpop.f32.mrb[0].mxu0
      %3601 = vmatprep.mubr.bf16.mxu0 0
      %3602 = vmatmul.mubr.bf16.gmra.mrb[0].mxu0 %v3459
      %v3603 = vpop.f32.mrb[0].mxu0
      %v3604 = vadd.f32 0.0, %v3603
      %v3605 = vpop.f32.mrb[0].mxu0
      %v3606 = vpop.f32.mrb[0].mxu0
      %v3607 = vadd.f32 0.0, %v3606
      %v3608 = vpop.f32.mrb[0].mxu0
      %3609 = vmatprep.mubr.bf16.mxu0 0
      %3610 = vmatmul.mubr.bf16.gmra.mrb[0].mxu0 %v3462
      %v3611 = vpop.f32.mrb[0].mxu0
      %v3612 = vadd.f32 0.0, %v3611
      %v3613 = vpop.f32.mrb[0].mxu0
      %v3614 = vpop.f32.mrb[0].mxu0
      %v3615 = vadd.f32 0.0, %v3614
      %v3616 = vpop.f32.mrb[0].mxu0
      %3617 = vmatprep.mubr.bf16.mxu0 0
      %3618 = vmatmul.mubr.bf16.gmra.mrb[0].mxu0 %v3465
      %v3619 = vpop.f32.mrb[0].mxu0
      %v3620 = vadd.f32 0.0, %v3619
      %v3621 = vpop.f32.mrb[0].mxu0
      %v3622 = vpop.f32.mrb[0].mxu0
      %v3623 = vadd.f32 0.0, %v3622
      %v3624 = vpop.f32.mrb[0].mxu0
      %3625 = vmatprep.mubr.bf16.mxu0 0
      %3626 = vmatmul.mubr.bf16.gmra.mrb[0].mxu0 %v3468
      %v3627 = vpop.f32.mrb[0].mxu0
      %v3628 = vadd.f32 0.0, %v3627
      %v3629 = vpop.f32.mrb[0].mxu0
      %v3630 = vpop.f32.mrb[0].mxu0
      %v3631 = vadd.f32 0.0, %v3630
      %v3632 = vpop.f32.mrb[0].mxu0
      %3633 = vdwg.mxu0
      %v3634 = vadd.f32 %v3275, %v3508
      %v3635 = vadd.f32 %v3276, %v3511
      %v3636 = vadd.f32 %v3277, %v3516
      %v3637 = vadd.f32 %v3278, %v3519
      %v3638 = vadd.f32 %v3279, %v3524
      %v3639 = vadd.f32 %v3280, %v3527
      %v3640 = vadd.f32 %v3281, %v3532
      %v3641 = vadd.f32 %v3282, %v3535
      %v3642 = vadd.f32 %v3283, %v3540
      %v3643 = vadd.f32 %v3284, %v3543
      %v3644 = vadd.f32 %v3285, %v3548
      %v3645 = vadd.f32 %v3286, %v3551
      %v3646 = vadd.f32 %v3287, %v3556
      %v3647 = vadd.f32 %v3288, %v3559
      %v3648 = vadd.f32 %v3289, %v3564
      %v3649 = vadd.f32 %v3290, %v3567
      %v3650 = vadd.f32 %v3291, %v3572
      %v3651 = vadd.f32 %v3292, %v3575
      %v3652 = vadd.f32 %v3293, %v3580
      %v3653 = vadd.f32 %v3294, %v3583
      %v3654 = vadd.f32 %v3295, %v3588
      %v3655 = vadd.f32 %v3296, %v3591
      %v3656 = vadd.f32 %v3297, %v3596
      %v3657 = vadd.f32 %v3298, %v3599
      %v3658 = vadd.f32 %v3299, %v3604
      %v3659 = vadd.f32 %v3300, %v3607
      %v3660 = vadd.f32 %v3301, %v3612
      %v3661 = vadd.f32 %v3302, %v3615
      %v3662 = vadd.f32 %v3303, %v3620
      %v3663 = vadd.f32 %v3304, %v3623
      %v3664 = vadd.f32 %v3305, %v3628
      %v3665 = vadd.f32 %v3306, %v3631
      %v3666 = vld [vmem:[%s3307] sm:$0xf]
      %v3667 = vld [vmem:[%s3307 + $0x4] sm:$0xf]
      %v3668 = vld [vmem:[%s3307 + $0x8] sm:$0x1]
      %v3669 = vld [vmem:[%s3307 + $0xc] sm:$0xf]
      %v3670 = vld [vmem:[%s3307 + $0x10] sm:$0xf]
      %v3671 = vld [vmem:[%s3307 + $0x14] sm:$0x1]
      %v3672 = vld [vmem:[%s3307 + $0x18] sm:$0xf]
      %v3673 = vld [vmem:[%s3307 + $0x1c] sm:$0xf]
      %v3674 = vld [vmem:[%s3307 + $0x20] sm:$0x1]
      %v3675 = vld [vmem:[%s3307 + $0x24] sm:$0xf]
      %v3676 = vld [vmem:[%s3307 + $0x28] sm:$0xf]
      %v3677 = vld [vmem:[%s3307 + $0x2c] sm:$0x1]
      %v3678 = vld [vmem:[%s3307 + $0x30] sm:$0xf]
      %v3679 = vld [vmem:[%s3307 + $0x34] sm:$0xf]
      %v3680 = vld [vmem:[%s3307 + $0x38] sm:$0x1]
      %v3681 = vld [vmem:[%s3307 + $0x3c] sm:$0xf]
      %v3682 = vld [vmem:[%s3307 + $0x40] sm:$0xf]
      %v3683 = vld [vmem:[%s3307 + $0x44] sm:$0x1]
      %v3684 = vld [vmem:[%s3307 + $0x48] sm:$0xf]
      %v3685 = vld [vmem:[%s3307 + $0x4c] sm:$0xf]
      %v3686 = vld [vmem:[%s3307 + $0x50] sm:$0x1]
      %v3687 = vld [vmem:[%s3307 + $0x54] sm:$0xf]
      %v3688 = vld [vmem:[%s3307 + $0x58] sm:$0xf]
      %v3689 = vld [vmem:[%s3307 + $0x5c] sm:$0x1]
      %v3690 = vld [vmem:[%s3307 + $0x60] sm:$0xf]
      %v3691 = vld [vmem:[%s3307 + $0x64] sm:$0xf]
      %v3692 = vld [vmem:[%s3307 + $0x68] sm:$0x1]
      %v3693 = vld [vmem:[%s3307 + $0x6c] sm:$0xf]
      %v3694 = vld [vmem:[%s3307 + $0x70] sm:$0xf]
      %v3695 = vld [vmem:[%s3307 + $0x74] sm:$0x1]
      %v3696 = vld [vmem:[%s3307 + $0x78] sm:$0xf]
      %v3697 = vld [vmem:[%s3307 + $0x7c] sm:$0xf]
      %v3698 = vld [vmem:[%s3307 + $0x80] sm:$0x1]
      %v3699 = vld [vmem:[%s3307 + $0x84] sm:$0xf]
      %v3700 = vld [vmem:[%s3307 + $0x88] sm:$0xf]
      %v3701 = vld [vmem:[%s3307 + $0x8c] sm:$0x1]
      %v3702 = vld [vmem:[%s3307 + $0x90] sm:$0xf]
      %v3703 = vld [vmem:[%s3307 + $0x94] sm:$0xf]
      %v3704 = vld [vmem:[%s3307 + $0x98] sm:$0x1]
      %v3705 = vld [vmem:[%s3307 + $0x9c] sm:$0xf]
      %v3706 = vld [vmem:[%s3307 + $0xa0] sm:$0xf]
      %v3707 = vld [vmem:[%s3307 + $0xa4] sm:$0x1]
      %v3708 = vld [vmem:[%s3307 + $0xa8] sm:$0xf]
      %v3709 = vld [vmem:[%s3307 + $0xac] sm:$0xf]
      %v3710 = vld [vmem:[%s3307 + $0xb0] sm:$0x1]
      %v3711 = vld [vmem:[%s3307 + $0xb4] sm:$0xf]
      %v3712 = vld [vmem:[%s3307 + $0xb8] sm:$0xf]
      %v3713 = vld [vmem:[%s3307 + $0xbc] sm:$0x1]
      %v3715 = vshrl.u32 %v3666, 16
      %v3717 = vrot.slane %v3715, 4
      %v3718 = vshll.u32 %v3666, 16
      %v3720 = vrot.slane %v3718, 5
      %v3721 = vor.u32 %v3717, %v3720
      %v3722 = vrot.slane %v3721, 4
      %v3724 = vshll.u32 %v3667, 16
      %v3726 = vrot.slane %v3724, 5
      %v3727 = vsel %vm354, %v3722, %v3726
      %v3728 = vshrl.u32 %v3667, 16
      %v3730 = vrot.slane %v3728, 4
      %v3731 = vor.u32 %v3730, %v3726
      %v3732 = vrot.slane %v3731, 4
      %v3734 = vshll.u32 %v3668, 16
      %v3736 = vrot.slane %v3734, 5
      %v3737 = vsel %vm354, %v3732, %v3736
      %v3739 = vshrl.u32 %v3669, 16
      %v3741 = vrot.slane %v3739, 4
      %v3742 = vshll.u32 %v3669, 16
      %v3744 = vrot.slane %v3742, 5
      %v3745 = vor.u32 %v3741, %v3744
      %v3746 = vrot.slane %v3745, 4
      %v3748 = vshll.u32 %v3670, 16
      %v3750 = vrot.slane %v3748, 5
      %v3751 = vsel %vm354, %v3746, %v3750
      %v3752 = vshrl.u32 %v3670, 16
      %v3754 = vrot.slane %v3752, 4
      %v3755 = vor.u32 %v3754, %v3750
      %v3756 = vrot.slane %v3755, 4
      %v3758 = vshll.u32 %v3671, 16
      %v3760 = vrot.slane %v3758, 5
      %v3761 = vsel %vm354, %v3756, %v3760
      %v3763 = vshrl.u32 %v3672, 16
      %v3765 = vrot.slane %v3763, 4
      %v3766 = vshll.u32 %v3672, 16
      %v3768 = vrot.slane %v3766, 5
      %v3769 = vor.u32 %v3765, %v3768
      %v3770 = vrot.slane %v3769, 4
      %v3772 = vshll.u32 %v3673, 16
      %v3774 = vrot.slane %v3772, 5
      %v3775 = vsel %vm354, %v3770, %v3774
      %v3776 = vshrl.u32 %v3673, 16
      %v3778 = vrot.slane %v3776, 4
      %v3779 = vor.u32 %v3778, %v3774
      %v3780 = vrot.slane %v3779, 4
      %v3782 = vshll.u32 %v3674, 16
      %v3784 = vrot.slane %v3782, 5
      %v3785 = vsel %vm354, %v3780, %v3784
      %v3787 = vshrl.u32 %v3675, 16
      %v3789 = vrot.slane %v3787, 4
      %v3790 = vshll.u32 %v3675, 16
      %v3792 = vrot.slane %v3790, 5
      %v3793 = vor.u32 %v3789, %v3792
      %v3794 = vrot.slane %v3793, 4
      %v3796 = vshll.u32 %v3676, 16
      %v3798 = vrot.slane %v3796, 5
      %v3799 = vsel %vm354, %v3794, %v3798
      %v3800 = vshrl.u32 %v3676, 16
      %v3802 = vrot.slane %v3800, 4
      %v3803 = vor.u32 %v3802, %v3798
      %v3804 = vrot.slane %v3803, 4
      %v3806 = vshll.u32 %v3677, 16
      %v3808 = vrot.slane %v3806, 5
      %v3809 = vsel %vm354, %v3804, %v3808
      %v3811 = vshrl.u32 %v3678, 16
      %v3813 = vrot.slane %v3811, 4
      %v3814 = vshll.u32 %v3678, 16
      %v3816 = vrot.slane %v3814, 5
      %v3817 = vor.u32 %v3813, %v3816
      %v3818 = vrot.slane %v3817, 4
      %v3820 = vshll.u32 %v3679, 16
      %v3822 = vrot.slane %v3820, 5
      %v3823 = vsel %vm354, %v3818, %v3822
      %v3824 = vshrl.u32 %v3679, 16
      %v3826 = vrot.slane %v3824, 4
      %v3827 = vor.u32 %v3826, %v3822
      %v3828 = vrot.slane %v3827, 4
      %v3830 = vshll.u32 %v3680, 16
      %v3832 = vrot.slane %v3830, 5
      %v3833 = vsel %vm354, %v3828, %v3832
      %v3835 = vshrl.u32 %v3681, 16
      %v3837 = vrot.slane %v3835, 4
      %v3838 = vshll.u32 %v3681, 16
      %v3840 = vrot.slane %v3838, 5
      %v3841 = vor.u32 %v3837, %v3840
      %v3842 = vrot.slane %v3841, 4
      %v3844 = vshll.u32 %v3682, 16
      %v3846 = vrot.slane %v3844, 5
      %v3847 = vsel %vm354, %v3842, %v3846
      %v3848 = vshrl.u32 %v3682, 16
      %v3850 = vrot.slane %v3848, 4
      %v3851 = vor.u32 %v3850, %v3846
      %v3852 = vrot.slane %v3851, 4
      %v3854 = vshll.u32 %v3683, 16
      %v3856 = vrot.slane %v3854, 5
      %v3857 = vsel %vm354, %v3852, %v3856
      %v3859 = vshrl.u32 %v3684, 16
      %v3861 = vrot.slane %v3859, 4
      %v3862 = vshll.u32 %v3684, 16
      %v3864 = vrot.slane %v3862, 5
      %v3865 = vor.u32 %v3861, %v3864
      %v3866 = vrot.slane %v3865, 4
      %v3868 = vshll.u32 %v3685, 16
      %v3870 = vrot.slane %v3868, 5
      %v3871 = vsel %vm354, %v3866, %v3870
      %v3872 = vshrl.u32 %v3685, 16
      %v3874 = vrot.slane %v3872, 4
      %v3875 = vor.u32 %v3874, %v3870
      %v3876 = vrot.slane %v3875, 4
      %v3878 = vshll.u32 %v3686, 16
      %v3880 = vrot.slane %v3878, 5
      %v3881 = vsel %vm354, %v3876, %v3880
      %v3883 = vshrl.u32 %v3687, 16
      %v3885 = vrot.slane %v3883, 4
      %v3886 = vshll.u32 %v3687, 16
      %v3888 = vrot.slane %v3886, 5
      %v3889 = vor.u32 %v3885, %v3888
      %v3890 = vrot.slane %v3889, 4
      %v3892 = vshll.u32 %v3688, 16
      %v3894 = vrot.slane %v3892, 5
      %v3895 = vsel %vm354, %v3890, %v3894
      %v3896 = vshrl.u32 %v3688, 16
      %v3898 = vrot.slane %v3896, 4
      %v3899 = vor.u32 %v3898, %v3894
      %v3900 = vrot.slane %v3899, 4
      %v3902 = vshll.u32 %v3689, 16
      %v3904 = vrot.slane %v3902, 5
      %v3905 = vsel %vm354, %v3900, %v3904
      %v3907 = vshrl.u32 %v3690, 16
      %v3909 = vrot.slane %v3907, 4
      %v3910 = vshll.u32 %v3690, 16
      %v3912 = vrot.slane %v3910, 5
      %v3913 = vor.u32 %v3909, %v3912
      %v3914 = vrot.slane %v3913, 4
      %v3916 = vshll.u32 %v3691, 16
      %v3918 = vrot.slane %v3916, 5
      %v3919 = vsel %vm354, %v3914, %v3918
      %v3920 = vshrl.u32 %v3691, 16
      %v3922 = vrot.slane %v3920, 4
      %v3923 = vor.u32 %v3922, %v3918
      %v3924 = vrot.slane %v3923, 4
      %v3926 = vshll.u32 %v3692, 16
      %v3928 = vrot.slane %v3926, 5
      %v3929 = vsel %vm354, %v3924, %v3928
      %v3931 = vshrl.u32 %v3693, 16
      %v3933 = vrot.slane %v3931, 4
      %v3934 = vshll.u32 %v3693, 16
      %v3936 = vrot.slane %v3934, 5
      %v3937 = vor.u32 %v3933, %v3936
      %v3938 = vrot.slane %v3937, 4
      %v3940 = vshll.u32 %v3694, 16
      %v3942 = vrot.slane %v3940, 5
      %v3943 = vsel %vm354, %v3938, %v3942
      %v3944 = vshrl.u32 %v3694, 16
      %v3946 = vrot.slane %v3944, 4
      %v3947 = vor.u32 %v3946, %v3942
      %v3948 = vrot.slane %v3947, 4
      %v3950 = vshll.u32 %v3695, 16
      %v3952 = vrot.slane %v3950, 5
      %v3953 = vsel %vm354, %v3948, %v3952
      %v3955 = vshrl.u32 %v3696, 16
      %v3957 = vrot.slane %v3955, 4
      %v3958 = vshll.u32 %v3696, 16
      %v3960 = vrot.slane %v3958, 5
      %v3961 = vor.u32 %v3957, %v3960
      %v3962 = vrot.slane %v3961, 4
      %v3964 = vshll.u32 %v3697, 16
      %v3966 = vrot.slane %v3964, 5
      %v3967 = vsel %vm354, %v3962, %v3966
      %v3968 = vshrl.u32 %v3697, 16
      %v3970 = vrot.slane %v3968, 4
      %v3971 = vor.u32 %v3970, %v3966
      %v3972 = vrot.slane %v3971, 4
      %v3974 = vshll.u32 %v3698, 16
      %v3976 = vrot.slane %v3974, 5
      %v3977 = vsel %vm354, %v3972, %v3976
      %v3979 = vshrl.u32 %v3699, 16
      %v3981 = vrot.slane %v3979, 4
      %v3982 = vshll.u32 %v3699, 16
      %v3984 = vrot.slane %v3982, 5
      %v3985 = vor.u32 %v3981, %v3984
      %v3986 = vrot.slane %v3985, 4
      %v3988 = vshll.u32 %v3700, 16
      %v3990 = vrot.slane %v3988, 5
      %v3991 = vsel %vm354, %v3986, %v3990
      %v3992 = vshrl.u32 %v3700, 16
      %v3994 = vrot.slane %v3992, 4
      %v3995 = vor.u32 %v3994, %v3990
      %v3996 = vrot.slane %v3995, 4
      %v3998 = vshll.u32 %v3701, 16
      %v4000 = vrot.slane %v3998, 5
      %v4001 = vsel %vm354, %v3996, %v4000
      %v4003 = vshrl.u32 %v3702, 16
      %v4005 = vrot.slane %v4003, 4
      %v4006 = vshll.u32 %v3702, 16
      %v4008 = vrot.slane %v4006, 5
      %v4009 = vor.u32 %v4005, %v4008
      %v4010 = vrot.slane %v4009, 4
      %v4012 = vshll.u32 %v3703, 16
      %v4014 = vrot.slane %v4012, 5
      %v4015 = vsel %vm354, %v4010, %v4014
      %v4016 = vshrl.u32 %v3703, 16
      %v4018 = vrot.slane %v4016, 4
      %v4019 = vor.u32 %v4018, %v4014
      %v4020 = vrot.slane %v4019, 4
      %v4022 = vshll.u32 %v3704, 16
      %v4024 = vrot.slane %v4022, 5
      %v4025 = vsel %vm354, %v4020, %v4024
      %v4027 = vshrl.u32 %v3705, 16
      %v4029 = vrot.slane %v4027, 4
      %v4030 = vshll.u32 %v3705, 16
      %v4032 = vrot.slane %v4030, 5
      %v4033 = vor.u32 %v4029, %v4032
      %v4034 = vrot.slane %v4033, 4
      %v4036 = vshll.u32 %v3706, 16
      %v4038 = vrot.slane %v4036, 5
      %v4039 = vsel %vm354, %v4034, %v4038
      %v4040 = vshrl.u32 %v3706, 16
      %v4042 = vrot.slane %v4040, 4
      %v4043 = vor.u32 %v4042, %v4038
      %v4044 = vrot.slane %v4043, 4
      %v4046 = vshll.u32 %v3707, 16
      %v4048 = vrot.slane %v4046, 5
      %v4049 = vsel %vm354, %v4044, %v4048
      %v4051 = vshrl.u32 %v3708, 16
      %v4053 = vrot.slane %v4051, 4
      %v4054 = vshll.u32 %v3708, 16
      %v4056 = vrot.slane %v4054, 5
      %v4057 = vor.u32 %v4053, %v4056
      %v4058 = vrot.slane %v4057, 4
      %v4060 = vshll.u32 %v3709, 16
      %v4062 = vrot.slane %v4060, 5
      %v4063 = vsel %vm354, %v4058, %v4062
      %v4064 = vshrl.u32 %v3709, 16
      %v4066 = vrot.slane %v4064, 4
      %v4067 = vor.u32 %v4066, %v4062
      %v4068 = vrot.slane %v4067, 4
      %v4070 = vshll.u32 %v3710, 16
      %v4072 = vrot.slane %v4070, 5
      %v4073 = vsel %vm354, %v4068, %v4072
      %v4075 = vshrl.u32 %v3711, 16
      %v4077 = vrot.slane %v4075, 4
      %v4078 = vshll.u32 %v3711, 16
      %v4080 = vrot.slane %v4078, 5
      %v4081 = vor.u32 %v4077, %v4080
      %v4082 = vrot.slane %v4081, 4
      %v4084 = vshll.u32 %v3712, 16
      %v4086 = vrot.slane %v4084, 5
      %v4087 = vsel %vm354, %v4082, %v4086
      %v4088 = vshrl.u32 %v3712, 16
      %v4090 = vrot.slane %v4088, 4
      %v4091 = vor.u32 %v4090, %v4086
      %v4092 = vrot.slane %v4091, 4
      %v4094 = vshll.u32 %v3713, 16
      %v4096 = vrot.slane %v4094, 5
      %v4097 = vsel %vm354, %v4092, %v4096
      %s4098 = scalar_lea.vmem %s1, 14
      %v4099 = vld [vmem:[%s4098] sm:$0x3]
      %v4100 = vunpack.c.l.b16 %v3727
      %v4101 = vunpack.c.l.b16 %v3737
      %v4102 = vunpack.c.l.b16 %v3751
      %v4103 = vunpack.c.l.b16 %v3761
      %v4104 = vunpack.c.l.b16 %v3775
      %v4105 = vunpack.c.l.b16 %v3785
      %v4106 = vunpack.c.l.b16 %v3799
      %v4107 = vunpack.c.l.b16 %v3809
      %v4108 = vunpack.c.l.b16 %v3823
      %v4109 = vunpack.c.l.b16 %v3833
      %v4110 = vunpack.c.l.b16 %v3847
      %v4111 = vunpack.c.l.b16 %v3857
      %v4112 = vunpack.c.l.b16 %v3871
      %v4113 = vunpack.c.l.b16 %v3881
      %v4114 = vunpack.c.l.b16 %v3895
      %v4115 = vunpack.c.l.b16 %v3905
      %v4116 = vunpack.c.l.b16 %v3919
      %v4117 = vunpack.c.l.b16 %v3929
      %v4118 = vunpack.c.l.b16 %v3943
      %v4119 = vunpack.c.l.b16 %v3953
      %v4120 = vunpack.c.l.b16 %v3967
      %v4121 = vunpack.c.l.b16 %v3977
      %v4122 = vunpack.c.l.b16 %v3991
      %v4123 = vunpack.c.l.b16 %v4001
      %v4124 = vunpack.c.l.b16 %v4015
      %v4125 = vunpack.c.l.b16 %v4025
      %v4126 = vunpack.c.l.b16 %v4039
      %v4127 = vunpack.c.l.b16 %v4049
      %v4128 = vunpack.c.l.b16 %v4063
      %v4129 = vunpack.c.l.b16 %v4073
      %v4130 = vunpack.c.l.b16 %v4087
      %v4131 = vunpack.c.l.b16 %v4097
      %v4132 = vpack.c.b16 %v4101, %v4100
      %v4133 = vpack.c.b16 %v4103, %v4102
      %v4134 = vpack.c.b16 %v4105, %v4104
      %v4135 = vpack.c.b16 %v4107, %v4106
      %v4136 = vpack.c.b16 %v4109, %v4108
      %v4137 = vpack.c.b16 %v4111, %v4110
      %v4138 = vpack.c.b16 %v4113, %v4112
      %v4139 = vpack.c.b16 %v4115, %v4114
      %v4140 = vpack.c.b16 %v4117, %v4116
      %v4141 = vpack.c.b16 %v4119, %v4118
      %v4142 = vpack.c.b16 %v4121, %v4120
      %v4143 = vpack.c.b16 %v4123, %v4122
      %v4144 = vpack.c.b16 %v4125, %v4124
      %v4145 = vpack.c.b16 %v4127, %v4126
      %v4146 = vpack.c.b16 %v4129, %v4128
      %v4147 = vpack.c.b16 %v4131, %v4130
      %v4149 = vsel %vm789, %v4132, 0
      %v4152 = vsel %vm789, %v4133, 0
      %v4155 = vsel %vm789, %v4134, 0
      %v4158 = vsel %vm789, %v4135, 0
      %v4161 = vsel %vm789, %v4136, 0
      %v4164 = vsel %vm789, %v4137, 0
      %v4167 = vsel %vm789, %v4138, 0
      %v4170 = vsel %vm789, %v4139, 0
      %v4173 = vsel %vm789, %v4140, 0
      %v4176 = vsel %vm789, %v4141, 0
      %v4179 = vsel %vm789, %v4142, 0
      %v4182 = vsel %vm789, %v4143, 0
      %v4185 = vsel %vm789, %v4144, 0
      %v4188 = vsel %vm789, %v4145, 0
      %v4191 = vsel %vm789, %v4146, 0
      %v4194 = vsel %vm789, %v4147, 0
      %v4197 = vsel %vm838, %v4099, 0
      %4199 = vmatprep.subr.bf16.mxu0 0
      %4200 = vmatpush1.bf16.msra.mxu0 %v4197
      %4201 = vmatprep.subr.bf16.mxu0 0
      %4202 = vmatpush1.bf16.msra.mxu0 0
      %4203 = vmatprep.subr.bf16.mxu0 0
      %4204 = vmatpush1.bf16.msra.mxu0 0
      %4205 = vmatprep.subr.bf16.mxu0 0
      %4206 = vmatpush1.bf16.msra.mxu0 0
      %4207 = vmatprep.subr.bf16.mxu0 0
      %4208 = vmatpush1.bf16.msra.mxu0 0
      %4209 = vmatprep.subr.bf16.mxu0 0
      %4210 = vmatpush1.bf16.msra.mxu0 0
      %4211 = vmatprep.subr.bf16.mxu0 0
      %4212 = vmatpush1.bf16.msra.mxu0 0
      %4213 = vmatprep.subr.bf16.mxu0 0
      %4214 = vmatpush1.bf16.msra.mxu0 0
      %4215 = vmatprep.subr.bf16.mxu0 0
      %4216 = vmatpush1.bf16.msra.mxu0 0
      %4217 = vmatprep.subr.bf16.mxu0 0
      %4218 = vmatpush1.bf16.msra.mxu0 0
      %4219 = vmatprep.subr.bf16.mxu0 0
      %4220 = vmatpush1.bf16.msra.mxu0 0
      %4221 = vmatprep.subr.bf16.mxu0 0
      %4222 = vmatpush1.bf16.msra.mxu0 0
      %4223 = vmatprep.subr.bf16.mxu0 0
      %4224 = vmatpush1.bf16.msra.mxu0 0
      %4225 = vmatprep.subr.bf16.mxu0 0
      %4226 = vmatpush1.bf16.msra.mxu0 0
      %4227 = vmatprep.subr.bf16.mxu0 0
      %4228 = vmatpush1.bf16.msra.mxu0 0
      %4229 = vmatprep.subr.bf16.mxu0 0
      %4230 = vmatpush1.bf16.msra.mxu0 0
      %4231 = vmatprep.mubr.bf16.mxu0 0
      %4232 = vmatmul.mubr.bf16.gmra.mrb[0].mxu0 %v4149
      %v4233 = vpop.f32.mrb[0].mxu0
      %v4234 = vadd.f32 0.0, %v4233
      %v4235 = vpop.f32.mrb[0].mxu0
      %v4236 = vpop.f32.mrb[0].mxu0
      %v4237 = vadd.f32 0.0, %v4236
      %v4238 = vpop.f32.mrb[0].mxu0
      %4239 = vmatprep.mubr.bf16.mxu0 0
      %4240 = vmatmul.mubr.bf16.gmra.mrb[0].mxu0 %v4152
      %v4241 = vpop.f32.mrb[0].mxu0
      %v4242 = vadd.f32 0.0, %v4241
      %v4243 = vpop.f32.mrb[0].mxu0
      %v4244 = vpop.f32.mrb[0].mxu0
      %v4245 = vadd.f32 0.0, %v4244
      %v4246 = vpop.f32.mrb[0].mxu0
      %4247 = vmatprep.mubr.bf16.mxu0 0
      %4248 = vmatmul.mubr.bf16.gmra.mrb[0].mxu0 %v4155
      %v4249 = vpop.f32.mrb[0].mxu0
      %v4250 = vadd.f32 0.0, %v4249
      %v4251 = vpop.f32.mrb[0].mxu0
      %v4252 = vpop.f32.mrb[0].mxu0
      %v4253 = vadd.f32 0.0, %v4252
      %v4254 = vpop.f32.mrb[0].mxu0
      %4255 = vmatprep.mubr.bf16.mxu0 0
      %4256 = vmatmul.mubr.bf16.gmra.mrb[0].mxu0 %v4158
      %v4257 = vpop.f32.mrb[0].mxu0
      %v4258 = vadd.f32 0.0, %v4257
      %v4259 = vpop.f32.mrb[0].mxu0
      %v4260 = vpop.f32.mrb[0].mxu0
      %v4261 = vadd.f32 0.0, %v4260
      %v4262 = vpop.f32.mrb[0].mxu0
      %4263 = vmatprep.mubr.bf16.mxu0 0
      %4264 = vmatmul.mubr.bf16.gmra.mrb[0].mxu0 %v4161
      %v4265 = vpop.f32.mrb[0].mxu0
      %v4266 = vadd.f32 0.0, %v4265
      %v4267 = vpop.f32.mrb[0].mxu0
      %v4268 = vpop.f32.mrb[0].mxu0
      %v4269 = vadd.f32 0.0, %v4268
      %v4270 = vpop.f32.mrb[0].mxu0
      %4271 = vmatprep.mubr.bf16.mxu0 0
      %4272 = vmatmul.mubr.bf16.gmra.mrb[0].mxu0 %v4164
      %v4273 = vpop.f32.mrb[0].mxu0
      %v4274 = vadd.f32 0.0, %v4273
      %v4275 = vpop.f32.mrb[0].mxu0
      %v4276 = vpop.f32.mrb[0].mxu0
      %v4277 = vadd.f32 0.0, %v4276
      %v4278 = vpop.f32.mrb[0].mxu0
      %4279 = vmatprep.mubr.bf16.mxu0 0
      %4280 = vmatmul.mubr.bf16.gmra.mrb[0].mxu0 %v4167
      %v4281 = vpop.f32.mrb[0].mxu0
      %v4282 = vadd.f32 0.0, %v4281
      %v4283 = vpop.f32.mrb[0].mxu0
      %v4284 = vpop.f32.mrb[0].mxu0
      %v4285 = vadd.f32 0.0, %v4284
      %v4286 = vpop.f32.mrb[0].mxu0
      %4287 = vmatprep.mubr.bf16.mxu0 0
      %4288 = vmatmul.mubr.bf16.gmra.mrb[0].mxu0 %v4170
      %v4289 = vpop.f32.mrb[0].mxu0
      %v4290 = vadd.f32 0.0, %v4289
      %v4291 = vpop.f32.mrb[0].mxu0
      %v4292 = vpop.f32.mrb[0].mxu0
      %v4293 = vadd.f32 0.0, %v4292
      %v4294 = vpop.f32.mrb[0].mxu0
      %4295 = vmatprep.mubr.bf16.mxu0 0
      %4296 = vmatmul.mubr.bf16.gmra.mrb[0].mxu0 %v4173
      %v4297 = vpop.f32.mrb[0].mxu0
      %v4298 = vadd.f32 0.0, %v4297
      %v4299 = vpop.f32.mrb[0].mxu0
      %v4300 = vpop.f32.mrb[0].mxu0
      %v4301 = vadd.f32 0.0, %v4300
      %v4302 = vpop.f32.mrb[0].mxu0
      %4303 = vmatprep.mubr.bf16.mxu0 0
      %4304 = vmatmul.mubr.bf16.gmra.mrb[0].mxu0 %v4176
      %v4305 = vpop.f32.mrb[0].mxu0
      %v4306 = vadd.f32 0.0, %v4305
      %v4307 = vpop.f32.mrb[0].mxu0
      %v4308 = vpop.f32.mrb[0].mxu0
      %v4309 = vadd.f32 0.0, %v4308
      %v4310 = vpop.f32.mrb[0].mxu0
      %4311 = vmatprep.mubr.bf16.mxu0 0
      %4312 = vmatmul.mubr.bf16.gmra.mrb[0].mxu0 %v4179
      %v4313 = vpop.f32.mrb[0].mxu0
      %v4314 = vadd.f32 0.0, %v4313
      %v4315 = vpop.f32.mrb[0].mxu0
      %v4316 = vpop.f32.mrb[0].mxu0
      %v4317 = vadd.f32 0.0, %v4316
      %v4318 = vpop.f32.mrb[0].mxu0
      %4319 = vmatprep.mubr.bf16.mxu0 0
      %4320 = vmatmul.mubr.bf16.gmra.mrb[0].mxu0 %v4182
      %v4321 = vpop.f32.mrb[0].mxu0
      %v4322 = vadd.f32 0.0, %v4321
      %v4323 = vpop.f32.mrb[0].mxu0
      %v4324 = vpop.f32.mrb[0].mxu0
      %v4325 = vadd.f32 0.0, %v4324
      %v4326 = vpop.f32.mrb[0].mxu0
      %4327 = vmatprep.mubr.bf16.mxu0 0
      %4328 = vmatmul.mubr.bf16.gmra.mrb[0].mxu0 %v4185
      %v4329 = vpop.f32.mrb[0].mxu0
      %v4330 = vadd.f32 0.0, %v4329
      %v4331 = vpop.f32.mrb[0].mxu0
      %v4332 = vpop.f32.mrb[0].mxu0
      %v4333 = vadd.f32 0.0, %v4332
      %v4334 = vpop.f32.mrb[0].mxu0
      %4335 = vmatprep.mubr.bf16.mxu0 0
      %4336 = vmatmul.mubr.bf16.gmra.mrb[0].mxu0 %v4188
      %v4337 = vpop.f32.mrb[0].mxu0
      %v4338 = vadd.f32 0.0, %v4337
      %v4339 = vpop.f32.mrb[0].mxu0
      %v4340 = vpop.f32.mrb[0].mxu0
      %v4341 = vadd.f32 0.0, %v4340
      %v4342 = vpop.f32.mrb[0].mxu0
      %4343 = vmatprep.mubr.bf16.mxu0 0
      %4344 = vmatmul.mubr.bf16.gmra.mrb[0].mxu0 %v4191
      %v4345 = vpop.f32.mrb[0].mxu0
      %v4346 = vadd.f32 0.0, %v4345
      %v4347 = vpop.f32.mrb[0].mxu0
      %v4348 = vpop.f32.mrb[0].mxu0
      %v4349 = vadd.f32 0.0, %v4348
      %v4350 = vpop.f32.mrb[0].mxu0
      %4351 = vmatprep.mubr.bf16.mxu0 0
      %4352 = vmatmul.mubr.bf16.gmra.mrb[0].mxu0 %v4194
      %v4353 = vpop.f32.mrb[0].mxu0
      %v4354 = vadd.f32 0.0, %v4353
      %v4355 = vpop.f32.mrb[0].mxu0
      %v4356 = vpop.f32.mrb[0].mxu0
      %v4357 = vadd.f32 0.0, %v4356
      %v4358 = vpop.f32.mrb[0].mxu0
      %4359 = vdwg.mxu0
      %v4360 = vadd.f32 %v3634, %v4234
      %v4361 = vadd.f32 %v3635, %v4237
      %v4362 = vadd.f32 %v3636, %v4242
      %v4363 = vadd.f32 %v3637, %v4245
      %v4364 = vadd.f32 %v3638, %v4250
      %v4365 = vadd.f32 %v3639, %v4253
      %v4366 = vadd.f32 %v3640, %v4258
      %v4367 = vadd.f32 %v3641, %v4261
      %v4368 = vadd.f32 %v3642, %v4266
      %v4369 = vadd.f32 %v3643, %v4269
      %v4370 = vadd.f32 %v3644, %v4274
      %v4371 = vadd.f32 %v3645, %v4277
      %v4372 = vadd.f32 %v3646, %v4282
      %v4373 = vadd.f32 %v3647, %v4285
      %v4374 = vadd.f32 %v3648, %v4290
      %v4375 = vadd.f32 %v3649, %v4293
      %v4376 = vadd.f32 %v3650, %v4298
      %v4377 = vadd.f32 %v3651, %v4301
      %v4378 = vadd.f32 %v3652, %v4306
      %v4379 = vadd.f32 %v3653, %v4309
      %v4380 = vadd.f32 %v3654, %v4314
      %v4381 = vadd.f32 %v3655, %v4317
      %v4382 = vadd.f32 %v3656, %v4322
      %v4383 = vadd.f32 %v3657, %v4325
      %v4384 = vadd.f32 %v3658, %v4330
      %v4385 = vadd.f32 %v3659, %v4333
      %v4386 = vadd.f32 %v3660, %v4338
      %v4387 = vadd.f32 %v3661, %v4341
      %v4388 = vadd.f32 %v3662, %v4346
      %v4389 = vadd.f32 %v3663, %v4349
      %v4390 = vadd.f32 %v3664, %v4354
      %v4391 = vadd.f32 %v3665, %v4357
      %v4392 = vld [vmem:[%s3307] sm:$0xe]
      %v4393 = vld [vmem:[%s3307 + $0xc] sm:$0xe]
      %v4394 = vld [vmem:[%s3307 + $0x18] sm:$0xe]
      %v4395 = vld [vmem:[%s3307 + $0x24] sm:$0xe]
      %v4396 = vld [vmem:[%s3307 + $0x30] sm:$0xe]
      %v4397 = vld [vmem:[%s3307 + $0x3c] sm:$0xe]
      %v4398 = vld [vmem:[%s3307 + $0x48] sm:$0xe]
      %v4399 = vld [vmem:[%s3307 + $0x54] sm:$0xe]
      %v4400 = vld [vmem:[%s3307 + $0x60] sm:$0xe]
      %v4401 = vld [vmem:[%s3307 + $0x6c] sm:$0xe]
      %v4402 = vld [vmem:[%s3307 + $0x78] sm:$0xe]
      %v4403 = vld [vmem:[%s3307 + $0x84] sm:$0xe]
      %v4404 = vld [vmem:[%s3307 + $0x90] sm:$0xe]
      %v4405 = vld [vmem:[%s3307 + $0x9c] sm:$0xe]
      %v4406 = vld [vmem:[%s3307 + $0xa8] sm:$0xe]
      %v4407 = vld [vmem:[%s3307 + $0xb4] sm:$0xe]
      %v4456 = vrot.slane %v4392, 5
      %v4457 = vrot.slane %v4456, 4
      %v4458 = vrot.slane %v3667, 5
      %v4459 = vsel %vm1345, %v4457, %v4458
      %v4460 = vrot.slane %v4458, 4
      %v4461 = vrot.slane %v3668, 5
      %v4462 = vsel %vm1345, %v4460, %v4461
      %v4463 = vrot.slane %v4393, 5
      %v4464 = vrot.slane %v4463, 4
      %v4465 = vrot.slane %v3670, 5
      %v4466 = vsel %vm1345, %v4464, %v4465
      %v4467 = vrot.slane %v4465, 4
      %v4468 = vrot.slane %v3671, 5
      %v4469 = vsel %vm1345, %v4467, %v4468
      %v4470 = vrot.slane %v4394, 5
      %v4471 = vrot.slane %v4470, 4
      %v4472 = vrot.slane %v3673, 5
      %v4473 = vsel %vm1345, %v4471, %v4472
      %v4474 = vrot.slane %v4472, 4
      %v4475 = vrot.slane %v3674, 5
      %v4476 = vsel %vm1345, %v4474, %v4475
      %v4477 = vrot.slane %v4395, 5
      %v4478 = vrot.slane %v4477, 4
      %v4479 = vrot.slane %v3676, 5
      %v4480 = vsel %vm1345, %v4478, %v4479
      %v4481 = vrot.slane %v4479, 4
      %v4482 = vrot.slane %v3677, 5
      %v4483 = vsel %vm1345, %v4481, %v4482
      %v4484 = vrot.slane %v4396, 5
      %v4485 = vrot.slane %v4484, 4
      %v4486 = vrot.slane %v3679, 5
      %v4487 = vsel %vm1345, %v4485, %v4486
      %v4488 = vrot.slane %v4486, 4
      %v4489 = vrot.slane %v3680, 5
      %v4490 = vsel %vm1345, %v4488, %v4489
      %v4491 = vrot.slane %v4397, 5
      %v4492 = vrot.slane %v4491, 4
      %v4493 = vrot.slane %v3682, 5
      %v4494 = vsel %vm1345, %v4492, %v4493
      %v4495 = vrot.slane %v4493, 4
      %v4496 = vrot.slane %v3683, 5
      %v4497 = vsel %vm1345, %v4495, %v4496
      %v4498 = vrot.slane %v4398, 5
      %v4499 = vrot.slane %v4498, 4
      %v4500 = vrot.slane %v3685, 5
      %v4501 = vsel %vm1345, %v4499, %v4500
      %v4502 = vrot.slane %v4500, 4
      %v4503 = vrot.slane %v3686, 5
      %v4504 = vsel %vm1345, %v4502, %v4503
      %v4505 = vrot.slane %v4399, 5
      %v4506 = vrot.slane %v4505, 4
      %v4507 = vrot.slane %v3688, 5
      %v4508 = vsel %vm1345, %v4506, %v4507
      %v4509 = vrot.slane %v4507, 4
      %v4510 = vrot.slane %v3689, 5
      %v4511 = vsel %vm1345, %v4509, %v4510
      %v4512 = vrot.slane %v4400, 5
      %v4513 = vrot.slane %v4512, 4
      %v4514 = vrot.slane %v3691, 5
      %v4515 = vsel %vm1345, %v4513, %v4514
      %v4516 = vrot.slane %v4514, 4
      %v4517 = vrot.slane %v3692, 5
      %v4518 = vsel %vm1345, %v4516, %v4517
      %v4519 = vrot.slane %v4401, 5
      %v4520 = vrot.slane %v4519, 4
      %v4521 = vrot.slane %v3694, 5
      %v4522 = vsel %vm1345, %v4520, %v4521
      %v4523 = vrot.slane %v4521, 4
      %v4524 = vrot.slane %v3695, 5
      %v4525 = vsel %vm1345, %v4523, %v4524
      %v4526 = vrot.slane %v4402, 5
      %v4527 = vrot.slane %v4526, 4
      %v4528 = vrot.slane %v3697, 5
      %v4529 = vsel %vm1345, %v4527, %v4528
      %v4530 = vrot.slane %v4528, 4
      %v4531 = vrot.slane %v3698, 5
      %v4532 = vsel %vm1345, %v4530, %v4531
      %v4533 = vrot.slane %v4403, 5
      %v4534 = vrot.slane %v4533, 4
      %v4535 = vrot.slane %v3700, 5
      %v4536 = vsel %vm1345, %v4534, %v4535
      %v4537 = vrot.slane %v4535, 4
      %v4538 = vrot.slane %v3701, 5
      %v4539 = vsel %vm1345, %v4537, %v4538
      %v4540 = vrot.slane %v4404, 5
      %v4541 = vrot.slane %v4540, 4
      %v4542 = vrot.slane %v3703, 5
      %v4543 = vsel %vm1345, %v4541, %v4542
      %v4544 = vrot.slane %v4542, 4
      %v4545 = vrot.slane %v3704, 5
      %v4546 = vsel %vm1345, %v4544, %v4545
      %v4547 = vrot.slane %v4405, 5
      %v4548 = vrot.slane %v4547, 4
      %v4549 = vrot.slane %v3706, 5
      %v4550 = vsel %vm1345, %v4548, %v4549
      %v4551 = vrot.slane %v4549, 4
      %v4552 = vrot.slane %v3707, 5
      %v4553 = vsel %vm1345, %v4551, %v4552
      %v4554 = vrot.slane %v4406, 5
      %v4555 = vrot.slane %v4554, 4
      %v4556 = vrot.slane %v3709, 5
      %v4557 = vsel %vm1345, %v4555, %v4556
      %v4558 = vrot.slane %v4556, 4
      %v4559 = vrot.slane %v3710, 5
      %v4560 = vsel %vm1345, %v4558, %v4559
      %v4561 = vrot.slane %v4407, 5
      %v4562 = vrot.slane %v4561, 4
      %v4563 = vrot.slane %v3712, 5
      %v4564 = vsel %vm1345, %v4562, %v4563
      %v4565 = vrot.slane %v4563, 4
      %v4566 = vrot.slane %v3713, 5
      %v4567 = vsel %vm1345, %v4565, %v4566
      %s4568 = scalar_lea.vmem %s1, 16
      %v4569 = vld [vmem:[%s4568] sm:$0x3]
      %v4570 = vunpack.c.l.b16 %v4459
      %v4571 = vunpack.c.l.b16 %v4462
      %v4572 = vunpack.c.l.b16 %v4466
      %v4573 = vunpack.c.l.b16 %v4469
      %v4574 = vunpack.c.l.b16 %v4473
      %v4575 = vunpack.c.l.b16 %v4476
      %v4576 = vunpack.c.l.b16 %v4480
      %v4577 = vunpack.c.l.b16 %v4483
      %v4578 = vunpack.c.l.b16 %v4487
      %v4579 = vunpack.c.l.b16 %v4490
      %v4580 = vunpack.c.l.b16 %v4494
      %v4581 = vunpack.c.l.b16 %v4497
      %v4582 = vunpack.c.l.b16 %v4501
      %v4583 = vunpack.c.l.b16 %v4504
      %v4584 = vunpack.c.l.b16 %v4508
      %v4585 = vunpack.c.l.b16 %v4511
      %v4586 = vunpack.c.l.b16 %v4515
      %v4587 = vunpack.c.l.b16 %v4518
      %v4588 = vunpack.c.l.b16 %v4522
      %v4589 = vunpack.c.l.b16 %v4525
      %v4590 = vunpack.c.l.b16 %v4529
      %v4591 = vunpack.c.l.b16 %v4532
      %v4592 = vunpack.c.l.b16 %v4536
      %v4593 = vunpack.c.l.b16 %v4539
      %v4594 = vunpack.c.l.b16 %v4543
      %v4595 = vunpack.c.l.b16 %v4546
      %v4596 = vunpack.c.l.b16 %v4550
      %v4597 = vunpack.c.l.b16 %v4553
      %v4598 = vunpack.c.l.b16 %v4557
      %v4599 = vunpack.c.l.b16 %v4560
      %v4600 = vunpack.c.l.b16 %v4564
      %v4601 = vunpack.c.l.b16 %v4567
      %v4602 = vpack.c.b16 %v4571, %v4570
      %v4603 = vpack.c.b16 %v4573, %v4572
      %v4604 = vpack.c.b16 %v4575, %v4574
      %v4605 = vpack.c.b16 %v4577, %v4576
      %v4606 = vpack.c.b16 %v4579, %v4578
      %v4607 = vpack.c.b16 %v4581, %v4580
      %v4608 = vpack.c.b16 %v4583, %v4582
      %v4609 = vpack.c.b16 %v4585, %v4584
      %v4610 = vpack.c.b16 %v4587, %v4586
      %v4611 = vpack.c.b16 %v4589, %v4588
      %v4612 = vpack.c.b16 %v4591, %v4590
      %v4613 = vpack.c.b16 %v4593, %v4592
      %v4614 = vpack.c.b16 %v4595, %v4594
      %v4615 = vpack.c.b16 %v4597, %v4596
      %v4616 = vpack.c.b16 %v4599, %v4598
      %v4617 = vpack.c.b16 %v4601, %v4600
      %v4619 = vsel %vm789, %v4602, 0
      %v4622 = vsel %vm789, %v4603, 0
      %v4625 = vsel %vm789, %v4604, 0
      %v4628 = vsel %vm789, %v4605, 0
      %v4631 = vsel %vm789, %v4606, 0
      %v4634 = vsel %vm789, %v4607, 0
      %v4637 = vsel %vm789, %v4608, 0
      %v4640 = vsel %vm789, %v4609, 0
      %v4643 = vsel %vm789, %v4610, 0
      %v4646 = vsel %vm789, %v4611, 0
      %v4649 = vsel %vm789, %v4612, 0
      %v4652 = vsel %vm789, %v4613, 0
      %v4655 = vsel %vm789, %v4614, 0
      %v4658 = vsel %vm789, %v4615, 0
      %v4661 = vsel %vm789, %v4616, 0
      %v4664 = vsel %vm789, %v4617, 0
      %v4667 = vsel %vm838, %v4569, 0
      %4669 = vmatprep.subr.bf16.mxu0 0
      %4670 = vmatpush1.bf16.msra.mxu0 %v4667
      %4671 = vmatprep.subr.bf16.mxu0 0
      %4672 = vmatpush1.bf16.msra.mxu0 0
      %4673 = vmatprep.subr.bf16.mxu0 0
      %4674 = vmatpush1.bf16.msra.mxu0 0
      %4675 = vmatprep.subr.bf16.mxu0 0
      %4676 = vmatpush1.bf16.msra.mxu0 0
      %4677 = vmatprep.subr.bf16.mxu0 0
      %4678 = vmatpush1.bf16.msra.mxu0 0
      %4679 = vmatprep.subr.bf16.mxu0 0
      %4680 = vmatpush1.bf16.msra.mxu0 0
      %4681 = vmatprep.subr.bf16.mxu0 0
      %4682 = vmatpush1.bf16.msra.mxu0 0
      %4683 = vmatprep.subr.bf16.mxu0 0
      %4684 = vmatpush1.bf16.msra.mxu0 0
      %4685 = vmatprep.subr.bf16.mxu0 0
      %4686 = vmatpush1.bf16.msra.mxu0 0
      %4687 = vmatprep.subr.bf16.mxu0 0
      %4688 = vmatpush1.bf16.msra.mxu0 0
      %4689 = vmatprep.subr.bf16.mxu0 0
      %4690 = vmatpush1.bf16.msra.mxu0 0
      %4691 = vmatprep.subr.bf16.mxu0 0
      %4692 = vmatpush1.bf16.msra.mxu0 0
      %4693 = vmatprep.subr.bf16.mxu0 0
      %4694 = vmatpush1.bf16.msra.mxu0 0
      %4695 = vmatprep.subr.bf16.mxu0 0
      %4696 = vmatpush1.bf16.msra.mxu0 0
      %4697 = vmatprep.subr.bf16.mxu0 0
      %4698 = vmatpush1.bf16.msra.mxu0 0
      %4699 = vmatprep.subr.bf16.mxu0 0
      %4700 = vmatpush1.bf16.msra.mxu0 0
      %4701 = vmatprep.mubr.bf16.mxu0 0
      %4702 = vmatmul.mubr.bf16.gmra.mrb[0].mxu0 %v4619
      %v4703 = vpop.f32.mrb[0].mxu0
      %v4704 = vadd.f32 0.0, %v4703
      %v4705 = vpop.f32.mrb[0].mxu0
      %v4706 = vpop.f32.mrb[0].mxu0
      %v4707 = vadd.f32 0.0, %v4706
      %v4708 = vpop.f32.mrb[0].mxu0
      %4709 = vmatprep.mubr.bf16.mxu0 0
      %4710 = vmatmul.mubr.bf16.gmra.mrb[0].mxu0 %v4622
      %v4711 = vpop.f32.mrb[0].mxu0
      %v4712 = vadd.f32 0.0, %v4711
      %v4713 = vpop.f32.mrb[0].mxu0
      %v4714 = vpop.f32.mrb[0].mxu0
      %v4715 = vadd.f32 0.0, %v4714
      %v4716 = vpop.f32.mrb[0].mxu0
      %4717 = vmatprep.mubr.bf16.mxu0 0
      %4718 = vmatmul.mubr.bf16.gmra.mrb[0].mxu0 %v4625
      %v4719 = vpop.f32.mrb[0].mxu0
      %v4720 = vadd.f32 0.0, %v4719
      %v4721 = vpop.f32.mrb[0].mxu0
      %v4722 = vpop.f32.mrb[0].mxu0
      %v4723 = vadd.f32 0.0, %v4722
      %v4724 = vpop.f32.mrb[0].mxu0
      %4725 = vmatprep.mubr.bf16.mxu0 0
      %4726 = vmatmul.mubr.bf16.gmra.mrb[0].mxu0 %v4628
      %v4727 = vpop.f32.mrb[0].mxu0
      %v4728 = vadd.f32 0.0, %v4727
      %v4729 = vpop.f32.mrb[0].mxu0
      %v4730 = vpop.f32.mrb[0].mxu0
      %v4731 = vadd.f32 0.0, %v4730
      %v4732 = vpop.f32.mrb[0].mxu0
      %4733 = vmatprep.mubr.bf16.mxu0 0
      %4734 = vmatmul.mubr.bf16.gmra.mrb[0].mxu0 %v4631
      %v4735 = vpop.f32.mrb[0].mxu0
      %v4736 = vadd.f32 0.0, %v4735
      %v4737 = vpop.f32.mrb[0].mxu0
      %v4738 = vpop.f32.mrb[0].mxu0
      %v4739 = vadd.f32 0.0, %v4738
      %v4740 = vpop.f32.mrb[0].mxu0
      %4741 = vmatprep.mubr.bf16.mxu0 0
      %4742 = vmatmul.mubr.bf16.gmra.mrb[0].mxu0 %v4634
      %v4743 = vpop.f32.mrb[0].mxu0
      %v4744 = vadd.f32 0.0, %v4743
      %v4745 = vpop.f32.mrb[0].mxu0
      %v4746 = vpop.f32.mrb[0].mxu0
      %v4747 = vadd.f32 0.0, %v4746
      %v4748 = vpop.f32.mrb[0].mxu0
      %4749 = vmatprep.mubr.bf16.mxu0 0
      %4750 = vmatmul.mubr.bf16.gmra.mrb[0].mxu0 %v4637
      %v4751 = vpop.f32.mrb[0].mxu0
      %v4752 = vadd.f32 0.0, %v4751
      %v4753 = vpop.f32.mrb[0].mxu0
      %v4754 = vpop.f32.mrb[0].mxu0
      %v4755 = vadd.f32 0.0, %v4754
      %v4756 = vpop.f32.mrb[0].mxu0
      %4757 = vmatprep.mubr.bf16.mxu0 0
      %4758 = vmatmul.mubr.bf16.gmra.mrb[0].mxu0 %v4640
      %v4759 = vpop.f32.mrb[0].mxu0
      %v4760 = vadd.f32 0.0, %v4759
      %v4761 = vpop.f32.mrb[0].mxu0
      %v4762 = vpop.f32.mrb[0].mxu0
      %v4763 = vadd.f32 0.0, %v4762
      %v4764 = vpop.f32.mrb[0].mxu0
      %4765 = vmatprep.mubr.bf16.mxu0 0
      %4766 = vmatmul.mubr.bf16.gmra.mrb[0].mxu0 %v4643
      %v4767 = vpop.f32.mrb[0].mxu0
      %v4768 = vadd.f32 0.0, %v4767
      %v4769 = vpop.f32.mrb[0].mxu0
      %v4770 = vpop.f32.mrb[0].mxu0
      %v4771 = vadd.f32 0.0, %v4770
      %v4772 = vpop.f32.mrb[0].mxu0
      %4773 = vmatprep.mubr.bf16.mxu0 0
      %4774 = vmatmul.mubr.bf16.gmra.mrb[0].mxu0 %v4646
      %v4775 = vpop.f32.mrb[0].mxu0
      %v4776 = vadd.f32 0.0, %v4775
      %v4777 = vpop.f32.mrb[0].mxu0
      %v4778 = vpop.f32.mrb[0].mxu0
      %v4779 = vadd.f32 0.0, %v4778
      %v4780 = vpop.f32.mrb[0].mxu0
      %4781 = vmatprep.mubr.bf16.mxu0 0
      %4782 = vmatmul.mubr.bf16.gmra.mrb[0].mxu0 %v4649
      %v4783 = vpop.f32.mrb[0].mxu0
      %v4784 = vadd.f32 0.0, %v4783
      %v4785 = vpop.f32.mrb[0].mxu0
      %v4786 = vpop.f32.mrb[0].mxu0
      %v4787 = vadd.f32 0.0, %v4786
      %v4788 = vpop.f32.mrb[0].mxu0
      %4789 = vmatprep.mubr.bf16.mxu0 0
      %4790 = vmatmul.mubr.bf16.gmra.mrb[0].mxu0 %v4652
      %v4791 = vpop.f32.mrb[0].mxu0
      %v4792 = vadd.f32 0.0, %v4791
      %v4793 = vpop.f32.mrb[0].mxu0
      %v4794 = vpop.f32.mrb[0].mxu0
      %v4795 = vadd.f32 0.0, %v4794
      %v4796 = vpop.f32.mrb[0].mxu0
      %4797 = vmatprep.mubr.bf16.mxu0 0
      %4798 = vmatmul.mubr.bf16.gmra.mrb[0].mxu0 %v4655
      %v4799 = vpop.f32.mrb[0].mxu0
      %v4800 = vadd.f32 0.0, %v4799
      %v4801 = vpop.f32.mrb[0].mxu0
      %v4802 = vpop.f32.mrb[0].mxu0
      %v4803 = vadd.f32 0.0, %v4802
      %v4804 = vpop.f32.mrb[0].mxu0
      %4805 = vmatprep.mubr.bf16.mxu0 0
      %4806 = vmatmul.mubr.bf16.gmra.mrb[0].mxu0 %v4658
      %v4807 = vpop.f32.mrb[0].mxu0
      %v4808 = vadd.f32 0.0, %v4807
      %v4809 = vpop.f32.mrb[0].mxu0
      %v4810 = vpop.f32.mrb[0].mxu0
      %v4811 = vadd.f32 0.0, %v4810
      %v4812 = vpop.f32.mrb[0].mxu0
      %4813 = vmatprep.mubr.bf16.mxu0 0
      %4814 = vmatmul.mubr.bf16.gmra.mrb[0].mxu0 %v4661
      %v4815 = vpop.f32.mrb[0].mxu0
      %v4816 = vadd.f32 0.0, %v4815
      %v4817 = vpop.f32.mrb[0].mxu0
      %v4818 = vpop.f32.mrb[0].mxu0
      %v4819 = vadd.f32 0.0, %v4818
      %v4820 = vpop.f32.mrb[0].mxu0
      %4821 = vmatprep.mubr.bf16.mxu0 0
      %4822 = vmatmul.mubr.bf16.gmra.mrb[0].mxu0 %v4664
      %v4823 = vpop.f32.mrb[0].mxu0
      %v4824 = vadd.f32 0.0, %v4823
      %v4825 = vpop.f32.mrb[0].mxu0
      %v4826 = vpop.f32.mrb[0].mxu0
      %v4827 = vadd.f32 0.0, %v4826
      %v4828 = vpop.f32.mrb[0].mxu0
      %4829 = vdwg.mxu0
      %v4830 = vadd.f32 %v4360, %v4704
      %v4831 = vadd.f32 %v4361, %v4707
      %v4832 = vadd.f32 %v4362, %v4712
      %v4833 = vadd.f32 %v4363, %v4715
      %v4834 = vadd.f32 %v4364, %v4720
      %v4835 = vadd.f32 %v4365, %v4723
      %v4836 = vadd.f32 %v4366, %v4728
      %v4837 = vadd.f32 %v4367, %v4731
      %v4838 = vadd.f32 %v4368, %v4736
      %v4839 = vadd.f32 %v4369, %v4739
      %v4840 = vadd.f32 %v4370, %v4744
      %v4841 = vadd.f32 %v4371, %v4747
      %v4842 = vadd.f32 %v4372, %v4752
      %v4843 = vadd.f32 %v4373, %v4755
      %v4844 = vadd.f32 %v4374, %v4760
      %v4845 = vadd.f32 %v4375, %v4763
      %v4846 = vadd.f32 %v4376, %v4768
      %v4847 = vadd.f32 %v4377, %v4771
      %v4848 = vadd.f32 %v4378, %v4776
      %v4849 = vadd.f32 %v4379, %v4779
      %v4850 = vadd.f32 %v4380, %v4784
      %v4851 = vadd.f32 %v4381, %v4787
      %v4852 = vadd.f32 %v4382, %v4792
      %v4853 = vadd.f32 %v4383, %v4795
      %v4854 = vadd.f32 %v4384, %v4800
      %v4855 = vadd.f32 %v4385, %v4803
      %v4856 = vadd.f32 %v4386, %v4808
      %v4857 = vadd.f32 %v4387, %v4811
      %v4858 = vadd.f32 %v4388, %v4816
      %v4859 = vadd.f32 %v4389, %v4819
      %v4860 = vadd.f32 %v4390, %v4824
      %v4861 = vadd.f32 %v4391, %v4827
      %v4862 = vld [vmem:[%s2] sm:$0x1]
      %v4864 = vlaneseq
      %v4865 = vshrl.u32 %v4864, 7
      %v4866 = vsub.s32 0, %v4865
      %v4867 = vrot.slane %v4862, %v4866
      %v4869 = vadd.f32 %v4830, %v4867
      %v4870 = vadd.f32 %v4831, %v4867
      %v4871 = vadd.f32 %v4832, %v4867
      %v4872 = vadd.f32 %v4833, %v4867
      %v4873 = vadd.f32 %v4834, %v4867
      %v4874 = vadd.f32 %v4835, %v4867
      %v4875 = vadd.f32 %v4836, %v4867
      %v4876 = vadd.f32 %v4837, %v4867
      %v4877 = vadd.f32 %v4838, %v4867
      %v4878 = vadd.f32 %v4839, %v4867
      %v4879 = vadd.f32 %v4840, %v4867
      %v4880 = vadd.f32 %v4841, %v4867
      %v4881 = vadd.f32 %v4842, %v4867
      %v4882 = vadd.f32 %v4843, %v4867
      %v4883 = vadd.f32 %v4844, %v4867
      %v4884 = vadd.f32 %v4845, %v4867
      %v4885 = vadd.f32 %v4846, %v4867
      %v4886 = vadd.f32 %v4847, %v4867
      %v4887 = vadd.f32 %v4848, %v4867
      %v4888 = vadd.f32 %v4849, %v4867
      %v4889 = vadd.f32 %v4850, %v4867
      %v4890 = vadd.f32 %v4851, %v4867
      %v4891 = vadd.f32 %v4852, %v4867
      %v4892 = vadd.f32 %v4853, %v4867
      %v4893 = vadd.f32 %v4854, %v4867
      %v4894 = vadd.f32 %v4855, %v4867
      %v4895 = vadd.f32 %v4856, %v4867
      %v4896 = vadd.f32 %v4857, %v4867
      %v4897 = vadd.f32 %v4858, %v4867
      %v4898 = vadd.f32 %v4859, %v4867
      %v4899 = vadd.f32 %v4860, %v4867
      %v4900 = vadd.f32 %v4861, %v4867
      %v4901 = vmax.f32 %v4869, 0.0
      %v4902 = vmax.f32 %v4870, 0.0
      %v4903 = vmax.f32 %v4871, 0.0
      %v4904 = vmax.f32 %v4872, 0.0
      %v4905 = vmax.f32 %v4873, 0.0
      %v4906 = vmax.f32 %v4874, 0.0
      %v4907 = vmax.f32 %v4875, 0.0
      %v4908 = vmax.f32 %v4876, 0.0
      %v4909 = vmax.f32 %v4877, 0.0
      %v4910 = vmax.f32 %v4878, 0.0
      %v4911 = vmax.f32 %v4879, 0.0
      %v4912 = vmax.f32 %v4880, 0.0
      %v4913 = vmax.f32 %v4881, 0.0
      %v4914 = vmax.f32 %v4882, 0.0
      %v4915 = vmax.f32 %v4883, 0.0
      %v4916 = vmax.f32 %v4884, 0.0
      %v4917 = vmax.f32 %v4885, 0.0
      %v4918 = vmax.f32 %v4886, 0.0
      %v4919 = vmax.f32 %v4887, 0.0
      %v4920 = vmax.f32 %v4888, 0.0
      %v4921 = vmax.f32 %v4889, 0.0
      %v4922 = vmax.f32 %v4890, 0.0
      %v4923 = vmax.f32 %v4891, 0.0
      %v4924 = vmax.f32 %v4892, 0.0
      %v4925 = vmax.f32 %v4893, 0.0
      %v4926 = vmax.f32 %v4894, 0.0
      %v4927 = vmax.f32 %v4895, 0.0
      %v4928 = vmax.f32 %v4896, 0.0
      %v4929 = vmax.f32 %v4897, 0.0
      %v4930 = vmax.f32 %v4898, 0.0
      %v4931 = vmax.f32 %v4899, 0.0
      %v4932 = vmax.f32 %v4900, 0.0
      %v4933 = vpack.c.bf16 %v4902, %v4901
      %v4934 = vpack.c.bf16 %v4904, %v4903
      %v4935 = vpack.c.bf16 %v4906, %v4905
      %v4936 = vpack.c.bf16 %v4908, %v4907
      %v4937 = vpack.c.bf16 %v4910, %v4909
      %v4938 = vpack.c.bf16 %v4912, %v4911
      %v4939 = vpack.c.bf16 %v4914, %v4913
      %v4940 = vpack.c.bf16 %v4916, %v4915
      %v4941 = vpack.c.bf16 %v4918, %v4917
      %v4942 = vpack.c.bf16 %v4920, %v4919
      %v4943 = vpack.c.bf16 %v4922, %v4921
      %v4944 = vpack.c.bf16 %v4924, %v4923
      %v4945 = vpack.c.bf16 %v4926, %v4925
      %v4946 = vpack.c.bf16 %v4928, %v4927
      %v4947 = vpack.c.bf16 %v4930, %v4929
      %v4948 = vpack.c.bf16 %v4932, %v4931
      %v4949 = vld [vmem:[%s3] sm:$0xff]
      %v4950 = vld [vmem:[%s3 + $0x8] sm:$0xff]
      %v4951 = vld [vmem:[%s3 + $0x10] sm:$0xff]
      %v4952 = vld [vmem:[%s3 + $0x18] sm:$0xff]
      %v4953 = vld [vmem:[%s3 + $0x20] sm:$0xff]
      %v4954 = vld [vmem:[%s3 + $0x28] sm:$0xff]
      %v4955 = vld [vmem:[%s3 + $0x30] sm:$0xff]
      %v4956 = vld [vmem:[%s3 + $0x38] sm:$0xff]
      %v4965 = vunpack.c.l.b16 %v4949
      %v4966 = vunpack.c.h.b16 %v4949
      %v4967 = vunpack.c.l.b16 %v4950
      %v4968 = vunpack.c.h.b16 %v4950
      %v4969 = vunpack.c.l.b16 %v4951
      %v4970 = vunpack.c.h.b16 %v4951
      %v4971 = vunpack.c.l.b16 %v4952
      %v4972 = vunpack.c.h.b16 %v4952
      %v4973 = vunpack.c.l.b16 %v4953
      %v4974 = vunpack.c.h.b16 %v4953
      %v4975 = vunpack.c.l.b16 %v4954
      %v4976 = vunpack.c.h.b16 %v4954
      %v4977 = vunpack.c.l.b16 %v4955
      %v4978 = vunpack.c.h.b16 %v4955
      %v4979 = vunpack.c.l.b16 %v4956
      %v4980 = vunpack.c.h.b16 %v4956
      %v4981 = vpack.c.b16 %v4967, %v4965
      %v4982 = vpack.c.b16 %v4968, %v4966
      %v4983 = vpack.c.b16 %v4971, %v4969
      %v4984 = vpack.c.b16 %v4972, %v4970
      %v4985 = vpack.c.b16 %v4975, %v4973
      %v4986 = vpack.c.b16 %v4976, %v4974
      %v4987 = vpack.c.b16 %v4979, %v4977
      %v4988 = vpack.c.b16 %v4980, %v4978
      %4997 = vmatprep.subr.bf16.mxu0 0
      %4998 = vmatpush1.bf16.msra.mxu0 %v4933
      %4999 = vmatprep.subr.bf16.mxu0 0
      %5000 = vmatpush1.bf16.msra.mxu0 %v4934
      %5001 = vmatprep.subr.bf16.mxu0 0
      %5002 = vmatpush1.bf16.msra.mxu0 %v4935
      %5003 = vmatprep.subr.bf16.mxu0 0
      %5004 = vmatpush1.bf16.msra.mxu0 %v4936
      %5005 = vmatprep.subr.bf16.mxu0 0
      %5006 = vmatpush1.bf16.msra.mxu0 %v4937
      %5007 = vmatprep.subr.bf16.mxu0 0
      %5008 = vmatpush1.bf16.msra.mxu0 %v4938
      %5009 = vmatprep.subr.bf16.mxu0 0
      %5010 = vmatpush1.bf16.msra.mxu0 %v4939
      %5011 = vmatprep.subr.bf16.mxu0 0
      %5012 = vmatpush1.bf16.msra.mxu0 %v4940
      %5013 = vmatprep.subr.bf16.mxu0 0
      %5014 = vmatpush1.bf16.msra.mxu0 %v4941
      %5015 = vmatprep.subr.bf16.mxu0 0
      %5016 = vmatpush1.bf16.msra.mxu0 %v4942
      %5017 = vmatprep.subr.bf16.mxu0 0
      %5018 = vmatpush1.bf16.msra.mxu0 %v4943
      %5019 = vmatprep.subr.bf16.mxu0 0
      %5020 = vmatpush1.bf16.msra.mxu0 %v4944
      %5021 = vmatprep.subr.bf16.mxu0 0
      %5022 = vmatpush1.bf16.msra.mxu0 %v4945
      %5023 = vmatprep.subr.bf16.mxu0 0
      %5024 = vmatpush1.bf16.msra.mxu0 %v4946
      %5025 = vmatprep.subr.bf16.mxu0 0
      %5026 = vmatpush1.bf16.msra.mxu0 %v4947
      %5027 = vmatprep.subr.bf16.mxu0 0
      %5028 = vmatpush1.bf16.msra.mxu0 %v4948
      %5029 = vmatprep.mubr.bf16.mxu0 %v4982
      %5030 = vmatmul.mubr.bf16.gmra.mrb[0].mxu0 %v4981
      %v5031 = vpop.f32.mrb[0].mxu0
      %v5032 = vadd.f32 0.0, %v5031
      %v5033 = vpop.f32.mrb[0].mxu0
      %v5034 = vpop.f32.mrb[0].mxu0
      %v5035 = vadd.f32 0.0, %v5034
      %v5036 = vpop.f32.mrb[0].mxu0
      %5037 = vmatprep.mubr.bf16.mxu0 %v4984
      %5038 = vmatmul.mubr.bf16.gmra.mrb[0].mxu0 %v4983
      %v5039 = vpop.f32.mrb[0].mxu0
      %v5040 = vadd.f32 0.0, %v5039
      %v5041 = vpop.f32.mrb[0].mxu0
      %v5042 = vpop.f32.mrb[0].mxu0
      %v5043 = vadd.f32 0.0, %v5042
      %v5044 = vpop.f32.mrb[0].mxu0
      %5045 = vmatprep.mubr.bf16.mxu0 %v4986
      %5046 = vmatmul.mubr.bf16.gmra.mrb[0].mxu0 %v4985
      %v5047 = vpop.f32.mrb[0].mxu0
      %v5048 = vadd.f32 0.0, %v5047
      %v5049 = vpop.f32.mrb[0].mxu0
      %v5050 = vpop.f32.mrb[0].mxu0
      %v5051 = vadd.f32 0.0, %v5050
      %v5052 = vpop.f32.mrb[0].mxu0
      %5053 = vmatprep.mubr.bf16.mxu0 %v4988
      %5054 = vmatmul.mubr.bf16.gmra.mrb[0].mxu0 %v4987
      %v5055 = vpop.f32.mrb[0].mxu0
      %v5056 = vadd.f32 0.0, %v5055
      %v5057 = vpop.f32.mrb[0].mxu0
      %v5058 = vpop.f32.mrb[0].mxu0
      %v5059 = vadd.f32 0.0, %v5058
      %v5060 = vpop.f32.mrb[0].mxu0
      %5061 = vdwg.mxu0
      %vm5062 = vcmask 64512
      %5063 = vst.msk [vmem:[#allocation2] sm:$0xff] %vm5062, 0.0
      %vm5064 = vcmask 58368
      %5065 = vst.msk [vmem:[#allocation2 + $0x8] sm:$0x3] %vm5064, 0.0
      %5066 = vst.msk [vmem:[#allocation2 + $0x10] sm:$0xff] %vm5062, 0.0
      %5067 = vst.msk [vmem:[#allocation2 + $0x18] sm:$0x3] %vm5064, 0.0
      %5068 = vst.msk [vmem:[#allocation2 + $0x20] sm:$0xff] %vm5062, 0.0
      %5069 = vst.msk [vmem:[#allocation2 + $0x28] sm:$0x3] %vm5064, 0.0
      %5070 = vst.msk [vmem:[#allocation2 + $0x30] sm:$0xff] %vm5062, 0.0
      %5071 = vst.msk [vmem:[#allocation2 + $0x38] sm:$0x3] %vm5064, 0.0
      %5072 = vst.msk [vmem:[#allocation2 + $0x40] sm:$0xff] %vm5062, 0.0
      %5073 = vst.msk [vmem:[#allocation2 + $0x48] sm:$0x3] %vm5064, 0.0
      %5074 = vst.msk [vmem:[#allocation2 + $0x50] sm:$0xff] %vm5062, 0.0
      %5075 = vst.msk [vmem:[#allocation2 + $0x58] sm:$0x3] %vm5064, 0.0
      %5076 = vst.msk [vmem:[#allocation2 + $0x60] sm:$0xff] %vm5062, 0.0
      %5077 = vst.msk [vmem:[#allocation2 + $0x68] sm:$0x3] %vm5064, 0.0
      %5078 = vst.msk [vmem:[#allocation2 + $0x70] sm:$0xff] %vm5062, 0.0
      %5079 = vst.msk [vmem:[#allocation2 + $0x78] sm:$0x3] %vm5064, 0.0
      %5080 = vst.msk [vmem:[#allocation2 + $0x80] sm:$0xff] %vm5062, 0.0
      %5081 = vst.msk [vmem:[#allocation2 + $0x88] sm:$0x3] %vm5064, 0.0
      %5082 = vst.msk [vmem:[#allocation2 + $0x90] sm:$0xff] %vm5062, 0.0
      %5083 = vst.msk [vmem:[#allocation2 + $0x98] sm:$0x3] %vm5064, 0.0
      %s5084 = scalar_lea.vmem [#allocation2], 16
      %5085 = vst.msk [vmem:[%s5084 + $0x1] sm:$0xff] %vm5062, %v5032
      %5086 = vst.msk [vmem:[%s5084 + $0x11] sm:$0xff] %vm5062, %v5035
      %5087 = vst.msk [vmem:[%s5084 + $0x21] sm:$0xff] %vm5062, %v5040
      %5088 = vst.msk [vmem:[%s5084 + $0x31] sm:$0xff] %vm5062, %v5043
      %5089 = vst.msk [vmem:[%s5084 + $0x41] sm:$0xff] %vm5062, %v5048
      %5090 = vst.msk [vmem:[%s5084 + $0x51] sm:$0xff] %vm5062, %v5051
      %5091 = vst.msk [vmem:[%s5084 + $0x61] sm:$0xff] %vm5062, %v5056
      %5092 = vst.msk [vmem:[%s5084 + $0x71] sm:$0xff] %vm5062, %v5059
      %v5093 = vld [vmem:[#allocation2] sm:$0xff]
      %v5094 = vld [vmem:[#allocation2 + $0x10] sm:$0xff]
      %v5095 = vld [vmem:[#allocation2 + $0x20] sm:$0xff]
      %v5096 = vld [vmem:[#allocation2 + $0x30] sm:$0xff]
      %v5097 = vld [vmem:[#allocation2 + $0x40] sm:$0xff]
      %v5098 = vld [vmem:[#allocation2 + $0x50] sm:$0xff]
      %v5099 = vld [vmem:[#allocation2 + $0x60] sm:$0xff]
      %v5100 = vld [vmem:[#allocation2 + $0x70] sm:$0xff]
      %v5101 = vpack.c.bf16 %v5094, %v5093
      %v5102 = vpack.c.bf16 %v5096, %v5095
      %v5103 = vpack.c.bf16 %v5098, %v5097
      %v5104 = vpack.c.bf16 %v5100, %v5099
      %v5105 = vld [vmem:[%s4] sm:$0xf]
      %v5106 = vld [vmem:[#allocation2 + $0x1] sm:$0xff]
      %v5107 = vld [vmem:[#allocation2 + $0x11] sm:$0xff]
      %v5108 = vld [vmem:[#allocation2 + $0x21] sm:$0xff]
      %v5109 = vld [vmem:[#allocation2 + $0x31] sm:$0xff]
      %v5110 = vld [vmem:[#allocation2 + $0x41] sm:$0xff]
      %v5111 = vld [vmem:[#allocation2 + $0x51] sm:$0xff]
      %v5112 = vld [vmem:[#allocation2 + $0x61] sm:$0xff]
      %v5113 = vld [vmem:[#allocation2 + $0x71] sm:$0xff]
      %v5114 = vpack.c.bf16 %v5107, %v5106
      %v5115 = vpack.c.bf16 %v5109, %v5108
      %v5116 = vpack.c.bf16 %v5111, %v5110
      %v5117 = vpack.c.bf16 %v5113, %v5112
      %s5118 = scalar_lea.vmem %s4, 4
      %v5119 = vld [vmem:[%s5118] sm:$0xf]
      %v5121 = vsel %vm5062, %v5114, 0
      %v5124 = vsel %vm5062, %v5115, 0
      %v5127 = vsel %vm5062, %v5116, 0
      %v5130 = vsel %vm5062, %v5117, 0
      %vm5132 = vcmask 1043456
      %v5134 = vsel %vm5132, %v5119, 0
      %5136 = vmatprep.subr.bf16.mxu0 0
      %5137 = vmatpush1.bf16.msra.mxu0 %v5134
      %5138 = vmatprep.subr.bf16.mxu0 0
      %5139 = vmatpush1.bf16.msra.mxu0 0
      %5140 = vmatprep.subr.bf16.mxu0 0
      %5141 = vmatpush1.bf16.msra.mxu0 0
      %5142 = vmatprep.subr.bf16.mxu0 0
      %5143 = vmatpush1.bf16.msra.mxu0 0
      %5144 = vmatprep.subr.bf16.mxu0 0
      %5145 = vmatpush1.bf16.msra.mxu0 0
      %5146 = vmatprep.subr.bf16.mxu0 0
      %5147 = vmatpush1.bf16.msra.mxu0 0
      %5148 = vmatprep.subr.bf16.mxu0 0
      %5149 = vmatpush1.bf16.msra.mxu0 0
      %5150 = vmatprep.subr.bf16.mxu0 0
      %5151 = vmatpush1.bf16.msra.mxu0 0
      %5152 = vmatprep.subr.bf16.mxu0 0
      %5153 = vmatpush1.bf16.msra.mxu0 0
      %5154 = vmatprep.subr.bf16.mxu0 0
      %5155 = vmatpush1.bf16.msra.mxu0 0
      %5156 = vmatprep.subr.bf16.mxu0 0
      %5157 = vmatpush1.bf16.msra.mxu0 0
      %5158 = vmatprep.subr.bf16.mxu0 0
      %5159 = vmatpush1.bf16.msra.mxu0 0
      %5160 = vmatprep.subr.bf16.mxu0 0
      %5161 = vmatpush1.bf16.msra.mxu0 0
      %5162 = vmatprep.subr.bf16.mxu0 0
      %5163 = vmatpush1.bf16.msra.mxu0 0
      %5164 = vmatprep.subr.bf16.mxu0 0
      %5165 = vmatpush1.bf16.msra.mxu0 0
      %5166 = vmatprep.subr.bf16.mxu0 0
      %5167 = vmatpush1.bf16.msra.mxu0 0
      %5168 = vmatprep.mubr.bf16.mxu0 0
      %5169 = vmatmul.mubr.bf16.gmra.mrb[0].mxu0 %v5121
      %v5170 = vpop.f32.mrb[0].mxu0
      %v5171 = vadd.f32 0.0, %v5170
      %v5172 = vpop.f32.mrb[0].mxu0
      %v5173 = vpop.f32.mrb[0].mxu0
      %v5174 = vadd.f32 0.0, %v5173
      %v5175 = vpop.f32.mrb[0].mxu0
      %5176 = vmatprep.mubr.bf16.mxu0 0
      %5177 = vmatmul.mubr.bf16.gmra.mrb[0].mxu0 %v5124
      %v5178 = vpop.f32.mrb[0].mxu0
      %v5179 = vadd.f32 0.0, %v5178
      %v5180 = vpop.f32.mrb[0].mxu0
      %v5181 = vpop.f32.mrb[0].mxu0
      %v5182 = vadd.f32 0.0, %v5181
      %v5183 = vpop.f32.mrb[0].mxu0
      %5184 = vmatprep.mubr.bf16.mxu0 0
      %5185 = vmatmul.mubr.bf16.gmra.mrb[0].mxu0 %v5127
      %v5186 = vpop.f32.mrb[0].mxu0
      %v5187 = vadd.f32 0.0, %v5186
      %v5188 = vpop.f32.mrb[0].mxu0
      %v5189 = vpop.f32.mrb[0].mxu0
      %v5190 = vadd.f32 0.0, %v5189
      %v5191 = vpop.f32.mrb[0].mxu0
      %5192 = vmatprep.mubr.bf16.mxu0 0
      %5193 = vmatmul.mubr.bf16.gmra.mrb[0].mxu0 %v5130
      %v5194 = vpop.f32.mrb[0].mxu0
      %v5195 = vadd.f32 0.0, %v5194
      %v5196 = vpop.f32.mrb[0].mxu0
      %v5197 = vpop.f32.mrb[0].mxu0
      %v5198 = vadd.f32 0.0, %v5197
      %v5199 = vpop.f32.mrb[0].mxu0
      %5200 = vdwg.mxu0
      %v5202 = vsel %vm5062, %v5101, 0
      %v5205 = vsel %vm5062, %v5102, 0
      %v5208 = vsel %vm5062, %v5103, 0
      %v5211 = vsel %vm5062, %v5104, 0
      %v5214 = vsel %vm5132, %v5105, 0
      %5216 = vmatprep.subr.bf16.mxu0 0
      %5217 = vmatpush1.bf16.msra.mxu0 %v5214
      %5218 = vmatprep.subr.bf16.mxu0 0
      %5219 = vmatpush1.bf16.msra.mxu0 0
      %5220 = vmatprep.subr.bf16.mxu0 0
      %5221 = vmatpush1.bf16.msra.mxu0 0
      %5222 = vmatprep.subr.bf16.mxu0 0
      %5223 = vmatpush1.bf16.msra.mxu0 0
      %5224 = vmatprep.subr.bf16.mxu0 0
      %5225 = vmatpush1.bf16.msra.mxu0 0
      %5226 = vmatprep.subr.bf16.mxu0 0
      %5227 = vmatpush1.bf16.msra.mxu0 0
      %5228 = vmatprep.subr.bf16.mxu0 0
      %5229 = vmatpush1.bf16.msra.mxu0 0
      %5230 = vmatprep.subr.bf16.mxu0 0
      %5231 = vmatpush1.bf16.msra.mxu0 0
      %5232 = vmatprep.subr.bf16.mxu0 0
      %5233 = vmatpush1.bf16.msra.mxu0 0
      %5234 = vmatprep.subr.bf16.mxu0 0
      %5235 = vmatpush1.bf16.msra.mxu0 0
      %5236 = vmatprep.subr.bf16.mxu0 0
      %5237 = vmatpush1.bf16.msra.mxu0 0
      %5238 = vmatprep.subr.bf16.mxu0 0
      %5239 = vmatpush1.bf16.msra.mxu0 0
      %5240 = vmatprep.subr.bf16.mxu0 0
      %5241 = vmatpush1.bf16.msra.mxu0 0
      %5242 = vmatprep.subr.bf16.mxu0 0
      %5243 = vmatpush1.bf16.msra.mxu0 0
      %5244 = vmatprep.subr.bf16.mxu0 0
      %5245 = vmatpush1.bf16.msra.mxu0 0
      %5246 = vmatprep.subr.bf16.mxu0 0
      %5247 = vmatpush1.bf16.msra.mxu0 0
      %5248 = vmatprep.mubr.bf16.mxu0 0
      %5249 = vmatmul.mubr.bf16.gmra.mrb[0].mxu0 %v5202
      %v5250 = vpop.f32.mrb[0].mxu0
      %v5251 = vadd.f32 %v5171, %v5250
      %v5252 = vpop.f32.mrb[0].mxu0
      %v5253 = vpop.f32.mrb[0].mxu0
      %v5254 = vadd.f32 %v5174, %v5253
      %v5255 = vpop.f32.mrb[0].mxu0
      %5256 = vmatprep.mubr.bf16.mxu0 0
      %5257 = vmatmul.mubr.bf16.gmra.mrb[0].mxu0 %v5205
      %v5258 = vpop.f32.mrb[0].mxu0
      %v5259 = vadd.f32 %v5179, %v5258
      %v5260 = vpop.f32.mrb[0].mxu0
      %v5261 = vpop.f32.mrb[0].mxu0
      %v5262 = vadd.f32 %v5182, %v5261
      %v5263 = vpop.f32.mrb[0].mxu0
      %5264 = vmatprep.mubr.bf16.mxu0 0
      %5265 = vmatmul.mubr.bf16.gmra.mrb[0].mxu0 %v5208
      %v5266 = vpop.f32.mrb[0].mxu0
      %v5267 = vadd.f32 %v5187, %v5266
      %v5268 = vpop.f32.mrb[0].mxu0
      %v5269 = vpop.f32.mrb[0].mxu0
      %v5270 = vadd.f32 %v5190, %v5269
      %v5271 = vpop.f32.mrb[0].mxu0
      %5272 = vmatprep.mubr.bf16.mxu0 0
      %5273 = vmatmul.mubr.bf16.gmra.mrb[0].mxu0 %v5211
      %v5274 = vpop.f32.mrb[0].mxu0
      %v5275 = vadd.f32 %v5195, %v5274
      %v5276 = vpop.f32.mrb[0].mxu0
      %v5277 = vpop.f32.mrb[0].mxu0
      %v5278 = vadd.f32 %v5198, %v5277
      %v5279 = vpop.f32.mrb[0].mxu0
      %5280 = vdwg.mxu0
      %v5281 = vld [vmem:[#allocation2 + $0x2] sm:$0xff]
      %v5282 = vld [vmem:[#allocation2 + $0x12] sm:$0xff]
      %v5283 = vld [vmem:[#allocation2 + $0x22] sm:$0xff]
      %v5284 = vld [vmem:[#allocation2 + $0x32] sm:$0xff]
      %v5285 = vld [vmem:[#allocation2 + $0x42] sm:$0xff]
      %v5286 = vld [vmem:[#allocation2 + $0x52] sm:$0xff]
      %v5287 = vld [vmem:[#allocation2 + $0x62] sm:$0xff]
      %v5288 = vld [vmem:[#allocation2 + $0x72] sm:$0xff]
      %v5289 = vpack.c.bf16 %v5282, %v5281
      %v5290 = vpack.c.bf16 %v5284, %v5283
      %v5291 = vpack.c.bf16 %v5286, %v5285
      %v5292 = vpack.c.bf16 %v5288, %v5287
      %s5293 = scalar_lea.vmem %s4, 8
      %v5294 = vld [vmem:[%s5293] sm:$0xf]
      %v5296 = vsel %vm5062, %v5289, 0
      %v5299 = vsel %vm5062, %v5290, 0
      %v5302 = vsel %vm5062, %v5291, 0
      %v5305 = vsel %vm5062, %v5292, 0
      %v5308 = vsel %vm5132, %v5294, 0
      %5310 = vmatprep.subr.bf16.mxu0 0
      %5311 = vmatpush1.bf16.msra.mxu0 %v5308
      %5312 = vmatprep.subr.bf16.mxu0 0
      %5313 = vmatpush1.bf16.msra.mxu0 0
      %5314 = vmatprep.subr.bf16.mxu0 0
      %5315 = vmatpush1.bf16.msra.mxu0 0
      %5316 = vmatprep.subr.bf16.mxu0 0
      %5317 = vmatpush1.bf16.msra.mxu0 0
      %5318 = vmatprep.subr.bf16.mxu0 0
      %5319 = vmatpush1.bf16.msra.mxu0 0
      %5320 = vmatprep.subr.bf16.mxu0 0
      %5321 = vmatpush1.bf16.msra.mxu0 0
      %5322 = vmatprep.subr.bf16.mxu0 0
      %5323 = vmatpush1.bf16.msra.mxu0 0
      %5324 = vmatprep.subr.bf16.mxu0 0
      %5325 = vmatpush1.bf16.msra.mxu0 0
      %5326 = vmatprep.subr.bf16.mxu0 0
      %5327 = vmatpush1.bf16.msra.mxu0 0
      %5328 = vmatprep.subr.bf16.mxu0 0
      %5329 = vmatpush1.bf16.msra.mxu0 0
      %5330 = vmatprep.subr.bf16.mxu0 0
      %5331 = vmatpush1.bf16.msra.mxu0 0
      %5332 = vmatprep.subr.bf16.mxu0 0
      %5333 = vmatpush1.bf16.msra.mxu0 0
      %5334 = vmatprep.subr.bf16.mxu0 0
      %5335 = vmatpush1.bf16.msra.mxu0 0
      %5336 = vmatprep.subr.bf16.mxu0 0
      %5337 = vmatpush1.bf16.msra.mxu0 0
      %5338 = vmatprep.subr.bf16.mxu0 0
      %5339 = vmatpush1.bf16.msra.mxu0 0
      %5340 = vmatprep.subr.bf16.mxu0 0
      %5341 = vmatpush1.bf16.msra.mxu0 0
      %5342 = vmatprep.mubr.bf16.mxu0 0
      %5343 = vmatmul.mubr.bf16.gmra.mrb[0].mxu0 %v5296
      %v5344 = vpop.f32.mrb[0].mxu0
      %v5345 = vadd.f32 0.0, %v5344
      %v5346 = vpop.f32.mrb[0].mxu0
      %v5347 = vpop.f32.mrb[0].mxu0
      %v5348 = vadd.f32 0.0, %v5347
      %v5349 = vpop.f32.mrb[0].mxu0
      %5350 = vmatprep.mubr.bf16.mxu0 0
      %5351 = vmatmul.mubr.bf16.gmra.mrb[0].mxu0 %v5299
      %v5352 = vpop.f32.mrb[0].mxu0
      %v5353 = vadd.f32 0.0, %v5352
      %v5354 = vpop.f32.mrb[0].mxu0
      %v5355 = vpop.f32.mrb[0].mxu0
      %v5356 = vadd.f32 0.0, %v5355
      %v5357 = vpop.f32.mrb[0].mxu0
      %5358 = vmatprep.mubr.bf16.mxu0 0
      %5359 = vmatmul.mubr.bf16.gmra.mrb[0].mxu0 %v5302
      %v5360 = vpop.f32.mrb[0].mxu0
      %v5361 = vadd.f32 0.0, %v5360
      %v5362 = vpop.f32.mrb[0].mxu0
      %v5363 = vpop.f32.mrb[0].mxu0
      %v5364 = vadd.f32 0.0, %v5363
      %v5365 = vpop.f32.mrb[0].mxu0
      %5366 = vmatprep.mubr.bf16.mxu0 0
      %5367 = vmatmul.mubr.bf16.gmra.mrb[0].mxu0 %v5305
      %v5368 = vpop.f32.mrb[0].mxu0
      %v5369 = vadd.f32 0.0, %v5368
      %v5370 = vpop.f32.mrb[0].mxu0
      %v5371 = vpop.f32.mrb[0].mxu0
      %v5372 = vadd.f32 0.0, %v5371
      %v5373 = vpop.f32.mrb[0].mxu0
      %5374 = vdwg.mxu0
      %v5375 = vadd.f32 %v5251, %v5345
      %v5376 = vadd.f32 %v5254, %v5348
      %v5377 = vadd.f32 %v5259, %v5353
      %v5378 = vadd.f32 %v5262, %v5356
      %v5379 = vadd.f32 %v5267, %v5361
      %v5380 = vadd.f32 %v5270, %v5364
      %v5381 = vadd.f32 %v5275, %v5369
      %v5382 = vadd.f32 %v5278, %v5372
      %v5383 = vld [vmem:[%s5084] sm:$0xff]
      %v5384 = vld [vmem:[%s5084 + $0x10] sm:$0xff]
      %v5385 = vld [vmem:[%s5084 + $0x20] sm:$0xff]
      %v5386 = vld [vmem:[%s5084 + $0x30] sm:$0xff]
      %v5387 = vld [vmem:[%s5084 + $0x40] sm:$0xff]
      %v5388 = vld [vmem:[%s5084 + $0x50] sm:$0xff]
      %v5389 = vld [vmem:[%s5084 + $0x60] sm:$0xff]
      %v5390 = vld [vmem:[%s5084 + $0x70] sm:$0xff]
      %v5391 = vpack.c.bf16 %v5384, %v5383
      %v5392 = vpack.c.bf16 %v5386, %v5385
      %v5393 = vpack.c.bf16 %v5388, %v5387
      %v5394 = vpack.c.bf16 %v5390, %v5389
      %s5395 = scalar_lea.vmem %s4, 12
      %v5396 = vld [vmem:[%s5395] sm:$0xf]
      %v5398 = vsel %vm5062, %v5391, 0
      %v5401 = vsel %vm5062, %v5392, 0
      %v5404 = vsel %vm5062, %v5393, 0
      %v5407 = vsel %vm5062, %v5394, 0
      %v5410 = vsel %vm5132, %v5396, 0
      %5412 = vmatprep.subr.bf16.mxu0 0
      %5413 = vmatpush1.bf16.msra.mxu0 %v5410
      %5414 = vmatprep.subr.bf16.mxu0 0
      %5415 = vmatpush1.bf16.msra.mxu0 0
      %5416 = vmatprep.subr.bf16.mxu0 0
      %5417 = vmatpush1.bf16.msra.mxu0 0
      %5418 = vmatprep.subr.bf16.mxu0 0
      %5419 = vmatpush1.bf16.msra.mxu0 0
      %5420 = vmatprep.subr.bf16.mxu0 0
      %5421 = vmatpush1.bf16.msra.mxu0 0
      %5422 = vmatprep.subr.bf16.mxu0 0
      %5423 = vmatpush1.bf16.msra.mxu0 0
      %5424 = vmatprep.subr.bf16.mxu0 0
      %5425 = vmatpush1.bf16.msra.mxu0 0
      %5426 = vmatprep.subr.bf16.mxu0 0
      %5427 = vmatpush1.bf16.msra.mxu0 0
      %5428 = vmatprep.subr.bf16.mxu0 0
      %5429 = vmatpush1.bf16.msra.mxu0 0
      %5430 = vmatprep.subr.bf16.mxu0 0
      %5431 = vmatpush1.bf16.msra.mxu0 0
      %5432 = vmatprep.subr.bf16.mxu0 0
      %5433 = vmatpush1.bf16.msra.mxu0 0
      %5434 = vmatprep.subr.bf16.mxu0 0
      %5435 = vmatpush1.bf16.msra.mxu0 0
      %5436 = vmatprep.subr.bf16.mxu0 0
      %5437 = vmatpush1.bf16.msra.mxu0 0
      %5438 = vmatprep.subr.bf16.mxu0 0
      %5439 = vmatpush1.bf16.msra.mxu0 0
      %5440 = vmatprep.subr.bf16.mxu0 0
      %5441 = vmatpush1.bf16.msra.mxu0 0
      %5442 = vmatprep.subr.bf16.mxu0 0
      %5443 = vmatpush1.bf16.msra.mxu0 0
      %5444 = vmatprep.mubr.bf16.mxu0 0
      %5445 = vmatmul.mubr.bf16.gmra.mrb[0].mxu0 %v5398
      %v5446 = vpop.f32.mrb[0].mxu0
      %v5447 = vadd.f32 0.0, %v5446
      %v5448 = vpop.f32.mrb[0].mxu0
      %v5449 = vpop.f32.mrb[0].mxu0
      %v5450 = vadd.f32 0.0, %v5449
      %v5451 = vpop.f32.mrb[0].mxu0
      %5452 = vmatprep.mubr.bf16.mxu0 0
      %5453 = vmatmul.mubr.bf16.gmra.mrb[0].mxu0 %v5401
      %v5454 = vpop.f32.mrb[0].mxu0
      %v5455 = vadd.f32 0.0, %v5454
      %v5456 = vpop.f32.mrb[0].mxu0
      %v5457 = vpop.f32.mrb[0].mxu0
      %v5458 = vadd.f32 0.0, %v5457
      %v5459 = vpop.f32.mrb[0].mxu0
      %5460 = vmatprep.mubr.bf16.mxu0 0
      %5461 = vmatmul.mubr.bf16.gmra.mrb[0].mxu0 %v5404
      %v5462 = vpop.f32.mrb[0].mxu0
      %v5463 = vadd.f32 0.0, %v5462
      %v5464 = vpop.f32.mrb[0].mxu0
      %v5465 = vpop.f32.mrb[0].mxu0
      %v5466 = vadd.f32 0.0, %v5465
      %v5467 = vpop.f32.mrb[0].mxu0
      %5468 = vmatprep.mubr.bf16.mxu0 0
      %5469 = vmatmul.mubr.bf16.gmra.mrb[0].mxu0 %v5407
      %v5470 = vpop.f32.mrb[0].mxu0
      %v5471 = vadd.f32 0.0, %v5470
      %v5472 = vpop.f32.mrb[0].mxu0
      %v5473 = vpop.f32.mrb[0].mxu0
      %v5474 = vadd.f32 0.0, %v5473
      %v5475 = vpop.f32.mrb[0].mxu0
      %5476 = vdwg.mxu0
      %v5477 = vadd.f32 %v5375, %v5447
      %v5478 = vadd.f32 %v5376, %v5450
      %v5479 = vadd.f32 %v5377, %v5455
      %v5480 = vadd.f32 %v5378, %v5458
      %v5481 = vadd.f32 %v5379, %v5463
      %v5482 = vadd.f32 %v5380, %v5466
      %v5483 = vadd.f32 %v5381, %v5471
      %v5484 = vadd.f32 %v5382, %v5474
      %v5485 = vld [vmem:[%s5084 + $0x1] sm:$0xff]
      %v5486 = vld [vmem:[%s5084 + $0x11] sm:$0xff]
      %v5487 = vld [vmem:[%s5084 + $0x21] sm:$0xff]
      %v5488 = vld [vmem:[%s5084 + $0x31] sm:$0xff]
      %v5489 = vld [vmem:[%s5084 + $0x41] sm:$0xff]
      %v5490 = vld [vmem:[%s5084 + $0x51] sm:$0xff]
      %v5491 = vld [vmem:[%s5084 + $0x61] sm:$0xff]
      %v5492 = vld [vmem:[%s5084 + $0x71] sm:$0xff]
      %v5493 = vpack.c.bf16 %v5486, %v5485
      %v5494 = vpack.c.bf16 %v5488, %v5487
      %v5495 = vpack.c.bf16 %v5490, %v5489
      %v5496 = vpack.c.bf16 %v5492, %v5491
      %s5497 = scalar_lea.vmem %s4, 16
      %v5498 = vld [vmem:[%s5497] sm:$0xf]
      %v5500 = vsel %vm5062, %v5493, 0
      %v5503 = vsel %vm5062, %v5494, 0
      %v5506 = vsel %vm5062, %v5495, 0
      %v5509 = vsel %vm5062, %v5496, 0
      %v5512 = vsel %vm5132, %v5498, 0
      %5514 = vmatprep.subr.bf16.mxu0 0
      %5515 = vmatpush1.bf16.msra.mxu0 %v5512
      %5516 = vmatprep.subr.bf16.mxu0 0
      %5517 = vmatpush1.bf16.msra.mxu0 0
      %5518 = vmatprep.subr.bf16.mxu0 0
      %5519 = vmatpush1.bf16.msra.mxu0 0
      %5520 = vmatprep.subr.bf16.mxu0 0
      %5521 = vmatpush1.bf16.msra.mxu0 0
      %5522 = vmatprep.subr.bf16.mxu0 0
      %5523 = vmatpush1.bf16.msra.mxu0 0
      %5524 = vmatprep.subr.bf16.mxu0 0
      %5525 = vmatpush1.bf16.msra.mxu0 0
      %5526 = vmatprep.subr.bf16.mxu0 0
      %5527 = vmatpush1.bf16.msra.mxu0 0
      %5528 = vmatprep.subr.bf16.mxu0 0
      %5529 = vmatpush1.bf16.msra.mxu0 0
      %5530 = vmatprep.subr.bf16.mxu0 0
      %5531 = vmatpush1.bf16.msra.mxu0 0
      %5532 = vmatprep.subr.bf16.mxu0 0
      %5533 = vmatpush1.bf16.msra.mxu0 0
      %5534 = vmatprep.subr.bf16.mxu0 0
      %5535 = vmatpush1.bf16.msra.mxu0 0
      %5536 = vmatprep.subr.bf16.mxu0 0
      %5537 = vmatpush1.bf16.msra.mxu0 0
      %5538 = vmatprep.subr.bf16.mxu0 0
      %5539 = vmatpush1.bf16.msra.mxu0 0
      %5540 = vmatprep.subr.bf16.mxu0 0
      %5541 = vmatpush1.bf16.msra.mxu0 0
      %5542 = vmatprep.subr.bf16.mxu0 0
      %5543 = vmatpush1.bf16.msra.mxu0 0
      %5544 = vmatprep.subr.bf16.mxu0 0
      %5545 = vmatpush1.bf16.msra.mxu0 0
      %5546 = vmatprep.mubr.bf16.mxu0 0
      %5547 = vmatmul.mubr.bf16.gmra.mrb[0].mxu0 %v5500
      %v5548 = vpop.f32.mrb[0].mxu0
      %v5549 = vadd.f32 0.0, %v5548
      %v5550 = vpop.f32.mrb[0].mxu0
      %v5551 = vpop.f32.mrb[0].mxu0
      %v5552 = vadd.f32 0.0, %v5551
      %v5553 = vpop.f32.mrb[0].mxu0
      %5554 = vmatprep.mubr.bf16.mxu0 0
      %5555 = vmatmul.mubr.bf16.gmra.mrb[0].mxu0 %v5503
      %v5556 = vpop.f32.mrb[0].mxu0
      %v5557 = vadd.f32 0.0, %v5556
      %v5558 = vpop.f32.mrb[0].mxu0
      %v5559 = vpop.f32.mrb[0].mxu0
      %v5560 = vadd.f32 0.0, %v5559
      %v5561 = vpop.f32.mrb[0].mxu0
      %5562 = vmatprep.mubr.bf16.mxu0 0
      %5563 = vmatmul.mubr.bf16.gmra.mrb[0].mxu0 %v5506
      %v5564 = vpop.f32.mrb[0].mxu0
      %v5565 = vadd.f32 0.0, %v5564
      %v5566 = vpop.f32.mrb[0].mxu0
      %v5567 = vpop.f32.mrb[0].mxu0
      %v5568 = vadd.f32 0.0, %v5567
      %v5569 = vpop.f32.mrb[0].mxu0
      %5570 = vmatprep.mubr.bf16.mxu0 0
      %5571 = vmatmul.mubr.bf16.gmra.mrb[0].mxu0 %v5509
      %v5572 = vpop.f32.mrb[0].mxu0
      %v5573 = vadd.f32 0.0, %v5572
      %v5574 = vpop.f32.mrb[0].mxu0
      %v5575 = vpop.f32.mrb[0].mxu0
      %v5576 = vadd.f32 0.0, %v5575
      %v5577 = vpop.f32.mrb[0].mxu0
      %5578 = vdwg.mxu0
      %v5579 = vadd.f32 %v5477, %v5549
      %v5580 = vadd.f32 %v5478, %v5552
      %v5581 = vadd.f32 %v5479, %v5557
      %v5582 = vadd.f32 %v5480, %v5560
      %v5583 = vadd.f32 %v5481, %v5565
      %v5584 = vadd.f32 %v5482, %v5568
      %v5585 = vadd.f32 %v5483, %v5573
      %v5586 = vadd.f32 %v5484, %v5576
      %v5587 = vld [vmem:[%s5084 + $0x2] sm:$0xff]
      %v5588 = vld [vmem:[%s5084 + $0x12] sm:$0xff]
      %v5589 = vld [vmem:[%s5084 + $0x22] sm:$0xff]
      %v5590 = vld [vmem:[%s5084 + $0x32] sm:$0xff]
      %v5591 = vld [vmem:[%s5084 + $0x42] sm:$0xff]
      %v5592 = vld [vmem:[%s5084 + $0x52] sm:$0xff]
      %v5593 = vld [vmem:[%s5084 + $0x62] sm:$0xff]
      %v5594 = vld [vmem:[%s5084 + $0x72] sm:$0xff]
      %v5595 = vpack.c.bf16 %v5588, %v5587
      %v5596 = vpack.c.bf16 %v5590, %v5589
      %v5597 = vpack.c.bf16 %v5592, %v5591
      %v5598 = vpack.c.bf16 %v5594, %v5593
      %s5599 = scalar_lea.vmem %s4, 20
      %v5600 = vld [vmem:[%s5599] sm:$0xf]
      %v5602 = vsel %vm5062, %v5595, 0
      %v5605 = vsel %vm5062, %v5596, 0
      %v5608 = vsel %vm5062, %v5597, 0
      %v5611 = vsel %vm5062, %v5598, 0
      %v5614 = vsel %vm5132, %v5600, 0
      %5616 = vmatprep.subr.bf16.mxu0 0
      %5617 = vmatpush1.bf16.msra.mxu0 %v5614
      %5618 = vmatprep.subr.bf16.mxu0 0
      %5619 = vmatpush1.bf16.msra.mxu0 0
      %5620 = vmatprep.subr.bf16.mxu0 0
      %5621 = vmatpush1.bf16.msra.mxu0 0
      %5622 = vmatprep.subr.bf16.mxu0 0
      %5623 = vmatpush1.bf16.msra.mxu0 0
      %5624 = vmatprep.subr.bf16.mxu0 0
      %5625 = vmatpush1.bf16.msra.mxu0 0
      %5626 = vmatprep.subr.bf16.mxu0 0
      %5627 = vmatpush1.bf16.msra.mxu0 0
      %5628 = vmatprep.subr.bf16.mxu0 0
      %5629 = vmatpush1.bf16.msra.mxu0 0
      %5630 = vmatprep.subr.bf16.mxu0 0
      %5631 = vmatpush1.bf16.msra.mxu0 0
      %5632 = vmatprep.subr.bf16.mxu0 0
      %5633 = vmatpush1.bf16.msra.mxu0 0
      %5634 = vmatprep.subr.bf16.mxu0 0
      %5635 = vmatpush1.bf16.msra.mxu0 0
      %5636 = vmatprep.subr.bf16.mxu0 0
      %5637 = vmatpush1.bf16.msra.mxu0 0
      %5638 = vmatprep.subr.bf16.mxu0 0
      %5639 = vmatpush1.bf16.msra.mxu0 0
      %5640 = vmatprep.subr.bf16.mxu0 0
      %5641 = vmatpush1.bf16.msra.mxu0 0
      %5642 = vmatprep.subr.bf16.mxu0 0
      %5643 = vmatpush1.bf16.msra.mxu0 0
      %5644 = vmatprep.subr.bf16.mxu0 0
      %5645 = vmatpush1.bf16.msra.mxu0 0
      %5646 = vmatprep.subr.bf16.mxu0 0
      %5647 = vmatpush1.bf16.msra.mxu0 0
      %5648 = vmatprep.mubr.bf16.mxu0 0
      %5649 = vmatmul.mubr.bf16.gmra.mrb[0].mxu0 %v5602
      %v5650 = vpop.f32.mrb[0].mxu0
      %v5651 = vadd.f32 0.0, %v5650
      %v5652 = vpop.f32.mrb[0].mxu0
      %v5653 = vpop.f32.mrb[0].mxu0
      %v5654 = vadd.f32 0.0, %v5653
      %v5655 = vpop.f32.mrb[0].mxu0
      %5656 = vmatprep.mubr.bf16.mxu0 0
      %5657 = vmatmul.mubr.bf16.gmra.mrb[0].mxu0 %v5605
      %v5658 = vpop.f32.mrb[0].mxu0
      %v5659 = vadd.f32 0.0, %v5658
      %v5660 = vpop.f32.mrb[0].mxu0
      %v5661 = vpop.f32.mrb[0].mxu0
      %v5662 = vadd.f32 0.0, %v5661
      %v5663 = vpop.f32.mrb[0].mxu0
      %5664 = vmatprep.mubr.bf16.mxu0 0
      %5665 = vmatmul.mubr.bf16.gmra.mrb[0].mxu0 %v5608
      %v5666 = vpop.f32.mrb[0].mxu0
      %v5667 = vadd.f32 0.0, %v5666
      %v5668 = vpop.f32.mrb[0].mxu0
      %v5669 = vpop.f32.mrb[0].mxu0
      %v5670 = vadd.f32 0.0, %v5669
      %v5671 = vpop.f32.mrb[0].mxu0
      %5672 = vmatprep.mubr.bf16.mxu0 0
      %5673 = vmatmul.mubr.bf16.gmra.mrb[0].mxu0 %v5611
      %v5674 = vpop.f32.mrb[0].mxu0
      %v5675 = vadd.f32 0.0, %v5674
      %v5676 = vpop.f32.mrb[0].mxu0
      %v5677 = vpop.f32.mrb[0].mxu0
      %v5678 = vadd.f32 0.0, %v5677
      %v5679 = vpop.f32.mrb[0].mxu0
      %5680 = vdwg.mxu0
      %v5681 = vadd.f32 %v5579, %v5651
      %v5682 = vadd.f32 %v5580, %v5654
      %v5683 = vadd.f32 %v5581, %v5659
      %v5684 = vadd.f32 %v5582, %v5662
      %v5685 = vadd.f32 %v5583, %v5667
      %v5686 = vadd.f32 %v5584, %v5670
      %v5687 = vadd.f32 %v5585, %v5675
      %v5688 = vadd.f32 %v5586, %v5678
      %s5689 = scalar_lea.vmem [#allocation2], 32
      %v5690 = vld [vmem:[%s5689] sm:$0xff]
      %v5691 = vld [vmem:[%s5689 + $0x10] sm:$0xff]
      %v5692 = vld [vmem:[%s5689 + $0x20] sm:$0xff]
      %v5693 = vld [vmem:[%s5689 + $0x30] sm:$0xff]
      %v5694 = vld [vmem:[%s5689 + $0x40] sm:$0xff]
      %v5695 = vld [vmem:[%s5689 + $0x50] sm:$0xff]
      %v5696 = vld [vmem:[%s5689 + $0x60] sm:$0xff]
      %v5697 = vld [vmem:[%s5689 + $0x70] sm:$0xff]
      %v5698 = vpack.c.bf16 %v5691, %v5690
      %v5699 = vpack.c.bf16 %v5693, %v5692
      %v5700 = vpack.c.bf16 %v5695, %v5694
      %v5701 = vpack.c.bf16 %v5697, %v5696
      %s5702 = scalar_lea.vmem %s4, 24
      %v5703 = vld [vmem:[%s5702] sm:$0xf]
      %v5705 = vsel %vm5062, %v5698, 0
      %v5708 = vsel %vm5062, %v5699, 0
      %v5711 = vsel %vm5062, %v5700, 0
      %v5714 = vsel %vm5062, %v5701, 0
      %v5717 = vsel %vm5132, %v5703, 0
      %5719 = vmatprep.subr.bf16.mxu0 0
      %5720 = vmatpush1.bf16.msra.mxu0 %v5717
      %5721 = vmatprep.subr.bf16.mxu0 0
      %5722 = vmatpush1.bf16.msra.mxu0 0
      %5723 = vmatprep.subr.bf16.mxu0 0
      %5724 = vmatpush1.bf16.msra.mxu0 0
      %5725 = vmatprep.subr.bf16.mxu0 0
      %5726 = vmatpush1.bf16.msra.mxu0 0
      %5727 = vmatprep.subr.bf16.mxu0 0
      %5728 = vmatpush1.bf16.msra.mxu0 0
      %5729 = vmatprep.subr.bf16.mxu0 0
      %5730 = vmatpush1.bf16.msra.mxu0 0
      %5731 = vmatprep.subr.bf16.mxu0 0
      %5732 = vmatpush1.bf16.msra.mxu0 0
      %5733 = vmatprep.subr.bf16.mxu0 0
      %5734 = vmatpush1.bf16.msra.mxu0 0
      %5735 = vmatprep.subr.bf16.mxu0 0
      %5736 = vmatpush1.bf16.msra.mxu0 0
      %5737 = vmatprep.subr.bf16.mxu0 0
      %5738 = vmatpush1.bf16.msra.mxu0 0
      %5739 = vmatprep.subr.bf16.mxu0 0
      %5740 = vmatpush1.bf16.msra.mxu0 0
      %5741 = vmatprep.subr.bf16.mxu0 0
      %5742 = vmatpush1.bf16.msra.mxu0 0
      %5743 = vmatprep.subr.bf16.mxu0 0
      %5744 = vmatpush1.bf16.msra.mxu0 0
      %5745 = vmatprep.subr.bf16.mxu0 0
      %5746 = vmatpush1.bf16.msra.mxu0 0
      %5747 = vmatprep.subr.bf16.mxu0 0
      %5748 = vmatpush1.bf16.msra.mxu0 0
      %5749 = vmatprep.subr.bf16.mxu0 0
      %5750 = vmatpush1.bf16.msra.mxu0 0
      %5751 = vmatprep.mubr.bf16.mxu0 0
      %5752 = vmatmul.mubr.bf16.gmra.mrb[0].mxu0 %v5705
      %v5753 = vpop.f32.mrb[0].mxu0
      %v5754 = vadd.f32 0.0, %v5753
      %v5755 = vpop.f32.mrb[0].mxu0
      %v5756 = vpop.f32.mrb[0].mxu0
      %v5757 = vadd.f32 0.0, %v5756
      %v5758 = vpop.f32.mrb[0].mxu0
      %5759 = vmatprep.mubr.bf16.mxu0 0
      %5760 = vmatmul.mubr.bf16.gmra.mrb[0].mxu0 %v5708
      %v5761 = vpop.f32.mrb[0].mxu0
      %v5762 = vadd.f32 0.0, %v5761
      %v5763 = vpop.f32.mrb[0].mxu0
      %v5764 = vpop.f32.mrb[0].mxu0
      %v5765 = vadd.f32 0.0, %v5764
      %v5766 = vpop.f32.mrb[0].mxu0
      %5767 = vmatprep.mubr.bf16.mxu0 0
      %5768 = vmatmul.mubr.bf16.gmra.mrb[0].mxu0 %v5711
      %v5769 = vpop.f32.mrb[0].mxu0
      %v5770 = vadd.f32 0.0, %v5769
      %v5771 = vpop.f32.mrb[0].mxu0
      %v5772 = vpop.f32.mrb[0].mxu0
      %v5773 = vadd.f32 0.0, %v5772
      %v5774 = vpop.f32.mrb[0].mxu0
      %5775 = vmatprep.mubr.bf16.mxu0 0
      %5776 = vmatmul.mubr.bf16.gmra.mrb[0].mxu0 %v5714
      %v5777 = vpop.f32.mrb[0].mxu0
      %v5778 = vadd.f32 0.0, %v5777
      %v5779 = vpop.f32.mrb[0].mxu0
      %v5780 = vpop.f32.mrb[0].mxu0
      %v5781 = vadd.f32 0.0, %v5780
      %v5782 = vpop.f32.mrb[0].mxu0
      %5783 = vdwg.mxu0
      %v5784 = vadd.f32 %v5681, %v5754
      %v5785 = vadd.f32 %v5682, %v5757
      %v5786 = vadd.f32 %v5683, %v5762
      %v5787 = vadd.f32 %v5684, %v5765
      %v5788 = vadd.f32 %v5685, %v5770
      %v5789 = vadd.f32 %v5686, %v5773
      %v5790 = vadd.f32 %v5687, %v5778
      %v5791 = vadd.f32 %v5688, %v5781
      %v5792 = vld [vmem:[%s5689 + $0x1] sm:$0xff]
      %v5793 = vld [vmem:[%s5689 + $0x11] sm:$0xff]
      %v5794 = vld [vmem:[%s5689 + $0x21] sm:$0xff]
      %v5795 = vld [vmem:[%s5689 + $0x31] sm:$0xff]
      %v5796 = vld [vmem:[%s5689 + $0x41] sm:$0xff]
      %v5797 = vld [vmem:[%s5689 + $0x51] sm:$0xff]
      %v5798 = vld [vmem:[%s5689 + $0x61] sm:$0xff]
      %v5799 = vld [vmem:[%s5689 + $0x71] sm:$0xff]
      %v5800 = vpack.c.bf16 %v5793, %v5792
      %v5801 = vpack.c.bf16 %v5795, %v5794
      %v5802 = vpack.c.bf16 %v5797, %v5796
      %v5803 = vpack.c.bf16 %v5799, %v5798
      %s5804 = scalar_lea.vmem %s4, 28
      %v5805 = vld [vmem:[%s5804] sm:$0xf]
      %v5807 = vsel %vm5062, %v5800, 0
      %v5810 = vsel %vm5062, %v5801, 0
      %v5813 = vsel %vm5062, %v5802, 0
      %v5816 = vsel %vm5062, %v5803, 0
      %v5819 = vsel %vm5132, %v5805, 0
      %5821 = vmatprep.subr.bf16.mxu0 0
      %5822 = vmatpush1.bf16.msra.mxu0 %v5819
      %5823 = vmatprep.subr.bf16.mxu0 0
      %5824 = vmatpush1.bf16.msra.mxu0 0
      %5825 = vmatprep.subr.bf16.mxu0 0
      %5826 = vmatpush1.bf16.msra.mxu0 0
      %5827 = vmatprep.subr.bf16.mxu0 0
      %5828 = vmatpush1.bf16.msra.mxu0 0
      %5829 = vmatprep.subr.bf16.mxu0 0
      %5830 = vmatpush1.bf16.msra.mxu0 0
      %5831 = vmatprep.subr.bf16.mxu0 0
      %5832 = vmatpush1.bf16.msra.mxu0 0
      %5833 = vmatprep.subr.bf16.mxu0 0
      %5834 = vmatpush1.bf16.msra.mxu0 0
      %5835 = vmatprep.subr.bf16.mxu0 0
      %5836 = vmatpush1.bf16.msra.mxu0 0
      %5837 = vmatprep.subr.bf16.mxu0 0
      %5838 = vmatpush1.bf16.msra.mxu0 0
      %5839 = vmatprep.subr.bf16.mxu0 0
      %5840 = vmatpush1.bf16.msra.mxu0 0
      %5841 = vmatprep.subr.bf16.mxu0 0
      %5842 = vmatpush1.bf16.msra.mxu0 0
      %5843 = vmatprep.subr.bf16.mxu0 0
      %5844 = vmatpush1.bf16.msra.mxu0 0
      %5845 = vmatprep.subr.bf16.mxu0 0
      %5846 = vmatpush1.bf16.msra.mxu0 0
      %5847 = vmatprep.subr.bf16.mxu0 0
      %5848 = vmatpush1.bf16.msra.mxu0 0
      %5849 = vmatprep.subr.bf16.mxu0 0
      %5850 = vmatpush1.bf16.msra.mxu0 0
      %5851 = vmatprep.subr.bf16.mxu0 0
      %5852 = vmatpush1.bf16.msra.mxu0 0
      %5853 = vmatprep.mubr.bf16.mxu0 0
      %5854 = vmatmul.mubr.bf16.gmra.mrb[0].mxu0 %v5807
      %v5855 = vpop.f32.mrb[0].mxu0
      %v5856 = vadd.f32 0.0, %v5855
      %v5857 = vpop.f32.mrb[0].mxu0
      %v5858 = vpop.f32.mrb[0].mxu0
      %v5859 = vadd.f32 0.0, %v5858
      %v5860 = vpop.f32.mrb[0].mxu0
      %5861 = vmatprep.mubr.bf16.mxu0 0
      %5862 = vmatmul.mubr.bf16.gmra.mrb[0].mxu0 %v5810
      %v5863 = vpop.f32.mrb[0].mxu0
      %v5864 = vadd.f32 0.0, %v5863
      %v5865 = vpop.f32.mrb[0].mxu0
      %v5866 = vpop.f32.mrb[0].mxu0
      %v5867 = vadd.f32 0.0, %v5866
      %v5868 = vpop.f32.mrb[0].mxu0
      %5869 = vmatprep.mubr.bf16.mxu0 0
      %5870 = vmatmul.mubr.bf16.gmra.mrb[0].mxu0 %v5813
      %v5871 = vpop.f32.mrb[0].mxu0
      %v5872 = vadd.f32 0.0, %v5871
      %v5873 = vpop.f32.mrb[0].mxu0
      %v5874 = vpop.f32.mrb[0].mxu0
      %v5875 = vadd.f32 0.0, %v5874
      %v5876 = vpop.f32.mrb[0].mxu0
      %5877 = vmatprep.mubr.bf16.mxu0 0
      %5878 = vmatmul.mubr.bf16.gmra.mrb[0].mxu0 %v5816
      %v5879 = vpop.f32.mrb[0].mxu0
      %v5880 = vadd.f32 0.0, %v5879
      %v5881 = vpop.f32.mrb[0].mxu0
      %v5882 = vpop.f32.mrb[0].mxu0
      %v5883 = vadd.f32 0.0, %v5882
      %v5884 = vpop.f32.mrb[0].mxu0
      %5885 = vdwg.mxu0
      %v5886 = vadd.f32 %v5784, %v5856
      %v5887 = vadd.f32 %v5785, %v5859
      %v5888 = vadd.f32 %v5786, %v5864
      %v5889 = vadd.f32 %v5787, %v5867
      %v5890 = vadd.f32 %v5788, %v5872
      %v5891 = vadd.f32 %v5789, %v5875
      %v5892 = vadd.f32 %v5790, %v5880
      %v5893 = vadd.f32 %v5791, %v5883
      %v5894 = vld [vmem:[%s5689 + $0x2] sm:$0xff]
      %v5895 = vld [vmem:[%s5689 + $0x12] sm:$0xff]
      %v5896 = vld [vmem:[%s5689 + $0x22] sm:$0xff]
      %v5897 = vld [vmem:[%s5689 + $0x32] sm:$0xff]
      %v5898 = vld [vmem:[%s5689 + $0x42] sm:$0xff]
      %v5899 = vld [vmem:[%s5689 + $0x52] sm:$0xff]
      %v5900 = vld [vmem:[%s5689 + $0x62] sm:$0xff]
      %v5901 = vld [vmem:[%s5689 + $0x72] sm:$0xff]
      %v5902 = vpack.c.bf16 %v5895, %v5894
      %v5903 = vpack.c.bf16 %v5897, %v5896
      %v5904 = vpack.c.bf16 %v5899, %v5898
      %v5905 = vpack.c.bf16 %v5901, %v5900
      %s5906 = scalar_lea.vmem %s4, 32
      %v5907 = vld [vmem:[%s5906] sm:$0xf]
      %v5909 = vsel %vm5062, %v5902, 0
      %v5912 = vsel %vm5062, %v5903, 0
      %v5915 = vsel %vm5062, %v5904, 0
      %v5918 = vsel %vm5062, %v5905, 0
      %v5921 = vsel %vm5132, %v5907, 0
      %5923 = vmatprep.subr.bf16.mxu0 0
      %5924 = vmatpush1.bf16.msra.mxu0 %v5921
      %5925 = vmatprep.subr.bf16.mxu0 0
      %5926 = vmatpush1.bf16.msra.mxu0 0
      %5927 = vmatprep.subr.bf16.mxu0 0
      %5928 = vmatpush1.bf16.msra.mxu0 0
      %5929 = vmatprep.subr.bf16.mxu0 0
      %5930 = vmatpush1.bf16.msra.mxu0 0
      %5931 = vmatprep.subr.bf16.mxu0 0
      %5932 = vmatpush1.bf16.msra.mxu0 0
      %5933 = vmatprep.subr.bf16.mxu0 0
      %5934 = vmatpush1.bf16.msra.mxu0 0
      %5935 = vmatprep.subr.bf16.mxu0 0
      %5936 = vmatpush1.bf16.msra.mxu0 0
      %5937 = vmatprep.subr.bf16.mxu0 0
      %5938 = vmatpush1.bf16.msra.mxu0 0
      %5939 = vmatprep.subr.bf16.mxu0 0
      %5940 = vmatpush1.bf16.msra.mxu0 0
      %5941 = vmatprep.subr.bf16.mxu0 0
      %5942 = vmatpush1.bf16.msra.mxu0 0
      %5943 = vmatprep.subr.bf16.mxu0 0
      %5944 = vmatpush1.bf16.msra.mxu0 0
      %5945 = vmatprep.subr.bf16.mxu0 0
      %5946 = vmatpush1.bf16.msra.mxu0 0
      %5947 = vmatprep.subr.bf16.mxu0 0
      %5948 = vmatpush1.bf16.msra.mxu0 0
      %5949 = vmatprep.subr.bf16.mxu0 0
      %5950 = vmatpush1.bf16.msra.mxu0 0
      %5951 = vmatprep.subr.bf16.mxu0 0
      %5952 = vmatpush1.bf16.msra.mxu0 0
      %5953 = vmatprep.subr.bf16.mxu0 0
      %5954 = vmatpush1.bf16.msra.mxu0 0
      %5955 = vmatprep.mubr.bf16.mxu0 0
      %5956 = vmatmul.mubr.bf16.gmra.mrb[0].mxu0 %v5909
      %v5957 = vpop.f32.mrb[0].mxu0
      %v5958 = vadd.f32 0.0, %v5957
      %v5959 = vpop.f32.mrb[0].mxu0
      %v5960 = vpop.f32.mrb[0].mxu0
      %v5961 = vadd.f32 0.0, %v5960
      %v5962 = vpop.f32.mrb[0].mxu0
      %5963 = vmatprep.mubr.bf16.mxu0 0
      %5964 = vmatmul.mubr.bf16.gmra.mrb[0].mxu0 %v5912
      %v5965 = vpop.f32.mrb[0].mxu0
      %v5966 = vadd.f32 0.0, %v5965
      %v5967 = vpop.f32.mrb[0].mxu0
      %v5968 = vpop.f32.mrb[0].mxu0
      %v5969 = vadd.f32 0.0, %v5968
      %v5970 = vpop.f32.mrb[0].mxu0
      %5971 = vmatprep.mubr.bf16.mxu0 0
      %5972 = vmatmul.mubr.bf16.gmra.mrb[0].mxu0 %v5915
      %v5973 = vpop.f32.mrb[0].mxu0
      %v5974 = vadd.f32 0.0, %v5973
      %v5975 = vpop.f32.mrb[0].mxu0
      %v5976 = vpop.f32.mrb[0].mxu0
      %v5977 = vadd.f32 0.0, %v5976
      %v5978 = vpop.f32.mrb[0].mxu0
      %5979 = vmatprep.mubr.bf16.mxu0 0
      %5980 = vmatmul.mubr.bf16.gmra.mrb[0].mxu0 %v5918
      %v5981 = vpop.f32.mrb[0].mxu0
      %v5982 = vadd.f32 0.0, %v5981
      %v5983 = vpop.f32.mrb[0].mxu0
      %v5984 = vpop.f32.mrb[0].mxu0
      %v5985 = vadd.f32 0.0, %v5984
      %v5986 = vpop.f32.mrb[0].mxu0
      %5987 = vdwg.mxu0
      %v5988 = vadd.f32 %v5886, %v5958
      %v5989 = vadd.f32 %v5887, %v5961
      %v5990 = vadd.f32 %v5888, %v5966
      %v5991 = vadd.f32 %v5889, %v5969
      %v5992 = vadd.f32 %v5890, %v5974
      %v5993 = vadd.f32 %v5891, %v5977
      %v5994 = vadd.f32 %v5892, %v5982
      %v5995 = vadd.f32 %v5893, %v5985
      %v5996 = vld [vmem:[%s5] sm:$0x1]
      %v5998 = vlaneseq
      %v5999 = vshrl.u32 %v5998, 7
      %v6000 = vsub.s32 0, %v5999
      %v6001 = vrot.slane %v5996, %v6000
      %v6003 = vadd.f32 %v5988, %v6001
      %v6004 = vadd.f32 %v5989, %v6001
      %v6005 = vadd.f32 %v5990, %v6001
      %v6006 = vadd.f32 %v5991, %v6001
      %v6007 = vadd.f32 %v5992, %v6001
      %v6008 = vadd.f32 %v5993, %v6001
      %v6009 = vadd.f32 %v5994, %v6001
      %v6010 = vadd.f32 %v5995, %v6001
      %v6011 = vmax.f32 %v6003, 0.0
      %v6012 = vmax.f32 %v6004, 0.0
      %v6013 = vmax.f32 %v6005, 0.0
      %v6014 = vmax.f32 %v6006, 0.0
      %v6015 = vmax.f32 %v6007, 0.0
      %v6016 = vmax.f32 %v6008, 0.0
      %v6017 = vmax.f32 %v6009, 0.0
      %v6018 = vmax.f32 %v6010, 0.0
      %vm6019 = vcmask 523264
      %v6021 = vsel %vm6019, 1.0, 0
      %6023 = vmatprep.subr.mxu0 0.0
      %6024 = vmatpush1.msra.mxu0 %v6011
      %6025 = vmatprep.subr.mxu0 0.0
      %6026 = vmatpush1.msra.mxu0 %v6012
      %6027 = vmatprep.subr.mxu0 0.0
      %6028 = vmatpush1.msra.mxu0 %v6013
      %6029 = vmatprep.subr.mxu0 0.0
      %6030 = vmatpush1.msra.mxu0 %v6014
      %6031 = vmatprep.subr.mxu0 0.0
      %6032 = vmatpush1.msra.mxu0 %v6015
      %6033 = vmatprep.subr.mxu0 0.0
      %6034 = vmatpush1.msra.mxu0 %v6016
      %6035 = vmatprep.subr.mxu0 0.0
      %6036 = vmatpush1.msra.mxu0 %v6017
      %6037 = vmatprep.subr.mxu0 0.0
      %6038 = vmatpush1.msra.mxu0 %v6018
      %6039 = vmatprep.subr.mxu0 0.0
      %6040 = vmatpush1.msra.mxu0 0.0
      %6041 = vmatprep.subr.mxu0 0.0
      %6042 = vmatpush1.msra.mxu0 0.0
      %6043 = vmatprep.subr.mxu0 0.0
      %6044 = vmatpush1.msra.mxu0 0.0
      %6045 = vmatprep.subr.mxu0 0.0
      %6046 = vmatpush1.msra.mxu0 0.0
      %6047 = vmatprep.subr.mxu0 0.0
      %6048 = vmatpush1.msra.mxu0 0.0
      %6049 = vmatprep.subr.mxu0 0.0
      %6050 = vmatpush1.msra.mxu0 0.0
      %6051 = vmatprep.subr.mxu0 0.0
      %6052 = vmatpush1.msra.mxu0 0.0
      %6053 = vmatprep.subr.mxu0 0.0
      %6054 = vmatpush1.msra.mxu0 0.0
      %6055 = vmatprep.subr.mxu0 0.0
      %6056 = vmatpush1.msra.mxu0 0.0
      %6057 = vmatprep.subr.mxu0 0.0
      %6058 = vmatpush1.msra.mxu0 0.0
      %6059 = vmatprep.subr.mxu0 0.0
      %6060 = vmatpush1.msra.mxu0 0.0
      %6061 = vmatprep.subr.mxu0 0.0
      %6062 = vmatpush1.msra.mxu0 0.0
      %6063 = vmatprep.subr.mxu0 0.0
      %6064 = vmatpush1.msra.mxu0 0.0
      %6065 = vmatprep.subr.mxu0 0.0
      %6066 = vmatpush1.msra.mxu0 0.0
      %6067 = vmatprep.subr.mxu0 0.0
      %6068 = vmatpush1.msra.mxu0 0.0
      %6069 = vmatprep.subr.mxu0 0.0
      %6070 = vmatpush1.msra.mxu0 0.0
      %6071 = vmatprep.subr.mxu0 0.0
      %6072 = vmatpush1.msra.mxu0 0.0
      %6073 = vmatprep.subr.mxu0 0.0
      %6074 = vmatpush1.msra.mxu0 0.0
      %6075 = vmatprep.subr.mxu0 0.0
      %6076 = vmatpush1.msra.mxu0 0.0
      %6077 = vmatprep.subr.mxu0 0.0
      %6078 = vmatpush1.msra.mxu0 0.0
      %6079 = vmatprep.subr.mxu0 0.0
      %6080 = vmatpush1.msra.mxu0 0.0
      %6081 = vmatprep.subr.mxu0 0.0
      %6082 = vmatpush1.msra.mxu0 0.0
      %6083 = vmatprep.subr.mxu0 0.0
      %6084 = vmatpush1.msra.mxu0 0.0
      %6085 = vmatprep.subr.mxu0 0.0
      %6086 = vmatpush1.msra.mxu0 0.0
      %6087 = vmatprep.mubr.f32.mxu0 0.0
      %6088 = vmatmul.mubr.f32.gmra.mrb[0].mxu0 %v6021
      %v6089 = vpop.f32.mrb[0].mxu0
      %v6090 = vadd.f32 0.0, %v6089
      %v6091 = vpop.f32.mrb[0].mxu0
      %6092 = vdwg.mxu0
      %v6093 = vmul.f32 %v6090, 0.015625
      %v6094 = vld [vmem:[%s6] sm:$0xff]
      %v6095 = vld [vmem:[%s6 + $0x8] sm:$0xff]
      %v6096 = vld [vmem:[%s7] sm:$0x1]
      %vm6097 = vcmask 130048
      %v6099 = vsel %vm6097, %v6093, 0
      %6101 = vmatprep.subr.mxu0 0.0
      %6102 = vmatpush1.msra.mxu0 %v6094
      %6103 = vmatprep.subr.mxu0 0.0
      %6104 = vmatpush1.msra.mxu0 %v6095
      %6105 = vmatprep.subr.mxu0 0.0
      %6106 = vmatpush1.msra.mxu0 0.0
      %6107 = vmatprep.subr.mxu0 0.0
      %6108 = vmatpush1.msra.mxu0 0.0
      %6109 = vmatprep.subr.mxu0 0.0
      %6110 = vmatpush1.msra.mxu0 0.0
      %6111 = vmatprep.subr.mxu0 0.0
      %6112 = vmatpush1.msra.mxu0 0.0
      %6113 = vmatprep.subr.mxu0 0.0
      %6114 = vmatpush1.msra.mxu0 0.0
      %6115 = vmatprep.subr.mxu0 0.0
      %6116 = vmatpush1.msra.mxu0 0.0
      %6117 = vmatprep.subr.mxu0 0.0
      %6118 = vmatpush1.msra.mxu0 0.0
      %6119 = vmatprep.subr.mxu0 0.0
      %6120 = vmatpush1.msra.mxu0 0.0
      %6121 = vmatprep.subr.mxu0 0.0
      %6122 = vmatpush1.msra.mxu0 0.0
      %6123 = vmatprep.subr.mxu0 0.0
      %6124 = vmatpush1.msra.mxu0 0.0
      %6125 = vmatprep.subr.mxu0 0.0
      %6126 = vmatpush1.msra.mxu0 0.0
      %6127 = vmatprep.subr.mxu0 0.0
      %6128 = vmatpush1.msra.mxu0 0.0
      %6129 = vmatprep.subr.mxu0 0.0
      %6130 = vmatpush1.msra.mxu0 0.0
      %6131 = vmatprep.subr.mxu0 0.0
      %6132 = vmatpush1.msra.mxu0 0.0
      %6133 = vmatprep.subr.mxu0 0.0
      %6134 = vmatpush1.msra.mxu0 0.0
      %6135 = vmatprep.subr.mxu0 0.0
      %6136 = vmatpush1.msra.mxu0 0.0
      %6137 = vmatprep.subr.mxu0 0.0
      %6138 = vmatpush1.msra.mxu0 0.0
      %6139 = vmatprep.subr.mxu0 0.0
      %6140 = vmatpush1.msra.mxu0 0.0
      %6141 = vmatprep.subr.mxu0 0.0
      %6142 = vmatpush1.msra.mxu0 0.0
      %6143 = vmatprep.subr.mxu0 0.0
      %6144 = vmatpush1.msra.mxu0 0.0
      %6145 = vmatprep.subr.mxu0 0.0
      %6146 = vmatpush1.msra.mxu0 0.0
      %6147 = vmatprep.subr.mxu0 0.0
      %6148 = vmatpush1.msra.mxu0 0.0
      %6149 = vmatprep.subr.mxu0 0.0
      %6150 = vmatpush1.msra.mxu0 0.0
      %6151 = vmatprep.subr.mxu0 0.0
      %6152 = vmatpush1.msra.mxu0 0.0
      %6153 = vmatprep.subr.mxu0 0.0
      %6154 = vmatpush1.msra.mxu0 0.0
      %6155 = vmatprep.subr.mxu0 0.0
      %6156 = vmatpush1.msra.mxu0 0.0
      %6157 = vmatprep.subr.mxu0 0.0
      %6158 = vmatpush1.msra.mxu0 0.0
      %6159 = vmatprep.subr.mxu0 0.0
      %6160 = vmatpush1.msra.mxu0 0.0
      %6161 = vmatprep.subr.mxu0 0.0
      %6162 = vmatpush1.msra.mxu0 0.0
      %6163 = vmatprep.subr.mxu0 0.0
      %6164 = vmatpush1.msra.mxu0 0.0
      %6165 = vmatprep.mubr.f32.mxu0 0.0
      %6166 = vmatmul.mubr.f32.gmra.mrb[0].mxu0 %v6099
      %v6167 = vpop.f32.mrb[0].mxu0
      %v6168 = vadd.f32 %v6096, %v6167
      %v6169 = vpop.f32.mrb[0].mxu0
      %6170 = vdwg.mxu0
      %6171 = vst [vmem:[%s301] sm:$0x1] %v6168
      %p6172 = scmp.lt.s32.totalorder %s19, 1
      %s6173 = scalar_select %p6172, %s19, 1
      %s6174 = scalar_lea.vmem %s8, %s6173
      // Predicated region
      $region53: #{_lambda_.1} parent=51 // pred_check
        %p6175 = pneg %p210
      $region54: #{_lambda_.1} parent=51 // pred_check_branch
        %6177 = sbr.rel (%p6175) target = $region56
      $region55: #{_lambda_.1} parent=51 // pred_region
        _
      $region56: #{_lambda_.1} parent=51 // pred_fallthru
        _
    $region52: #{_lambda_.1} parent=5 // pred_fallthru
      _
    %p6178 = scmp.le.s32.totalorder 2, %s14
    // Predicated region
    $region57: #{_lambda_.1} parent=5 // pred_check
      %p6179 = pneg %p6178
    $region58: #{_lambda_.1} parent=5 // pred_check_branch
      %6181 = sbr.rel (%p6179) target = $region60
    $region59: #{_lambda_.1} parent=5 // pred_region
      %s6182 = ssub.s32 %s14, 2
      // Predicated region
      $region61: #{_lambda_.1} parent=59 // pred_check
        %p6183 = pneg %p216
      $region62: #{_lambda_.1} parent=59 // pred_check_branch
        %6185 = sbr.rel (%p6183) target = $region64
      $region63: #{_lambda_.1} parent=59 // pred_region
        %p6186 = scmp.lt.s32.totalorder %s20, 1
        %s6187 = scalar_select %p6186, %s20, 1
        %s6188 = scalar_lea.vmem %s8, %s6187
      $region64: #{_lambda_.1} parent=59 // pred_fallthru
        _
    $region60: #{_lambda_.1} parent=5 // pred_fallthru
      _
  $region6: #{_lambda_.1} parent=0 // loop_footer
    %s18 = sadd.s32 1, %s14
  $region7: #{_lambda_.1} parent=0 // loop_footer_branch
    %13 = sbr.rel target = $region3
  $region8: #{_lambda_.1} parent=0 // loop_exit
    _

</llo_original>
